<compile_context>
chip_gen: v7x
topology: tpu7x:2x2x1
jax: 0.10.0
libtpu: 0.0.40
codegen_flags: <defaults>
</compile_context>

<pallas_src>
import functools
import math

import jax
import jax.numpy as jnp
from jax import lax
from jax.experimental import pallas as pl
from jax.experimental.pallas import tpu as pltpu

NUM_HEADS = 8
LN_EPS = 1e-5
ATTN_W = 128       # lane-dense width of packed attention-map / logit rows
SUBLANE = 8        # f32 sublane tile
BF16_SUBLANE = 16  # bf16 sublane tile


def _round_up(x, m):
    return (x + m - 1) // m * m


# ---------------------------------------------------------------------------
# Static slab layouts (shared by the wrapper packing and the kernel slicing).
# ---------------------------------------------------------------------------
def _wslab_layout(d_q, d_kv):
    """Rows of a bf16 weight slab: wq(d_q), wk(d_kv), wv(d_kv), wo(d_q)."""
    layout, cur = {}, 0
    for name, rows in (("wq", d_q), ("wk", d_kv), ("wv", d_kv), ("wo", d_q)):
        layout[name] = (cur, rows)
        cur = _round_up(cur + rows, BF16_SUBLANE)
    return layout, cur


def _mlp_layout(dp, dr, hidden):
    layout, cur = {}, 0
    for name, rows in (("w1p", dp), ("w1r", dr), ("b1", 1), ("w2", hidden), ("b2", 1)):
        layout[name] = (cur, rows)
        cur = _round_up(cur + rows, BF16_SUBLANE)
    return layout, cur


def _const_layout(bb, lp, lr, dp, dr):
    h = NUM_HEADS
    entries = (
        ("hm1", h * lr, dp), ("hm2", h * lp, dr),            # block-diag head masks
        ("seg1", h * lr, h), ("seg2", h * lp, h),            # per-head denom reduce
        ("exp1", h, h * lr), ("exp2", h, h * lp),            # reciprocal expansion
        ("avg1", h * lr, ATTN_W), ("avg2", h * lp, ATTN_W),  # head-avg + lane pad
        ("pool_p", bb, bb * lp), ("pool_r", bb, bb * lr),    # mean-over-seq matmuls
    )
    layout, cur, width = {}, 0, ATTN_W
    for name, rows, cols in entries:
        layout[name] = (cur, rows, cols)
        cur = _round_up(cur + rows, SUBLANE)
        width = max(width, cols)
    return layout, _round_up(cur, SUBLANE), _round_up(width, 128)


def _out_row_layout(lp, lr):
    """Per-batch rows in the lane-dense output slab: p map | r map | logit row."""
    row_p = 0
    row_r = _round_up(lp, SUBLANE)
    row_lg = row_r + _round_up(lr, SUBLANE)
    stride = row_lg + SUBLANE
    return row_p, row_r, row_lg, stride


# ---------------------------------------------------------------------------
# In-kernel math.
# ---------------------------------------------------------------------------
def _layernorm(x, g, b):
    mu = jnp.mean(x, axis=-1, keepdims=True)
    var = jnp.mean((x - mu) ** 2, axis=-1, keepdims=True)
    return (x - mu) * lax.rsqrt(var + LN_EPS) * g + b


def _attend(q, k, v, hm, seg, expd, avg, scale):
    """All-heads attention for one batch element, heads lane-contiguous.

    q [lq, d], k/v [lk, d] (f32); hm [H*lk, d], seg [H*lk, H], expd [H, H*lk],
    avg [H*lk, ATTN_W] are precomputed f32 constants (grid-invariant input).
    Returns (head-concat AV output [lq, d] f32, head-avg map [lq, ATTN_W] f32).
    """
    h = NUM_HEADS
    k_stack = (jnp.tile(k, (h, 1)) * hm).astype(jnp.bfloat16)   # [H*lk, d] block-diag
    v_stack = (jnp.tile(v, (h, 1)) * hm).astype(jnp.bfloat16)
    s = lax.dot_general(q.astype(jnp.bfloat16), k_stack,
                        (((1,), (1,)), ((), ())),
                        preferred_element_type=jnp.float32) * scale      # [lq, H*lk]
    s = s - jnp.max(s, axis=-1, keepdims=True)   # uniform per-row shift: exact
    e = jnp.exp(s)
    # narrow per-head denominator (lq x H) instead of a (H*lk)^2 segment matmul
    denom = jnp.dot(e, seg, preferred_element_type=jnp.float32)          # [lq, H]
    recip = jnp.dot(pl.reciprocal(denom, approx=True), expd,
                    preferred_element_type=jnp.float32)                  # [lq, H*lk]
    a = e * recip
    av = jnp.dot(a.astype(jnp.bfloat16), v_stack,
                 preferred_element_type=jnp.float32)                     # [lq, d]
    amap = jnp.dot(a, avg, preferred_element_type=jnp.float32)           # [lq, 128]
    return av, amap


# ---------------------------------------------------------------------------
# Pallas kernel: one batch-block (bb elements) per grid step.
# ---------------------------------------------------------------------------
def classifier_kernel(p_ref, r_ref, wp_ref, wr_ref, vec_ref, mlp_ref, const_ref,
                      out_ref, p_scr, r_scr, *, bb, lp, lr, dp, dr, hidden):
    h = NUM_HEADS
    wp_l, _ = _wslab_layout(dp, dr)
    wr_l, _ = _wslab_layout(dr, dp)
    mlp_l, _ = _mlp_layout(dp, dr, hidden)
    c_l, _, _ = _const_layout(bb, lp, lr, dp, dr)
    row_p, row_r, row_lg, stride = _out_row_layout(lp, lr)

    def wslab(ref, layout, name):
        s, n = layout[name]
        return ref[s:s + n, :]

    def const(name):
        s, n, c = c_l[name]
        return const_ref[s:s + n, 0:c]

    p2d = p_ref[...]                      # [bb*lp, dp] f32
    r2d = r_ref[...]                      # [bb*lr, dr] f32
    p_bf = p2d.astype(jnp.bfloat16)
    r_bf = r2d.astype(jnp.bfloat16)

    # ---- biases / LayerNorm params (f32 vector slab) ----
    bq1, bk1, bv1 = vec_ref[0:1, 0:dp], vec_ref[1:2, 0:dp], vec_ref[2:3, 0:dp]
    bo1, gp, btp = vec_ref[3:4, 0:dp], vec_ref[4:5, 0:dp], vec_ref[5:6, 0:dp]
    bq2, bk2, bv2 = vec_ref[6:7, 0:dr], vec_ref[7:8, 0:dr], vec_ref[8:9, 0:dr]
    bo2, gr, btr = vec_ref[9:10, 0:dr], vec_ref[10:11, 0:dr], vec_ref[11:12, 0:dr]

    # ---- QKV projections: batch folded into the matmul M dimension ----
    q1 = jnp.dot(p_bf, wslab(wp_ref, wp_l, "wq"), preferred_element_type=jnp.float32) + bq1
    k1 = jnp.dot(r_bf, wslab(wp_ref, wp_l, "wk"), preferred_element_type=jnp.float32) + bk1
    v1 = jnp.dot(r_bf, wslab(wp_ref, wp_l, "wv"), preferred_element_type=jnp.float32) + bv1
    q2 = jnp.dot(r_bf, wslab(wr_ref, wr_l, "wq"), preferred_element_type=jnp.float32) + bq2
    k2 = jnp.dot(p_bf, wslab(wr_ref, wr_l, "wk"), preferred_element_type=jnp.float32) + bk2
    v2 = jnp.dot(p_bf, wslab(wr_ref, wr_l, "wv"), preferred_element_type=jnp.float32) + bv2

    hm1, hm2 = const("hm1"), const("hm2")
    seg1, seg2 = const("seg1"), const("seg2")
    exp1, exp2 = const("exp1"), const("exp2")
    avg1, avg2 = const("avg1"), const("avg2")
    scale1 = 1.0 / math.sqrt(dp // h)
    scale2 = 1.0 / math.sqrt(dr // h)

    # ---- per-batch attention cores; AV output and maps stored in-loop ----
    for b in range(bb):
        av, amap = _attend(q1[b * lp:(b + 1) * lp, :], k1[b * lr:(b + 1) * lr, :],
                           v1[b * lr:(b + 1) * lr, :], hm1, seg1, exp1, avg1, scale1)
        p_scr[b * lp:(b + 1) * lp, :] = av
        out_ref[b * stride + row_p: b * stride + row_p + lp, :] = amap

        av, amap = _attend(q2[b * lr:(b + 1) * lr, :], k2[b * lp:(b + 1) * lp, :],
                           v2[b * lp:(b + 1) * lp, :], hm2, seg2, exp2, avg2, scale2)
        r_scr[b * lr:(b + 1) * lr, :] = av
        out_ref[b * stride + row_r: b * stride + row_r + lr, :] = amap

    # ---- out-projection + residual + LayerNorm on full [bb*L, D] slabs ----
    p_att = jnp.dot(p_scr[...].astype(jnp.bfloat16), wslab(wp_ref, wp_l, "wo"),
                    preferred_element_type=jnp.float32) + bo1
    r_att = jnp.dot(r_scr[...].astype(jnp.bfloat16), wslab(wr_ref, wr_l, "wo"),
                    preferred_element_type=jnp.float32) + bo2
    p_att = _layernorm(p_att + p2d, gp, btp)
    r_att = _layernorm(r_att + r2d, gr, btr)

    # ---- AdaptiveAvgPool1d(1) over sequence as precomputed-matrix matmuls ----
    p_pool = jnp.dot(const("pool_p"), p_att, preferred_element_type=jnp.float32)  # [bb, dp]
    r_pool = jnp.dot(const("pool_r"), r_att, preferred_element_type=jnp.float32)  # [bb, dr]

    # ---- MLP head; logits emitted as a lane-dense [bb, 128] row ----
    s, n = mlp_l["w1p"]; w1p = mlp_ref[s:s + n, 0:hidden]
    s, n = mlp_l["w1r"]; w1r = mlp_ref[s:s + n, 0:hidden]
    s, n = mlp_l["b1"];  b1 = mlp_ref[s:s + n, 0:hidden].astype(jnp.float32)
    s, n = mlp_l["w2"];  w2p = mlp_ref[s:s + n, 0:ATTN_W]
    s, n = mlp_l["b2"];  b2r = mlp_ref[s:s + n, 0:ATTN_W].astype(jnp.float32)

    hdn = (jnp.dot(p_pool.astype(jnp.bfloat16), w1p, preferred_element_type=jnp.float32)
           + jnp.dot(r_pool.astype(jnp.bfloat16), w1r, preferred_element_type=jnp.float32)
           + b1)
    hdn = jnp.maximum(hdn, 0.0)
    logit_row = jnp.dot(hdn.astype(jnp.bfloat16), w2p,
                        preferred_element_type=jnp.float32) + b2r   # [bb, ATTN_W]
    for b in range(bb):
        out_ref[b * stride + row_lg: b * stride + row_lg + 1, :] = logit_row[b:b + 1, :]


# ---------------------------------------------------------------------------
# One-time parameter / constant packing (review: do not concat 25 tensors per
# forward call).
# ---------------------------------------------------------------------------
def _block_eq(n_rows, n_cols, row_block, col_block):
    r = jnp.arange(n_rows, dtype=jnp.int32)[:, None] // row_block
    c = jnp.arange(n_cols, dtype=jnp.int32)[None, :] // col_block
    return (r == c).astype(jnp.float32)


def _avg_matrix(lk):
    i = jnp.arange(NUM_HEADS * lk, dtype=jnp.int32)[:, None] % lk
    j = jnp.arange(ATTN_W, dtype=jnp.int32)[None, :]
    return (i == j).astype(jnp.float32) * (1.0 / NUM_HEADS)


def _pool_matrix(bb, l):
    r = jnp.arange(bb, dtype=jnp.int32)[:, None]
    c = jnp.arange(bb * l, dtype=jnp.int32)[None, :] // l
    return (r == c).astype(jnp.float32) * (1.0 / l)


def pack_params(params, *, seq_protein, seq_rna, batch_block):
    dp = params["wq1"].shape[0]
    dr = params["wq2"].shape[0]
    hidden = params["w1p"].shape[1]
    lp, lr, bb = seq_protein, seq_rna, batch_block
    assert dp % NUM_HEADS == 0 and dr % NUM_HEADS == 0
    assert lp <= ATTN_W and lr <= ATTN_W

    def fill(total_rows, width, entries, dtype):
        slab = jnp.zeros((total_rows, width), jnp.float32)
        for (s, _n), arr in entries:
            arr = jnp.asarray(arr, jnp.float32)
            slab = slab.at[s:s + arr.shape[0], 0:arr.shape[1]].set(arr)
        return slab.astype(dtype)

    wp_l, wp_rows = _wslab_layout(dp, dr)
    wr_l, wr_rows = _wslab_layout(dr, dp)
    wp_slab = fill(wp_rows, dp,
                   [(wp_l["wq"], params["wq1"]), (wp_l["wk"], params["wk1"]),
                    (wp_l["wv"], params["wv1"]), (wp_l["wo"], params["wo1"])],
                   jnp.bfloat16)
    wr_slab = fill(wr_rows, dr,
                   [(wr_l["wq"], params["wq2"]), (wr_l["wk"], params["wk2"]),
                    (wr_l["wv"], params["wv2"]), (wr_l["wo"], params["wo2"])],
                   jnp.bfloat16)

    vw = max(dp, dr)
    vec_rows = [params["bq1"], params["bk1"], params["bv1"], params["bo1"],
                params["gp"], params["btp"],
                params["bq2"], params["bk2"], params["bv2"], params["bo2"],
                params["gr"], params["btr"]]
    vec_slab = jnp.zeros((12, vw), jnp.float32)
    for i, v in enumerate(vec_rows):
        vec_slab = vec_slab.at[i:i + 1, 0:v.shape[1]].set(jnp.asarray(v, jnp.float32))

    mlp_l, mlp_rows = _mlp_layout(dp, dr, hidden)
    mw = max(hidden, ATTN_W)
    w2pad = jnp.zeros((hidden, mw), jnp.float32).at[:, 0].set(params["w2"][:, 0])
    b2pad = jnp.zeros((1, mw), jnp.float32).at[0, 0].set(params["b2"][0, 0])
    mlp_slab = fill(mlp_rows, mw,
                    [(mlp_l["w1p"], params["w1p"]), (mlp_l["w1r"], params["w1r"]),
                     (mlp_l["b1"], params["b1"]), (mlp_l["w2"], w2pad),
                     (mlp_l["b2"], b2pad)],
                    jnp.bfloat16)

    c_l, c_rows, c_w = _const_layout(bb, lp, lr, dp, dr)
    seg1 = _block_eq(NUM_HEADS * lr, NUM_HEADS, lr, 1)
    seg2 = _block_eq(NUM_HEADS * lp, NUM_HEADS, lp, 1)
    consts = {
        "hm1": _block_eq(NUM_HEADS * lr, dp, lr, dp // NUM_HEADS),
        "hm2": _block_eq(NUM_HEADS * lp, dr, lp, dr // NUM_HEADS),
        "seg1": seg1, "seg2": seg2,
        "exp1": seg1.T, "exp2": seg2.T,
        "avg1": _avg_matrix(lr), "avg2": _avg_matrix(lp),
        "pool_p": _pool_matrix(bb, lp), "pool_r": _pool_matrix(bb, lr),
    }
    const_slab = jnp.zeros((c_rows, c_w), jnp.float32)
    for name, arr in consts.items():
        s, _n, _c = c_l[name]
        const_slab = const_slab.at[s:s + arr.shape[0], 0:arr.shape[1]].set(arr)

    return dict(wp=wp_slab, wr=wr_slab, vec=vec_slab, mlp=mlp_slab, const=const_slab,
                meta=dict(lp=lp, lr=lr, dp=dp, dr=dr, hidden=hidden, bb=bb))


def _default_batch_block(B):
    """One big grid step on single-TC chips (v5e/v6e); >=2 steps on v7x (2 TCs)."""
    try:
        kind = jax.devices()[0].device_kind.lower()
    except Exception:
        kind = ""
    if "v7" in kind and B % 2 == 0:
        return B // 2
    return B


# ---------------------------------------------------------------------------
# Forward wrapper.
# ---------------------------------------------------------------------------
def simple_protein_rna_classifier(protein, rna, packed):
    meta = packed["meta"]
    bb, lp, lr = meta["bb"], meta["lp"], meta["lr"]
    dp, dr, hidden = meta["dp"], meta["dr"], meta["hidden"]
    B = protein.shape[0]
    assert protein.shape == (B, lp, dp) and rna.shape == (B, lr, dr)
    assert B % bb == 0
    grid = (B // bb,)

    row_p, row_r, row_lg, stride = _out_row_layout(lp, lr)

    p2d = protein.reshape(B * lp, dp).astype(jnp.float32)
    r2d = rna.reshape(B * lr, dr).astype(jnp.float32)

    kernel = functools.partial(classifier_kernel, bb=bb, lp=lp, lr=lr,
                               dp=dp, dr=dr, hidden=hidden)

    def invariant(arr):
        return pl.BlockSpec(arr.shape, lambda i: (0, 0))

    in_specs = [
        pl.BlockSpec((bb * lp, dp), lambda i: (i, 0)),
        pl.BlockSpec((bb * lr, dr), lambda i: (i, 0)),
        invariant(packed["wp"]), invariant(packed["wr"]),
        invariant(packed["vec"]), invariant(packed["mlp"]),
        invariant(packed["const"]),
    ]
    out_specs = pl.BlockSpec((bb * stride, ATTN_W), lambda i: (i, 0))
    out_shape = jax.ShapeDtypeStruct((B * stride, ATTN_W), jnp.float32)
    scratch_shapes = [pltpu.VMEM((bb * lp, dp), jnp.float32),
                      pltpu.VMEM((bb * lr, dr), jnp.float32)]

    # explicit VMEM budget: double-buffered blocks + scratch + headroom
    f32b, bf16b = 4, 2
    blocks = (
        (bb * lp * dp, f32b), (bb * lr * dr, f32b),
        (math.prod(packed["wp"].shape), bf16b),
        (math.prod(packed["wr"].shape), bf16b),
        (math.prod(packed["vec"].shape), f32b),
        (math.prod(packed["mlp"].shape), bf16b),
        (math.prod(packed["const"].shape), f32b),
        (bb * stride * ATTN_W, f32b),
    )
    resident = 2 * sum(n * sz for n, sz in blocks)
    resident += (bb * lp * dp + bb * lr * dr) * f32b
    vmem_limit = min(resident * 2 + (16 << 20), 48 << 20)

    out = pl.pallas_call(
        kernel,
        grid=grid,
        in_specs=in_specs,
        out_specs=out_specs,
        out_shape=out_shape,
        scratch_shapes=scratch_shapes,
        compiler_params=pltpu.CompilerParams(
            dimension_semantics=("parallel",),
            vmem_limit_bytes=vmem_limit),
    )(p2d, r2d, packed["wp"], packed["wr"], packed["vec"], packed["mlp"],
      packed["const"])

    slab = out.reshape(B, stride, ATTN_W)
    logits = slab[:, row_lg, 0:1]
    p_attn = slab[:, row_p:row_p + lp, 0:lr]
    r_attn = slab[:, row_r:row_r + lr, 0:lp]
    return logits, p_attn, r_attn


# ---------------------------------------------------------------------------
# Pure-JAX f32 reference (straightforward per-head math, correctness check).
# ---------------------------------------------------------------------------
def _mha_reference(q, k, v, wo, bo, num_heads):
    lq, d = q.shape
    lk = k.shape[0]
    dh = d // num_heads
    scale = 1.0 / math.sqrt(dh)
    attn_avg = jnp.zeros((lq, lk), jnp.float32)
    proj = jnp.broadcast_to(bo, (lq, d)).astype(jnp.float32)
    for h in range(num_heads):
        sl = slice(h * dh, (h + 1) * dh)
        s = (q[:, sl] @ k[:, sl].T) * scale
        s = s - jnp.max(s, axis=-1, keepdims=True)
        e = jnp.exp(s)
        a = e / jnp.sum(e, axis=-1, keepdims=True)
        attn_avg = attn_avg + a
        proj = proj + (a @ v[:, sl]) @ wo[sl, :]
    return proj, attn_avg / num_heads


def reference_forward(protein, rna, P):
    def single(p, r):
        q1 = p @ P["wq1"] + P["bq1"]
        k1 = r @ P["wk1"] + P["bk1"]
        v1 = r @ P["wv1"] + P["bv1"]
        p_att, p_w = _mha_reference(q1, k1, v1, P["wo1"], P["bo1"], NUM_HEADS)
        q2 = r @ P["wq2"] + P["bq2"]
        k2 = p @ P["wk2"] + P["bk2"]
        v2 = p @ P["wv2"] + P["bv2"]
        r_att, r_w = _mha_reference(q2, k2, v2, P["wo2"], P["bo2"], NUM_HEADS)
        p_att = _layernorm(p_att + p, P["gp"], P["btp"])
        r_att = _layernorm(r_att + r, P["gr"], P["btr"])
        p_pool = jnp.mean(p_att, axis=0, keepdims=True)
        r_pool = jnp.mean(r_att, axis=0, keepdims=True)
        h = jnp.maximum(p_pool @ P["w1p"] + r_pool @ P["w1r"] + P["b1"], 0.0)
        logit = h @ P["w2"] + P["b2"]
        return logit[0], p_w, r_w

    return jax.vmap(single)(protein, rna)


# ---------------------------------------------------------------------------
# Deterministic synthetic parameters (not a checkpoint).
# ---------------------------------------------------------------------------
def init_params(key, protein_dim, rna_dim, hidden_dim):
    ks = jax.random.split(key, 16)
    s = 0.05

    def w(k, shape):
        return (s * jax.random.normal(k, shape)).astype(jnp.float32)

    P = {
        "wq1": w(ks[0], (protein_dim, protein_dim)), "bq1": w(ks[1], (1, protein_dim)),
        "wk1": w(ks[2], (rna_dim, protein_dim)),     "bk1": w(ks[3], (1, protein_dim)),
        "wv1": w(ks[4], (rna_dim, protein_dim)),     "bv1": w(ks[5], (1, protein_dim)),
        "wo1": w(ks[6], (protein_dim, protein_dim)), "bo1": w(ks[7], (1, protein_dim)),
        "wq2": w(ks[8], (rna_dim, rna_dim)),          "bq2": w(ks[9], (1, rna_dim)),
        "wk2": w(ks[10], (protein_dim, rna_dim)),     "bk2": w(ks[11], (1, rna_dim)),
        "wv2": w(ks[12], (protein_dim, rna_dim)),     "bv2": w(ks[13], (1, rna_dim)),
        "wo2": w(ks[14], (rna_dim, rna_dim)),         "bo2": w(ks[15], (1, rna_dim)),
        "gp": jnp.ones((1, protein_dim), jnp.float32),
        "btp": jnp.zeros((1, protein_dim), jnp.float32),
        "gr": jnp.ones((1, rna_dim), jnp.float32),
        "btr": jnp.zeros((1, rna_dim), jnp.float32),
    }
    ks2 = jax.random.split(jax.random.fold_in(key, 123), 5)
    P.update({
        "w1p": w(ks2[0], (protein_dim, hidden_dim)),
        "w1r": w(ks2[1], (rna_dim, hidden_dim)),
        "b1": w(ks2[2], (1, hidden_dim)),
        "w2": w(ks2[3], (hidden_dim, 1)),
        "b2": w(ks2[4], (1, 1)),
    })
    return P


if __name__ == "__main__":
    B, Lp, Lr = 2, 16, 8
    protein_dim, rna_dim, hidden_dim = 64, 32, 32

    key = jax.random.PRNGKey(0)
    kp, kr, kw = jax.random.split(key, 3)
    protein = jax.random.normal(kp, (B, Lp, protein_dim), jnp.float32)
    rna = jax.random.normal(kr, (B, Lr, rna_dim), jnp.float32)
    params = init_params(kw, protein_dim, rna_dim, hidden_dim)

    bb = _default_batch_block(B)
    packed = pack_params(params, seq_protein=Lp, seq_rna=Lr, batch_block=bb)

    logits, p_attn, r_attn = simple_protein_rna_classifier(protein, rna, packed)
    jax.block_until_ready((logits, p_attn, r_attn))

    # sanity check against a pure-JAX f32 reference; tolerance loosened for
    # bf16 matmul inputs + approx reciprocal (per perf review)
    ref_logits, ref_p, ref_r = reference_forward(protein, rna, params)
    assert logits.shape == (B, 1)
    assert p_attn.shape == (B, Lp, Lr)
    assert r_attn.shape == (B, Lr, Lp)
    assert jnp.allclose(logits, ref_logits, atol=2e-2, rtol=2e-2)
    assert jnp.allclose(p_attn, ref_p, atol=1e-2, rtol=1e-2)
    assert jnp.allclose(r_attn, ref_r, atol=1e-2, rtol=1e-2)

    print("KERNEL_OK")
</pallas_src>

<mosaic_0001>
module attributes {stable_mosaic.version = 11 : i64} {
  func.func @classifier_kernel(%arg0: i32, %arg1: memref<32x64xf32, #tpu.memory_space<vmem>>, %arg2: memref<16x32xf32, #tpu.memory_space<vmem>>, %arg3: memref<192x64xbf16, #tpu.memory_space<vmem>>, %arg4: memref<192x32xbf16, #tpu.memory_space<vmem>>, %arg5: memref<12x64xf32, #tpu.memory_space<vmem>>, %arg6: memref<160x128xbf16, #tpu.memory_space<vmem>>, %arg7: memref<608x128xf32, #tpu.memory_space<vmem>>, %arg8: memref<64x128xf32, #tpu.memory_space<vmem>>, %arg9: memref<32x64xf32, #tpu.memory_space<vmem>>, %arg10: memref<16x32xf32, #tpu.memory_space<vmem>>) attributes {dimension_semantics = [#tpu.dimension_semantics<parallel>], iteration_bounds = array<i64: 1>, scalar_prefetch = 0 : i64, scratch_operands = 2 : i64, tpu.core_type = #tpu.core_type<tc>, window_params = [{transform_indices = @transform_0, window_bounds = array<i64: 32, 64>}, {transform_indices = @transform_1, window_bounds = array<i64: 16, 32>}, {pipeline_mode = #tpu.pipeline_mode<synchronous>, transform_indices = @transform_2, window_bounds = array<i64: 192, 64>}, {pipeline_mode = #tpu.pipeline_mode<synchronous>, transform_indices = @transform_3, window_bounds = array<i64: 192, 32>}, {pipeline_mode = #tpu.pipeline_mode<synchronous>, transform_indices = @transform_4, window_bounds = array<i64: 12, 64>}, {pipeline_mode = #tpu.pipeline_mode<synchronous>, transform_indices = @transform_5, window_bounds = array<i64: 160, 128>}, {pipeline_mode = #tpu.pipeline_mode<synchronous>, transform_indices = @transform_6, window_bounds = array<i64: 608, 128>}, {transform_indices = @transform_7, window_bounds = array<i64: 64, 128>}]} {
    %c0 = arith.constant 0 : index
    %c0_0 = arith.constant 0 : index
    %0 = vector.load %arg1[%c0, %c0_0] : memref<32x64xf32, #tpu.memory_space<vmem>>, vector<32x64xf32>
    %c0_1 = arith.constant 0 : index
    %c0_2 = arith.constant 0 : index
    %1 = vector.load %arg2[%c0_1, %c0_2] : memref<16x32xf32, #tpu.memory_space<vmem>>, vector<16x32xf32>
    %2 = arith.truncf %0 : vector<32x64xf32> to vector<32x64xbf16>
    %3 = arith.truncf %1 : vector<16x32xf32> to vector<16x32xbf16>
    %c0_3 = arith.constant 0 : index
    %c0_4 = arith.constant 0 : index
    %4 = vector.load %arg5[%c0_3, %c0_4] : memref<12x64xf32, #tpu.memory_space<vmem>>, vector<1x64xf32>
    %c1 = arith.constant 1 : index
    %c0_5 = arith.constant 0 : index
    %5 = vector.load %arg5[%c1, %c0_5] : memref<12x64xf32, #tpu.memory_space<vmem>>, vector<1x64xf32>
    %c2 = arith.constant 2 : index
    %c0_6 = arith.constant 0 : index
    %6 = vector.load %arg5[%c2, %c0_6] : memref<12x64xf32, #tpu.memory_space<vmem>>, vector<1x64xf32>
    %c3 = arith.constant 3 : index
    %c0_7 = arith.constant 0 : index
    %7 = vector.load %arg5[%c3, %c0_7] : memref<12x64xf32, #tpu.memory_space<vmem>>, vector<1x64xf32>
    %c4 = arith.constant 4 : index
    %c0_8 = arith.constant 0 : index
    %8 = vector.load %arg5[%c4, %c0_8] : memref<12x64xf32, #tpu.memory_space<vmem>>, vector<1x64xf32>
    %c5 = arith.constant 5 : index
    %c0_9 = arith.constant 0 : index
    %9 = vector.load %arg5[%c5, %c0_9] : memref<12x64xf32, #tpu.memory_space<vmem>>, vector<1x64xf32>
    %c6 = arith.constant 6 : index
    %c0_10 = arith.constant 0 : index
    %10 = vector.load %arg5[%c6, %c0_10] : memref<12x64xf32, #tpu.memory_space<vmem>>, vector<1x32xf32>
    %c7 = arith.constant 7 : index
    %c0_11 = arith.constant 0 : index
    %11 = vector.load %arg5[%c7, %c0_11] : memref<12x64xf32, #tpu.memory_space<vmem>>, vector<1x32xf32>
    %c8 = arith.constant 8 : index
    %c0_12 = arith.constant 0 : index
    %12 = vector.load %arg5[%c8, %c0_12] : memref<12x64xf32, #tpu.memory_space<vmem>>, vector<1x32xf32>
    %c9 = arith.constant 9 : index
    %c0_13 = arith.constant 0 : index
    %13 = vector.load %arg5[%c9, %c0_13] : memref<12x64xf32, #tpu.memory_space<vmem>>, vector<1x32xf32>
    %c10 = arith.constant 10 : index
    %c0_14 = arith.constant 0 : index
    %14 = vector.load %arg5[%c10, %c0_14] : memref<12x64xf32, #tpu.memory_space<vmem>>, vector<1x32xf32>
    %c11 = arith.constant 11 : index
    %c0_15 = arith.constant 0 : index
    %15 = vector.load %arg5[%c11, %c0_15] : memref<12x64xf32, #tpu.memory_space<vmem>>, vector<1x32xf32>
    %c0_16 = arith.constant 0 : index
    %c0_17 = arith.constant 0 : index
    %16 = vector.load %arg3[%c0_16, %c0_17] : memref<192x64xbf16, #tpu.memory_space<vmem>>, vector<64x64xbf16>
    %cst = arith.constant dense<0.000000e+00> : vector<32x64xf32>
    %17 = tpu.matmul %2, %16, %cst {dimension_numbers = #tpu.dot_dimension_numbers<[1], [0], [0], [1], [0, 0, 1, 1], [], []>} : vector<32x64xbf16>, vector<64x64xbf16>, vector<32x64xf32> -> vector<32x64xf32>
    %18 = vector.broadcast %4 : vector<1x64xf32> to vector<32x64xf32>
    %19 = arith.addf %17, %18 : vector<32x64xf32>
    %c64 = arith.constant 64 : index
    %c0_18 = arith.constant 0 : index
    %20 = vector.load %arg3[%c64, %c0_18] : memref<192x64xbf16, #tpu.memory_space<vmem>>, vector<32x64xbf16>
    %cst_19 = arith.constant dense<0.000000e+00> : vector<16x64xf32>
    %21 = tpu.matmul %3, %20, %cst_19 {dimension_numbers = #tpu.dot_dimension_numbers<[1], [0], [0], [1], [0, 0, 1, 1], [], []>} : vector<16x32xbf16>, vector<32x64xbf16>, vector<16x64xf32> -> vector<16x64xf32>
    %22 = vector.broadcast %5 : vector<1x64xf32> to vector<16x64xf32>
    %23 = arith.addf %21, %22 : vector<16x64xf32>
    %c96 = arith.constant 96 : index
    %c0_20 = arith.constant 0 : index
    %24 = vector.load %arg3[%c96, %c0_20] : memref<192x64xbf16, #tpu.memory_space<vmem>>, vector<32x64xbf16>
    %cst_21 = arith.constant dense<0.000000e+00> : vector<16x64xf32>
    %25 = tpu.matmul %3, %24, %cst_21 {dimension_numbers = #tpu.dot_dimension_numbers<[1], [0], [0], [1], [0, 0, 1, 1], [], []>} : vector<16x32xbf16>, vector<32x64xbf16>, vector<16x64xf32> -> vector<16x64xf32>
    %26 = vector.broadcast %6 : vector<1x64xf32> to vector<16x64xf32>
    %27 = arith.addf %25, %26 : vector<16x64xf32>
    %c0_22 = arith.constant 0 : index
    %c0_23 = arith.constant 0 : index
    %28 = vector.load %arg4[%c0_22, %c0_23] : memref<192x32xbf16, #tpu.memory_space<vmem>>, vector<32x32xbf16>
    %cst_24 = arith.constant dense<0.000000e+00> : vector<16x32xf32>
    %29 = tpu.matmul %3, %28, %cst_24 {dimension_numbers = #tpu.dot_dimension_numbers<[1], [0], [0], [1], [0, 0, 1, 1], [], []>} : vector<16x32xbf16>, vector<32x32xbf16>, vector<16x32xf32> -> vector<16x32xf32>
    %30 = vector.broadcast %10 : vector<1x32xf32> to vector<16x32xf32>
    %31 = arith.addf %29, %30 : vector<16x32xf32>
    %c32 = arith.constant 32 : index
    %c0_25 = arith.constant 0 : index
    %32 = vector.load %arg4[%c32, %c0_25] : memref<192x32xbf16, #tpu.memory_space<vmem>>, vector<64x32xbf16>
    %cst_26 = arith.constant dense<0.000000e+00> : vector<32x32xf32>
    %33 = tpu.matmul %2, %32, %cst_26 {dimension_numbers = #tpu.dot_dimension_numbers<[1], [0], [0], [1], [0, 0, 1, 1], [], []>} : vector<32x64xbf16>, vector<64x32xbf16>, vector<32x32xf32> -> vector<32x32xf32>
    %34 = vector.broadcast %11 : vector<1x32xf32> to vector<32x32xf32>
    %35 = arith.addf %33, %34 : vector<32x32xf32>
    %c96_27 = arith.constant 96 : index
    %c0_28 = arith.constant 0 : index
    %36 = vector.load %arg4[%c96_27, %c0_28] : memref<192x32xbf16, #tpu.memory_space<vmem>>, vector<64x32xbf16>
    %cst_29 = arith.constant dense<0.000000e+00> : vector<32x32xf32>
    %37 = tpu.matmul %2, %36, %cst_29 {dimension_numbers = #tpu.dot_dimension_numbers<[1], [0], [0], [1], [0, 0, 1, 1], [], []>} : vector<32x64xbf16>, vector<64x32xbf16>, vector<32x32xf32> -> vector<32x32xf32>
    %38 = vector.broadcast %12 : vector<1x32xf32> to vector<32x32xf32>
    %39 = arith.addf %37, %38 : vector<32x32xf32>
    %c0_30 = arith.constant 0 : index
    %c0_31 = arith.constant 0 : index
    %40 = vector.load %arg7[%c0_30, %c0_31] : memref<608x128xf32, #tpu.memory_space<vmem>>, vector<64x64xf32>
    %c64_32 = arith.constant 64 : index
    %c0_33 = arith.constant 0 : index
    %41 = vector.load %arg7[%c64_32, %c0_33] : memref<608x128xf32, #tpu.memory_space<vmem>>, vector<128x32xf32>
    %c192 = arith.constant 192 : index
    %c0_34 = arith.constant 0 : index
    %42 = vector.load %arg7[%c192, %c0_34] : memref<608x128xf32, #tpu.memory_space<vmem>>, vector<64x8xf32>
    %c256 = arith.constant 256 : index
    %c0_35 = arith.constant 0 : index
    %43 = vector.load %arg7[%c256, %c0_35] : memref<608x128xf32, #tpu.memory_space<vmem>>, vector<128x8xf32>
    %c384 = arith.constant 384 : index
    %c0_36 = arith.constant 0 : index
    %44 = vector.load %arg7[%c384, %c0_36] : memref<608x128xf32, #tpu.memory_space<vmem>>, vector<8x64xf32>
    %c392 = arith.constant 392 : index
    %c0_37 = arith.constant 0 : index
    %45 = vector.load %arg7[%c392, %c0_37] : memref<608x128xf32, #tpu.memory_space<vmem>>, vector<8x128xf32>
    %c400 = arith.constant 400 : index
    %c0_38 = arith.constant 0 : index
    %46 = vector.load %arg7[%c400, %c0_38] : memref<608x128xf32, #tpu.memory_space<vmem>>, vector<64x128xf32>
    %c464 = arith.constant 464 : index
    %c0_39 = arith.constant 0 : index
    %47 = vector.load %arg7[%c464, %c0_39] : memref<608x128xf32, #tpu.memory_space<vmem>>, vector<128x128xf32>
    %48 = vector.extract_strided_slice %19 {offsets = [0, 0], sizes = [16, 64], strides = [1, 1]} : vector<32x64xf32> to vector<16x64xf32>
    %49 = vector.extract_strided_slice %23 {offsets = [0, 0], sizes = [8, 64], strides = [1, 1]} : vector<16x64xf32> to vector<8x64xf32>
    %50 = vector.extract_strided_slice %27 {offsets = [0, 0], sizes = [8, 64], strides = [1, 1]} : vector<16x64xf32> to vector<8x64xf32>
    %51 = tpu.concatenate %49, %49, %49, %49, %49, %49, %49, %49 in 0 : vector<8x64xf32>, vector<8x64xf32>, vector<8x64xf32>, vector<8x64xf32>, vector<8x64xf32>, vector<8x64xf32>, vector<8x64xf32>, vector<8x64xf32> -> vector<64x64xf32>
    %52 = arith.mulf %51, %40 : vector<64x64xf32>
    %53 = arith.truncf %52 : vector<64x64xf32> to vector<64x64xbf16>
    %54 = tpu.concatenate %50, %50, %50, %50, %50, %50, %50, %50 in 0 : vector<8x64xf32>, vector<8x64xf32>, vector<8x64xf32>, vector<8x64xf32>, vector<8x64xf32>, vector<8x64xf32>, vector<8x64xf32>, vector<8x64xf32> -> vector<64x64xf32>
    %55 = arith.mulf %54, %40 : vector<64x64xf32>
    %56 = arith.truncf %55 : vector<64x64xf32> to vector<64x64xbf16>
    %57 = arith.truncf %48 : vector<16x64xf32> to vector<16x64xbf16>
    %cst_40 = arith.constant dense<0.000000e+00> : vector<16x64xf32>
    %58 = tpu.matmul %57, %53, %cst_40 {dimension_numbers = #tpu.dot_dimension_numbers<[1], [1], [0], [0], [0, 0, 1, 0], [], []>} : vector<16x64xbf16>, vector<64x64xbf16>, vector<16x64xf32> -> vector<16x64xf32>
    %cst_41 = arith.constant 0.353553385 : f32
    %59 = vector.broadcast %cst_41 : f32 to vector<16x64xf32>
    %60 = arith.mulf %58, %59 : vector<16x64xf32>
    %cst_42 = arith.constant dense<0xFF800000> : vector<16xf32>
    %61 = vector.multi_reduction <maximumf>, %60, %cst_42 [1] : vector<16x64xf32> to vector<16xf32>
    %62 = vector.shape_cast %61 : vector<16xf32> to vector<16x1xf32>
    %63 = vector.broadcast %62 : vector<16x1xf32> to vector<16x64xf32>
    %64 = arith.subf %60, %63 : vector<16x64xf32>
    %65 = math.exp %64 : vector<16x64xf32>
    %cst_43 = arith.constant dense<0.000000e+00> : vector<16x8xf32>
    %66 = tpu.matmul %65, %42, %cst_43 {dimension_numbers = #tpu.dot_dimension_numbers<[1], [0], [0], [1], [0, 0, 1, 1], [], []>} : vector<16x64xf32>, vector<64x8xf32>, vector<16x8xf32> -> vector<16x8xf32>
    %67 = tpu.reciprocal %66 {approx = true} : vector<16x8xf32> -> vector<16x8xf32>
    %cst_44 = arith.constant dense<0.000000e+00> : vector<16x64xf32>
    %68 = tpu.matmul %67, %44, %cst_44 {dimension_numbers = #tpu.dot_dimension_numbers<[1], [0], [0], [1], [0, 0, 1, 1], [], []>} : vector<16x8xf32>, vector<8x64xf32>, vector<16x64xf32> -> vector<16x64xf32>
    %69 = arith.mulf %65, %68 : vector<16x64xf32>
    %70 = arith.truncf %69 : vector<16x64xf32> to vector<16x64xbf16>
    %cst_45 = arith.constant dense<0.000000e+00> : vector<16x64xf32>
    %71 = tpu.matmul %70, %56, %cst_45 {dimension_numbers = #tpu.dot_dimension_numbers<[1], [0], [0], [1], [0, 0, 1, 1], [], []>} : vector<16x64xbf16>, vector<64x64xbf16>, vector<16x64xf32> -> vector<16x64xf32>
    %cst_46 = arith.constant dense<0.000000e+00> : vector<16x128xf32>
    %72 = tpu.matmul %69, %46, %cst_46 {dimension_numbers = #tpu.dot_dimension_numbers<[1], [0], [0], [1], [0, 0, 1, 1], [], []>} : vector<16x64xf32>, vector<64x128xf32>, vector<16x128xf32> -> vector<16x128xf32>
    %c0_47 = arith.constant 0 : index
    %c0_48 = arith.constant 0 : index
    %73 = vector.load %arg9[%c0_47, %c0_48] : memref<32x64xf32, #tpu.memory_space<vmem>>, vector<16x64xf32>
    tpu.vector_store %arg9[%c0_47, %c0_48], %71 {strides = array<i32>} : memref<32x64xf32, #tpu.memory_space<vmem>>, vector<16x64xf32>,
    %c0_49 = arith.constant 0 : index
    %c0_50 = arith.constant 0 : index
    %74 = vector.load %arg8[%c0_49, %c0_50] : memref<64x128xf32, #tpu.memory_space<vmem>>, vector<16x128xf32>
    tpu.vector_store %arg8[%c0_49, %c0_50], %72 {strides = array<i32>} : memref<64x128xf32, #tpu.memory_space<vmem>>, vector<16x128xf32>,
    %75 = vector.extract_strided_slice %31 {offsets = [0, 0], sizes = [8, 32], strides = [1, 1]} : vector<16x32xf32> to vector<8x32xf32>
    %76 = vector.extract_strided_slice %35 {offsets = [0, 0], sizes = [16, 32], strides = [1, 1]} : vector<32x32xf32> to vector<16x32xf32>
    %77 = vector.extract_strided_slice %39 {offsets = [0, 0], sizes = [16, 32], strides = [1, 1]} : vector<32x32xf32> to vector<16x32xf32>
    %78 = tpu.concatenate %76, %76, %76, %76, %76, %76, %76, %76 in 0 : vector<16x32xf32>, vector<16x32xf32>, vector<16x32xf32>, vector<16x32xf32>, vector<16x32xf32>, vector<16x32xf32>, vector<16x32xf32>, vector<16x32xf32> -> vector<128x32xf32>
    %79 = arith.mulf %78, %41 : vector<128x32xf32>
    %80 = arith.truncf %79 : vector<128x32xf32> to vector<128x32xbf16>
    %81 = tpu.concatenate %77, %77, %77, %77, %77, %77, %77, %77 in 0 : vector<16x32xf32>, vector<16x32xf32>, vector<16x32xf32>, vector<16x32xf32>, vector<16x32xf32>, vector<16x32xf32>, vector<16x32xf32>, vector<16x32xf32> -> vector<128x32xf32>
    %82 = arith.mulf %81, %41 : vector<128x32xf32>
    %83 = arith.truncf %82 : vector<128x32xf32> to vector<128x32xbf16>
    %84 = arith.truncf %75 : vector<8x32xf32> to vector<8x32xbf16>
    %cst_51 = arith.constant dense<0.000000e+00> : vector<8x128xf32>
    %85 = tpu.matmul %84, %80, %cst_51 {dimension_numbers = #tpu.dot_dimension_numbers<[1], [1], [0], [0], [0, 0, 1, 0], [], []>} : vector<8x32xbf16>, vector<128x32xbf16>, vector<8x128xf32> -> vector<8x128xf32>
    %cst_52 = arith.constant 5.000000e-01 : f32
    %86 = vector.broadcast %cst_52 : f32 to vector<8x128xf32>
    %87 = arith.mulf %85, %86 : vector<8x128xf32>
    %cst_53 = arith.constant dense<0xFF800000> : vector<8xf32>
    %88 = vector.multi_reduction <maximumf>, %87, %cst_53 [1] : vector<8x128xf32> to vector<8xf32>
    %89 = vector.shape_cast %88 : vector<8xf32> to vector<8x1xf32>
    %90 = vector.broadcast %89 : vector<8x1xf32> to vector<8x128xf32>
    %91 = arith.subf %87, %90 : vector<8x128xf32>
    %92 = math.exp %91 : vector<8x128xf32>
    %cst_54 = arith.constant dense<0.000000e+00> : vector<8x8xf32>
    %93 = tpu.matmul %92, %43, %cst_54 {dimension_numbers = #tpu.dot_dimension_numbers<[1], [0], [0], [1], [0, 0, 1, 1], [], []>} : vector<8x128xf32>, vector<128x8xf32>, vector<8x8xf32> -> vector<8x8xf32>
    %94 = tpu.reciprocal %93 {approx = true} : vector<8x8xf32> -> vector<8x8xf32>
    %cst_55 = arith.constant dense<0.000000e+00> : vector<8x128xf32>
    %95 = tpu.matmul %94, %45, %cst_55 {dimension_numbers = #tpu.dot_dimension_numbers<[1], [0], [0], [1], [0, 0, 1, 1], [], []>} : vector<8x8xf32>, vector<8x128xf32>, vector<8x128xf32> -> vector<8x128xf32>
    %96 = arith.mulf %92, %95 : vector<8x128xf32>
    %97 = arith.truncf %96 : vector<8x128xf32> to vector<8x128xbf16>
    %cst_56 = arith.constant dense<0.000000e+00> : vector<8x32xf32>
    %98 = tpu.matmul %97, %83, %cst_56 {dimension_numbers = #tpu.dot_dimension_numbers<[1], [0], [0], [1], [0, 0, 1, 1], [], []>} : vector<8x128xbf16>, vector<128x32xbf16>, vector<8x32xf32> -> vector<8x32xf32>
    %cst_57 = arith.constant dense<0.000000e+00> : vector<8x128xf32>
    %99 = tpu.matmul %96, %47, %cst_57 {dimension_numbers = #tpu.dot_dimension_numbers<[1], [0], [0], [1], [0, 0, 1, 1], [], []>} : vector<8x128xf32>, vector<128x128xf32>, vector<8x128xf32> -> vector<8x128xf32>
    %c0_58 = arith.constant 0 : index
    %c0_59 = arith.constant 0 : index
    %100 = vector.load %arg10[%c0_58, %c0_59] : memref<16x32xf32, #tpu.memory_space<vmem>>, vector<8x32xf32>
    tpu.vector_store %arg10[%c0_58, %c0_59], %98 {strides = array<i32>} : memref<16x32xf32, #tpu.memory_space<vmem>>, vector<8x32xf32>,
    %c16 = arith.constant 16 : index
    %c0_60 = arith.constant 0 : index
    %101 = vector.load %arg8[%c16, %c0_60] : memref<64x128xf32, #tpu.memory_space<vmem>>, vector<8x128xf32>
    tpu.vector_store %arg8[%c16, %c0_60], %99 {strides = array<i32>} : memref<64x128xf32, #tpu.memory_space<vmem>>, vector<8x128xf32>,
    %102 = vector.extract_strided_slice %19 {offsets = [16, 0], sizes = [16, 64], strides = [1, 1]} : vector<32x64xf32> to vector<16x64xf32>
    %103 = vector.extract_strided_slice %23 {offsets = [8, 0], sizes = [8, 64], strides = [1, 1]} : vector<16x64xf32> to vector<8x64xf32>
    %104 = vector.extract_strided_slice %27 {offsets = [8, 0], sizes = [8, 64], strides = [1, 1]} : vector<16x64xf32> to vector<8x64xf32>
    %105 = tpu.concatenate %103, %103, %103, %103, %103, %103, %103, %103 in 0 : vector<8x64xf32>, vector<8x64xf32>, vector<8x64xf32>, vector<8x64xf32>, vector<8x64xf32>, vector<8x64xf32>, vector<8x64xf32>, vector<8x64xf32> -> vector<64x64xf32>
    %106 = arith.mulf %105, %40 : vector<64x64xf32>
    %107 = arith.truncf %106 : vector<64x64xf32> to vector<64x64xbf16>
    %108 = tpu.concatenate %104, %104, %104, %104, %104, %104, %104, %104 in 0 : vector<8x64xf32>, vector<8x64xf32>, vector<8x64xf32>, vector<8x64xf32>, vector<8x64xf32>, vector<8x64xf32>, vector<8x64xf32>, vector<8x64xf32> -> vector<64x64xf32>
    %109 = arith.mulf %108, %40 : vector<64x64xf32>
    %110 = arith.truncf %109 : vector<64x64xf32> to vector<64x64xbf16>
    %111 = arith.truncf %102 : vector<16x64xf32> to vector<16x64xbf16>
    %cst_61 = arith.constant dense<0.000000e+00> : vector<16x64xf32>
    %112 = tpu.matmul %111, %107, %cst_61 {dimension_numbers = #tpu.dot_dimension_numbers<[1], [1], [0], [0], [0, 0, 1, 0], [], []>} : vector<16x64xbf16>, vector<64x64xbf16>, vector<16x64xf32> -> vector<16x64xf32>
    %cst_62 = arith.constant 0.353553385 : f32
    %113 = vector.broadcast %cst_62 : f32 to vector<16x64xf32>
    %114 = arith.mulf %112, %113 : vector<16x64xf32>
    %cst_63 = arith.constant dense<0xFF800000> : vector<16xf32>
    %115 = vector.multi_reduction <maximumf>, %114, %cst_63 [1] : vector<16x64xf32> to vector<16xf32>
    %116 = vector.shape_cast %115 : vector<16xf32> to vector<16x1xf32>
    %117 = vector.broadcast %116 : vector<16x1xf32> to vector<16x64xf32>
    %118 = arith.subf %114, %117 : vector<16x64xf32>
    %119 = math.exp %118 : vector<16x64xf32>
    %cst_64 = arith.constant dense<0.000000e+00> : vector<16x8xf32>
    %120 = tpu.matmul %119, %42, %cst_64 {dimension_numbers = #tpu.dot_dimension_numbers<[1], [0], [0], [1], [0, 0, 1, 1], [], []>} : vector<16x64xf32>, vector<64x8xf32>, vector<16x8xf32> -> vector<16x8xf32>
    %121 = tpu.reciprocal %120 {approx = true} : vector<16x8xf32> -> vector<16x8xf32>
    %cst_65 = arith.constant dense<0.000000e+00> : vector<16x64xf32>
    %122 = tpu.matmul %121, %44, %cst_65 {dimension_numbers = #tpu.dot_dimension_numbers<[1], [0], [0], [1], [0, 0, 1, 1], [], []>} : vector<16x8xf32>, vector<8x64xf32>, vector<16x64xf32> -> vector<16x64xf32>
    %123 = arith.mulf %119, %122 : vector<16x64xf32>
    %124 = arith.truncf %123 : vector<16x64xf32> to vector<16x64xbf16>
    %cst_66 = arith.constant dense<0.000000e+00> : vector<16x64xf32>
    %125 = tpu.matmul %124, %110, %cst_66 {dimension_numbers = #tpu.dot_dimension_numbers<[1], [0], [0], [1], [0, 0, 1, 1], [], []>} : vector<16x64xbf16>, vector<64x64xbf16>, vector<16x64xf32> -> vector<16x64xf32>
    %cst_67 = arith.constant dense<0.000000e+00> : vector<16x128xf32>
    %126 = tpu.matmul %123, %46, %cst_67 {dimension_numbers = #tpu.dot_dimension_numbers<[1], [0], [0], [1], [0, 0, 1, 1], [], []>} : vector<16x64xf32>, vector<64x128xf32>, vector<16x128xf32> -> vector<16x128xf32>
    %c16_68 = arith.constant 16 : index
    %c0_69 = arith.constant 0 : index
    %127 = vector.load %arg9[%c16_68, %c0_69] : memref<32x64xf32, #tpu.memory_space<vmem>>, vector<16x64xf32>
    tpu.vector_store %arg9[%c16_68, %c0_69], %125 {strides = array<i32>} : memref<32x64xf32, #tpu.memory_space<vmem>>, vector<16x64xf32>,
    %c32_70 = arith.constant 32 : index
    %c0_71 = arith.constant 0 : index
    %128 = vector.load %arg8[%c32_70, %c0_71] : memref<64x128xf32, #tpu.memory_space<vmem>>, vector<16x128xf32>
    tpu.vector_store %arg8[%c32_70, %c0_71], %126 {strides = array<i32>} : memref<64x128xf32, #tpu.memory_space<vmem>>, vector<16x128xf32>,
    %129 = vector.extract_strided_slice %31 {offsets = [8, 0], sizes = [8, 32], strides = [1, 1]} : vector<16x32xf32> to vector<8x32xf32>
    %130 = vector.extract_strided_slice %35 {offsets = [16, 0], sizes = [16, 32], strides = [1, 1]} : vector<32x32xf32> to vector<16x32xf32>
    %131 = vector.extract_strided_slice %39 {offsets = [16, 0], sizes = [16, 32], strides = [1, 1]} : vector<32x32xf32> to vector<16x32xf32>
    %132 = tpu.concatenate %130, %130, %130, %130, %130, %130, %130, %130 in 0 : vector<16x32xf32>, vector<16x32xf32>, vector<16x32xf32>, vector<16x32xf32>, vector<16x32xf32>, vector<16x32xf32>, vector<16x32xf32>, vector<16x32xf32> -> vector<128x32xf32>
    %133 = arith.mulf %132, %41 : vector<128x32xf32>
    %134 = arith.truncf %133 : vector<128x32xf32> to vector<128x32xbf16>
    %135 = tpu.concatenate %131, %131, %131, %131, %131, %131, %131, %131 in 0 : vector<16x32xf32>, vector<16x32xf32>, vector<16x32xf32>, vector<16x32xf32>, vector<16x32xf32>, vector<16x32xf32>, vector<16x32xf32>, vector<16x32xf32> -> vector<128x32xf32>
    %136 = arith.mulf %135, %41 : vector<128x32xf32>
    %137 = arith.truncf %136 : vector<128x32xf32> to vector<128x32xbf16>
    %138 = arith.truncf %129 : vector<8x32xf32> to vector<8x32xbf16>
    %cst_72 = arith.constant dense<0.000000e+00> : vector<8x128xf32>
    %139 = tpu.matmul %138, %134, %cst_72 {dimension_numbers = #tpu.dot_dimension_numbers<[1], [1], [0], [0], [0, 0, 1, 0], [], []>} : vector<8x32xbf16>, vector<128x32xbf16>, vector<8x128xf32> -> vector<8x128xf32>
    %cst_73 = arith.constant 5.000000e-01 : f32
    %140 = vector.broadcast %cst_73 : f32 to vector<8x128xf32>
    %141 = arith.mulf %139, %140 : vector<8x128xf32>
    %cst_74 = arith.constant dense<0xFF800000> : vector<8xf32>
    %142 = vector.multi_reduction <maximumf>, %141, %cst_74 [1] : vector<8x128xf32> to vector<8xf32>
    %143 = vector.shape_cast %142 : vector<8xf32> to vector<8x1xf32>
    %144 = vector.broadcast %143 : vector<8x1xf32> to vector<8x128xf32>
    %145 = arith.subf %141, %144 : vector<8x128xf32>
    %146 = math.exp %145 : vector<8x128xf32>
    %cst_75 = arith.constant dense<0.000000e+00> : vector<8x8xf32>
    %147 = tpu.matmul %146, %43, %cst_75 {dimension_numbers = #tpu.dot_dimension_numbers<[1], [0], [0], [1], [0, 0, 1, 1], [], []>} : vector<8x128xf32>, vector<128x8xf32>, vector<8x8xf32> -> vector<8x8xf32>
    %148 = tpu.reciprocal %147 {approx = true} : vector<8x8xf32> -> vector<8x8xf32>
    %cst_76 = arith.constant dense<0.000000e+00> : vector<8x128xf32>
    %149 = tpu.matmul %148, %45, %cst_76 {dimension_numbers = #tpu.dot_dimension_numbers<[1], [0], [0], [1], [0, 0, 1, 1], [], []>} : vector<8x8xf32>, vector<8x128xf32>, vector<8x128xf32> -> vector<8x128xf32>
    %150 = arith.mulf %146, %149 : vector<8x128xf32>
    %151 = arith.truncf %150 : vector<8x128xf32> to vector<8x128xbf16>
    %cst_77 = arith.constant dense<0.000000e+00> : vector<8x32xf32>
    %152 = tpu.matmul %151, %137, %cst_77 {dimension_numbers = #tpu.dot_dimension_numbers<[1], [0], [0], [1], [0, 0, 1, 1], [], []>} : vector<8x128xbf16>, vector<128x32xbf16>, vector<8x32xf32> -> vector<8x32xf32>
    %cst_78 = arith.constant dense<0.000000e+00> : vector<8x128xf32>
    %153 = tpu.matmul %150, %47, %cst_78 {dimension_numbers = #tpu.dot_dimension_numbers<[1], [0], [0], [1], [0, 0, 1, 1], [], []>} : vector<8x128xf32>, vector<128x128xf32>, vector<8x128xf32> -> vector<8x128xf32>
    %c8_79 = arith.constant 8 : index
    %c0_80 = arith.constant 0 : index
    %154 = vector.load %arg10[%c8_79, %c0_80] : memref<16x32xf32, #tpu.memory_space<vmem>>, vector<8x32xf32>
    tpu.vector_store %arg10[%c8_79, %c0_80], %152 {strides = array<i32>} : memref<16x32xf32, #tpu.memory_space<vmem>>, vector<8x32xf32>,
    %c48 = arith.constant 48 : index
    %c0_81 = arith.constant 0 : index
    %155 = vector.load %arg8[%c48, %c0_81] : memref<64x128xf32, #tpu.memory_space<vmem>>, vector<8x128xf32>
    tpu.vector_store %arg8[%c48, %c0_81], %153 {strides = array<i32>} : memref<64x128xf32, #tpu.memory_space<vmem>>, vector<8x128xf32>,
    %c0_82 = arith.constant 0 : index
    %c0_83 = arith.constant 0 : index
    %156 = vector.load %arg9[%c0_82, %c0_83] : memref<32x64xf32, #tpu.memory_space<vmem>>, vector<32x64xf32>
    %157 = arith.truncf %156 : vector<32x64xf32> to vector<32x64xbf16>
    %c128 = arith.constant 128 : index
    %c0_84 = arith.constant 0 : index
    %158 = vector.load %arg3[%c128, %c0_84] : memref<192x64xbf16, #tpu.memory_space<vmem>>, vector<64x64xbf16>
    %cst_85 = arith.constant dense<0.000000e+00> : vector<32x64xf32>
    %159 = tpu.matmul %157, %158, %cst_85 {dimension_numbers = #tpu.dot_dimension_numbers<[1], [0], [0], [1], [0, 0, 1, 1], [], []>} : vector<32x64xbf16>, vector<64x64xbf16>, vector<32x64xf32> -> vector<32x64xf32>
    %160 = vector.broadcast %7 : vector<1x64xf32> to vector<32x64xf32>
    %161 = arith.addf %159, %160 : vector<32x64xf32>
    %c0_86 = arith.constant 0 : index
    %c0_87 = arith.constant 0 : index
    %162 = vector.load %arg10[%c0_86, %c0_87] : memref<16x32xf32, #tpu.memory_space<vmem>>, vector<16x32xf32>
    %163 = arith.truncf %162 : vector<16x32xf32> to vector<16x32xbf16>
    %c160 = arith.constant 160 : index
    %c0_88 = arith.constant 0 : index
    %164 = vector.load %arg4[%c160, %c0_88] : memref<192x32xbf16, #tpu.memory_space<vmem>>, vector<32x32xbf16>
    %cst_89 = arith.constant dense<0.000000e+00> : vector<16x32xf32>
    %165 = tpu.matmul %163, %164, %cst_89 {dimension_numbers = #tpu.dot_dimension_numbers<[1], [0], [0], [1], [0, 0, 1, 1], [], []>} : vector<16x32xbf16>, vector<32x32xbf16>, vector<16x32xf32> -> vector<16x32xf32>
    %166 = vector.broadcast %13 : vector<1x32xf32> to vector<16x32xf32>
    %167 = arith.addf %165, %166 : vector<16x32xf32>
    %168 = arith.addf %161, %0 : vector<32x64xf32>
    %cst_90 = arith.constant dense<0.000000e+00> : vector<32xf32>
    %169 = vector.multi_reduction <add>, %168, %cst_90 [1] : vector<32x64xf32> to vector<32xf32>
    %170 = vector.shape_cast %169 : vector<32xf32> to vector<32x1xf32>
    %cst_91 = arith.constant 6.400000e+01 : f32
    %171 = vector.broadcast %cst_91 : f32 to vector<32x1xf32>
    %172 = arith.divf %170, %171 : vector<32x1xf32>
    %173 = vector.broadcast %172 : vector<32x1xf32> to vector<32x64xf32>
    %174 = arith.subf %168, %173 : vector<32x64xf32>
    %175 = arith.mulf %174, %174 : vector<32x64xf32>
    %cst_92 = arith.constant dense<0.000000e+00> : vector<32xf32>
    %176 = vector.multi_reduction <add>, %175, %cst_92 [1] : vector<32x64xf32> to vector<32xf32>
    %177 = vector.shape_cast %176 : vector<32xf32> to vector<32x1xf32>
    %cst_93 = arith.constant 6.400000e+01 : f32
    %178 = vector.broadcast %cst_93 : f32 to vector<32x1xf32>
    %179 = arith.divf %177, %178 : vector<32x1xf32>
    %180 = vector.broadcast %172 : vector<32x1xf32> to vector<32x64xf32>
    %181 = arith.subf %168, %180 : vector<32x64xf32>
    %cst_94 = arith.constant 9.99999974E-6 : f32
    %182 = vector.broadcast %cst_94 : f32 to vector<32x1xf32>
    %183 = arith.addf %179, %182 : vector<32x1xf32>
    %184 = math.rsqrt %183 : vector<32x1xf32>
    %185 = vector.broadcast %184 : vector<32x1xf32> to vector<32x64xf32>
    %186 = arith.mulf %181, %185 : vector<32x64xf32>
    %187 = vector.broadcast %8 : vector<1x64xf32> to vector<32x64xf32>
    %188 = arith.mulf %186, %187 : vector<32x64xf32>
    %189 = vector.broadcast %9 : vector<1x64xf32> to vector<32x64xf32>
    %190 = arith.addf %188, %189 : vector<32x64xf32>
    %191 = arith.addf %167, %1 : vector<16x32xf32>
    %cst_95 = arith.constant dense<0.000000e+00> : vector<16xf32>
    %192 = vector.multi_reduction <add>, %191, %cst_95 [1] : vector<16x32xf32> to vector<16xf32>
    %193 = vector.shape_cast %192 : vector<16xf32> to vector<16x1xf32>
    %cst_96 = arith.constant 3.200000e+01 : f32
    %194 = vector.broadcast %cst_96 : f32 to vector<16x1xf32>
    %195 = arith.divf %193, %194 : vector<16x1xf32>
    %196 = vector.broadcast %195 : vector<16x1xf32> to vector<16x32xf32>
    %197 = arith.subf %191, %196 : vector<16x32xf32>
    %198 = arith.mulf %197, %197 : vector<16x32xf32>
    %cst_97 = arith.constant dense<0.000000e+00> : vector<16xf32>
    %199 = vector.multi_reduction <add>, %198, %cst_97 [1] : vector<16x32xf32> to vector<16xf32>
    %200 = vector.shape_cast %199 : vector<16xf32> to vector<16x1xf32>
    %cst_98 = arith.constant 3.200000e+01 : f32
    %201 = vector.broadcast %cst_98 : f32 to vector<16x1xf32>
    %202 = arith.divf %200, %201 : vector<16x1xf32>
    %203 = vector.broadcast %195 : vector<16x1xf32> to vector<16x32xf32>
    %204 = arith.subf %191, %203 : vector<16x32xf32>
    %cst_99 = arith.constant 9.99999974E-6 : f32
    %205 = vector.broadcast %cst_99 : f32 to vector<16x1xf32>
    %206 = arith.addf %202, %205 : vector<16x1xf32>
    %207 = math.rsqrt %206 : vector<16x1xf32>
    %208 = vector.broadcast %207 : vector<16x1xf32> to vector<16x32xf32>
    %209 = arith.mulf %204, %208 : vector<16x32xf32>
    %210 = vector.broadcast %14 : vector<1x32xf32> to vector<16x32xf32>
    %211 = arith.mulf %209, %210 : vector<16x32xf32>
    %212 = vector.broadcast %15 : vector<1x32xf32> to vector<16x32xf32>
    %213 = arith.addf %211, %212 : vector<16x32xf32>
    %c592 = arith.constant 592 : index
    %c0_100 = arith.constant 0 : index
    %214 = vector.load %arg7[%c592, %c0_100] : memref<608x128xf32, #tpu.memory_space<vmem>>, vector<2x32xf32>
    %cst_101 = arith.constant dense<0.000000e+00> : vector<2x64xf32>
    %215 = tpu.matmul %214, %190, %cst_101 {dimension_numbers = #tpu.dot_dimension_numbers<[1], [0], [0], [1], [0, 0, 1, 1], [], []>} : vector<2x32xf32>, vector<32x64xf32>, vector<2x64xf32> -> vector<2x64xf32>
    %c600 = arith.constant 600 : index
    %c0_102 = arith.constant 0 : index
    %216 = vector.load %arg7[%c600, %c0_102] : memref<608x128xf32, #tpu.memory_space<vmem>>, vector<2x16xf32>
    %cst_103 = arith.constant dense<0.000000e+00> : vector<2x32xf32>
    %217 = tpu.matmul %216, %213, %cst_103 {dimension_numbers = #tpu.dot_dimension_numbers<[1], [0], [0], [1], [0, 0, 1, 1], [], []>} : vector<2x16xf32>, vector<16x32xf32>, vector<2x32xf32> -> vector<2x32xf32>
    %c0_104 = arith.constant 0 : index
    %c0_105 = arith.constant 0 : index
    %218 = vector.load %arg6[%c0_104, %c0_105] : memref<160x128xbf16, #tpu.memory_space<vmem>>, vector<64x32xbf16>
    %c64_106 = arith.constant 64 : index
    %c0_107 = arith.constant 0 : index
    %219 = vector.load %arg6[%c64_106, %c0_107] : memref<160x128xbf16, #tpu.memory_space<vmem>>, vector<32x32xbf16>
    %c96_108 = arith.constant 96 : index
    %c0_109 = arith.constant 0 : index
    %220 = vector.load %arg6[%c96_108, %c0_109] : memref<160x128xbf16, #tpu.memory_space<vmem>>, vector<1x32xbf16>
    %221 = arith.extf %220 : vector<1x32xbf16> to vector<1x32xf32>
    %c112 = arith.constant 112 : index
    %c0_110 = arith.constant 0 : index
    %222 = vector.load %arg6[%c112, %c0_110] : memref<160x128xbf16, #tpu.memory_space<vmem>>, vector<32x128xbf16>
    %c144 = arith.constant 144 : index
    %c0_111 = arith.constant 0 : index
    %223 = vector.load %arg6[%c144, %c0_111] : memref<160x128xbf16, #tpu.memory_space<vmem>>, vector<1x128xbf16>
    %224 = arith.extf %223 : vector<1x128xbf16> to vector<1x128xf32>
    %225 = arith.truncf %215 : vector<2x64xf32> to vector<2x64xbf16>
    %cst_112 = arith.constant dense<0.000000e+00> : vector<2x32xf32>
    %226 = tpu.matmul %225, %218, %cst_112 {dimension_numbers = #tpu.dot_dimension_numbers<[1], [0], [0], [1], [0, 0, 1, 1], [], []>} : vector<2x64xbf16>, vector<64x32xbf16>, vector<2x32xf32> -> vector<2x32xf32>
    %227 = arith.truncf %217 : vector<2x32xf32> to vector<2x32xbf16>
    %cst_113 = arith.constant dense<0.000000e+00> : vector<2x32xf32>
    %228 = tpu.matmul %227, %219, %cst_113 {dimension_numbers = #tpu.dot_dimension_numbers<[1], [0], [0], [1], [0, 0, 1, 1], [], []>} : vector<2x32xbf16>, vector<32x32xbf16>, vector<2x32xf32> -> vector<2x32xf32>
    %229 = arith.addf %226, %228 : vector<2x32xf32>
    %230 = vector.broadcast %221 : vector<1x32xf32> to vector<2x32xf32>
    %231 = arith.addf %229, %230 : vector<2x32xf32>
    %cst_114 = arith.constant 0.000000e+00 : f32
    %232 = vector.broadcast %cst_114 : f32 to vector<2x32xf32>
    %233 = arith.maximumf %231, %232 : vector<2x32xf32>
    %234 = arith.truncf %233 : vector<2x32xf32> to vector<2x32xbf16>
    %cst_115 = arith.constant dense<0.000000e+00> : vector<2x128xf32>
    %235 = tpu.matmul %234, %222, %cst_115 {dimension_numbers = #tpu.dot_dimension_numbers<[1], [0], [0], [1], [0, 0, 1, 1], [], []>} : vector<2x32xbf16>, vector<32x128xbf16>, vector<2x128xf32> -> vector<2x128xf32>
    %236 = vector.broadcast %224 : vector<1x128xf32> to vector<2x128xf32>
    %237 = arith.addf %235, %236 : vector<2x128xf32>
    %238 = vector.extract_strided_slice %237 {offsets = [0, 0], sizes = [1, 128], strides = [1, 1]} : vector<2x128xf32> to vector<1x128xf32>
    %c24 = arith.constant 24 : index
    %c0_116 = arith.constant 0 : index
    %239 = vector.load %arg8[%c24, %c0_116] : memref<64x128xf32, #tpu.memory_space<vmem>>, vector<1x128xf32>
    tpu.vector_store %arg8[%c24, %c0_116], %238 {strides = array<i32>} : memref<64x128xf32, #tpu.memory_space<vmem>>, vector<1x128xf32>,
    %240 = vector.extract_strided_slice %237 {offsets = [1, 0], sizes = [1, 128], strides = [1, 1]} : vector<2x128xf32> to vector<1x128xf32>
    %c56 = arith.constant 56 : index
    %c0_117 = arith.constant 0 : index
    %241 = vector.load %arg8[%c56, %c0_117] : memref<64x128xf32, #tpu.memory_space<vmem>>, vector<1x128xf32>
    tpu.vector_store %arg8[%c56, %c0_117], %240 {strides = array<i32>} : memref<64x128xf32, #tpu.memory_space<vmem>>, vector<1x128xf32>,
    return
  }
  func.func @transform_0(%arg0: i32) -> (i32, i32) {
    %c0_i32 = arith.constant 0 : i32
    %c0_i32_0 = arith.constant 0 : i32
    return %arg0, %c0_i32 : i32, i32
  }
  func.func @transform_1(%arg0: i32) -> (i32, i32) {
    %c0_i32 = arith.constant 0 : i32
    %c0_i32_0 = arith.constant 0 : i32
    return %arg0, %c0_i32 : i32, i32
  }
  func.func @transform_2(%arg0: i32) -> (i32, i32) {
    %c0_i32 = arith.constant 0 : i32
    %c0_i32_0 = arith.constant 0 : i32
    %c0_i32_1 = arith.constant 0 : i32
    return %c0_i32, %c0_i32_0 : i32, i32
  }
  func.func @transform_3(%arg0: i32) -> (i32, i32) {
    %c0_i32 = arith.constant 0 : i32
    %c0_i32_0 = arith.constant 0 : i32
    %c0_i32_1 = arith.constant 0 : i32
    return %c0_i32, %c0_i32_0 : i32, i32
  }
  func.func @transform_4(%arg0: i32) -> (i32, i32) {
    %c0_i32 = arith.constant 0 : i32
    %c0_i32_0 = arith.constant 0 : i32
    %c0_i32_1 = arith.constant 0 : i32
    return %c0_i32, %c0_i32_0 : i32, i32
  }
  func.func @transform_5(%arg0: i32) -> (i32, i32) {
    %c0_i32 = arith.constant 0 : i32
    %c0_i32_0 = arith.constant 0 : i32
    %c0_i32_1 = arith.constant 0 : i32
    return %c0_i32, %c0_i32_0 : i32, i32
  }
  func.func @transform_6(%arg0: i32) -> (i32, i32) {
    %c0_i32 = arith.constant 0 : i32
    %c0_i32_0 = arith.constant 0 : i32
    %c0_i32_1 = arith.constant 0 : i32
    return %c0_i32, %c0_i32_0 : i32, i32
  }
  func.func @transform_7(%arg0: i32) -> (i32, i32) {
    %c0_i32 = arith.constant 0 : i32
    %c0_i32_0 = arith.constant 0 : i32
    return %arg0, %c0_i32 : i32, i32
  }
}

</mosaic_0001>

<llo_original>
// kernel: tpu_custom_call.1
$region0: #{tpu_custom_call.1}
  #allocation0 [shape = 'u32[]', space=smem, size = 0x4, offset = 0x4, fixed_abs, tag = 'smem constant byte address 0x4 - core index']
  #allocation1 [shape = 'u32[144,128]{1,0:T(1,128)}', space=vmem, size = 0x12000, scoped, tag = 'internal scratch']
  #allocation2 [shape = 'f32[32,64]{1,0:T(8,128)}', space=vmem, size = 0x4000, scoped, tag = 'scratch operand']
  #allocation3 [shape = 'f32[16,32]{1,0:T(8,128)}', space=vmem, size = 0x2000, scoped, tag = 'scratch operand']
  %s0 = inlined_call_operand.vmem [shape: f32[32,64], index: 0, kind: input, shape index: {}]
  %s1 = inlined_call_operand.vmem [shape: f32[16,32], index: 1, kind: input, shape index: {}]
  %s2 = inlined_call_operand.vmem [shape: bf16[192,64], index: 2, kind: input, shape index: {}]
  %s3 = inlined_call_operand.vmem [shape: bf16[192,32], index: 3, kind: input, shape index: {}]
  %s4 = inlined_call_operand.vmem [shape: f32[12,64], index: 4, kind: input, shape index: {}]
  %s5 = inlined_call_operand.vmem [shape: bf16[160,128], index: 5, kind: input, shape index: {}]
  %s6 = inlined_call_operand.hbm [shape: f32[608,128], index: 6, kind: input, shape index: {}]
  %s7 = inlined_call_operand.hbm [shape: f32[64,128], index: 7, kind: output, shape index: {}]
  %s8 = sld [smem:[#allocation0]]
  $region42: #{tpu_custom_call.1} parent=0
    _
  %s10 = ssub.s32 1, %s8
  %s11 = scalar_select 0, %s10, %s8
  $region1: #{tpu_custom_call.1} parent=0
    #allocation4 [shape = 'u8[311296]{0}', space=vmem, size = 0x4c000, scoped, tag = 'input window, operand 6, single buffered']
    #allocation5 [shape = 's32[1]{0}', space=sflag, size = 0x4, scoped, tag = 'scoped memory for tpu_custom_call.1']
    #allocation6 [shape = 's32[1]{0}', space=sflag, size = 0x4, scoped, tag = 'scoped memory for tpu_custom_call.1']
    #allocation7 [shape = 'u8[32768]{0}', space=vmem, size = 0x8000, scoped, tag = 'output window, operand 0, single buffered']
    %12 = vsyncpa [#allocation5], 0
    %13 = vsyncpa [#allocation6], 0
    // Predicated region
    $region2: #{tpu_custom_call.1} parent=1 // pred_check
      _
    $region3: #{tpu_custom_call.1} parent=1 // pred_check_branch
      %15 = sbr.rel (0) target = $region5
    $region4: #{tpu_custom_call.1} parent=1 // pred_region
      _
    $region5: #{tpu_custom_call.1} parent=1 // pred_fallthru
      _
    // Predicated region
    $region6: #{tpu_custom_call.1} parent=1 // pred_check
      _
    $region7: #{tpu_custom_call.1} parent=1 // pred_check_branch
      %17 = sbr.rel (0) target = $region9
    $region8: #{tpu_custom_call.1} parent=1 // pred_region
      _
    $region9: #{tpu_custom_call.1} parent=1 // pred_fallthru
      _
    // Predicated region
    $region10: #{tpu_custom_call.1} parent=1 // pred_check
      _
    $region11: #{tpu_custom_call.1} parent=1 // pred_check_branch
      %19 = sbr.rel (0) target = $region13
    $region12: #{tpu_custom_call.1} parent=1 // pred_region
      _
    $region13: #{tpu_custom_call.1} parent=1 // pred_fallthru
      _
    // Predicated region
    $region14: #{tpu_custom_call.1} parent=1 // pred_check
      _
    $region15: #{tpu_custom_call.1} parent=1 // pred_check_branch
      %21 = sbr.rel (0) target = $region17
    $region16: #{tpu_custom_call.1} parent=1 // pred_region
      _
    $region17: #{tpu_custom_call.1} parent=1 // pred_fallthru
      _
    // Predicated region
    $region18: #{tpu_custom_call.1} parent=1 // pred_check
      _
    $region19: #{tpu_custom_call.1} parent=1 // pred_check_branch
      %23 = sbr.rel (0) target = $region21
    $region20: #{tpu_custom_call.1} parent=1 // pred_region
      _
    $region21: #{tpu_custom_call.1} parent=1 // pred_fallthru
      _
    // Predicated region
    $region22: #{tpu_custom_call.1} parent=1 // pred_check
      _
    $region23: #{tpu_custom_call.1} parent=1 // pred_check_branch
      %25 = sbr.rel (0) target = $region25
    $region24: #{tpu_custom_call.1} parent=1 // pred_region
      _
    $region25: #{tpu_custom_call.1} parent=1 // pred_fallthru
      _
    // Predicated region
    $region26: #{tpu_custom_call.1} parent=1 // pred_check
      _
    $region27: #{tpu_custom_call.1} parent=1 // pred_check_branch
      %27 = sbr.rel (0) target = $region29
    $region28: #{tpu_custom_call.1} parent=1 // pred_region
      %s29 = ssub.s32 9728, 9728
      %30 = vsyncadd [#allocation5], %s29
      %s31 = sshll.u32 [#allocation4], 4
      %s32 = int_to_ptr.vmem [resolvable:$true] %s31
      %37 = dma.hbm_to_vmem [thread:$0]  %s6, 9728, %s32, [#allocation5], 128, 128, 8
    $region29: #{tpu_custom_call.1} parent=1 // pred_fallthru
      _
    // Predicated region
    $region30: #{tpu_custom_call.1} parent=1 // pred_check
      _
    $region31: #{tpu_custom_call.1} parent=1 // pred_check_branch
      %39 = sbr.rel (0) target = $region33
    $region32: #{tpu_custom_call.1} parent=1 // pred_region
      %40 = dma.done [#allocation5], 9728
    $region33: #{tpu_custom_call.1} parent=1 // pred_fallthru
      _
    %v42 = vld [vmem:[%s0] sm:$0xff]
    %v43 = vld [vmem:[%s0 + $0x8] sm:$0xff]
    %v44 = vld [vmem:[%s0 + $0x10] sm:$0xff]
    %v45 = vld [vmem:[%s0 + $0x18] sm:$0xff]
    %v46 = vld [vmem:[%s1] sm:$0xff]
    %v47 = vld [vmem:[%s1 + $0x8] sm:$0xff]
    %v48 = vpack.c.bf16 %v43, %v42
    %v49 = vpack.c.bf16 %v45, %v44
    %v50 = vpack.c.bf16 %v47, %v46
    %v51 = vld [vmem:[%s4] sm:$0x1]
    %v52 = vld [vmem:[%s4 + $0x1] sm:$0x1]
    %v53 = vld [vmem:[%s4 + $0x2] sm:$0x1]
    %v54 = vld [vmem:[%s4 + $0x3] sm:$0x1]
    %v55 = vld [vmem:[%s4 + $0x4] sm:$0x1]
    %v56 = vld [vmem:[%s4 + $0x5] sm:$0x1]
    %v57 = vld [vmem:[%s4 + $0x6] sm:$0x1]
    %v58 = vld [vmem:[%s4 + $0x7] sm:$0x1]
    %v59 = vld [vmem:[%s4 + $0x8] sm:$0x1]
    %v60 = vld [vmem:[%s4 + $0x9] sm:$0x1]
    %v61 = vld [vmem:[%s4 + $0xa] sm:$0x1]
    %v62 = vld [vmem:[%s4 + $0xb] sm:$0x1]
    %v63 = vld [vmem:[%s2] sm:$0xf]
    %v64 = vld [vmem:[%s2 + $0x4] sm:$0xf]
    %v65 = vld [vmem:[%s2 + $0x8] sm:$0xf]
    %v66 = vld [vmem:[%s2 + $0xc] sm:$0xf]
    %v67 = vld [vmem:[%s2 + $0x10] sm:$0xf]
    %v68 = vld [vmem:[%s2 + $0x14] sm:$0xf]
    %v69 = vld [vmem:[%s2 + $0x18] sm:$0xf]
    %v70 = vld [vmem:[%s2 + $0x1c] sm:$0xf]
    %v71 = vlaneseq
    %v72 = vshrl.u32 %v71, 7
    %v73 = vsub.s32 0, %v72
    %v74 = vrot.slane %v51, %v73
    %v83 = vunpack.c.l.b16 %v63
    %v84 = vunpack.c.l.b16 %v64
    %v85 = vunpack.c.l.b16 %v65
    %v86 = vunpack.c.l.b16 %v66
    %v87 = vunpack.c.l.b16 %v67
    %v88 = vunpack.c.l.b16 %v68
    %v89 = vunpack.c.l.b16 %v69
    %v90 = vunpack.c.l.b16 %v70
    %v91 = vpack.c.b16 %v84, %v83
    %v92 = vpack.c.b16 %v86, %v85
    %v93 = vpack.c.b16 %v88, %v87
    %v94 = vpack.c.b16 %v90, %v89
    %vm99 = vcmask 523264
    %v101 = vsel %vm99, %v48, 0
    %v104 = vsel %vm99, %v49, 0
    %106 = vmatprep.subr.bf16.mxu0 0
    %107 = vmatpush1.bf16.msra.mxu0 %v91
    %108 = vmatprep.subr.bf16.mxu0 0
    %109 = vmatpush1.bf16.msra.mxu0 %v92
    %110 = vmatprep.subr.bf16.mxu0 0
    %111 = vmatpush1.bf16.msra.mxu0 %v93
    %112 = vmatprep.subr.bf16.mxu0 0
    %113 = vmatpush1.bf16.msra.mxu0 %v94
    %114 = vmatprep.subr.bf16.mxu0 0
    %115 = vmatpush1.bf16.msra.mxu0 0
    %116 = vmatprep.subr.bf16.mxu0 0
    %117 = vmatpush1.bf16.msra.mxu0 0
    %118 = vmatprep.subr.bf16.mxu0 0
    %119 = vmatpush1.bf16.msra.mxu0 0
    %120 = vmatprep.subr.bf16.mxu0 0
    %121 = vmatpush1.bf16.msra.mxu0 0
    %122 = vmatprep.subr.bf16.mxu0 0
    %123 = vmatpush1.bf16.msra.mxu0 0
    %124 = vmatprep.subr.bf16.mxu0 0
    %125 = vmatpush1.bf16.msra.mxu0 0
    %126 = vmatprep.subr.bf16.mxu0 0
    %127 = vmatpush1.bf16.msra.mxu0 0
    %128 = vmatprep.subr.bf16.mxu0 0
    %129 = vmatpush1.bf16.msra.mxu0 0
    %130 = vmatprep.subr.bf16.mxu0 0
    %131 = vmatpush1.bf16.msra.mxu0 0
    %132 = vmatprep.subr.bf16.mxu0 0
    %133 = vmatpush1.bf16.msra.mxu0 0
    %134 = vmatprep.subr.bf16.mxu0 0
    %135 = vmatpush1.bf16.msra.mxu0 0
    %136 = vmatprep.subr.bf16.mxu0 0
    %137 = vmatpush1.bf16.msra.mxu0 0
    %138 = vmatprep.mubr.bf16.mxu0 0
    %139 = vmatmul.mubr.bf16.gmra.mrb[0].mxu0 %v101
    %v140 = vpop.f32.mrb[0].mxu0
    %v141 = vadd.f32 %v74, %v140
    %v142 = vpop.f32.mrb[0].mxu0
    %v143 = vpop.f32.mrb[0].mxu0
    %v144 = vadd.f32 %v74, %v143
    %v145 = vpop.f32.mrb[0].mxu0
    %146 = vmatprep.mubr.bf16.mxu0 0
    %147 = vmatmul.mubr.bf16.gmra.mrb[0].mxu0 %v104
    %v148 = vpop.f32.mrb[0].mxu0
    %v149 = vadd.f32 %v74, %v148
    %v150 = vpop.f32.mrb[0].mxu0
    %v151 = vpop.f32.mrb[0].mxu0
    %v152 = vadd.f32 %v74, %v151
    %v153 = vpop.f32.mrb[0].mxu0
    %154 = vdwg.mxu0
    %v155 = vld [vmem:[%s2 + $0x20] sm:$0xf]
    %v156 = vld [vmem:[%s2 + $0x24] sm:$0xf]
    %v157 = vld [vmem:[%s2 + $0x28] sm:$0xf]
    %v158 = vld [vmem:[%s2 + $0x2c] sm:$0xf]
    %v159 = vlaneseq
    %v160 = vshrl.u32 %v159, 7
    %v161 = vsub.s32 0, %v160
    %v162 = vrot.slane %v52, %v161
    %v167 = vunpack.c.l.b16 %v155
    %v168 = vunpack.c.l.b16 %v156
    %v169 = vunpack.c.l.b16 %v157
    %v170 = vunpack.c.l.b16 %v158
    %v171 = vpack.c.b16 %v168, %v167
    %v172 = vpack.c.b16 %v170, %v169
    %vm175 = vcmask 261120
    %v177 = vsel %vm175, %v50, 0
    %179 = vmatprep.subr.bf16.mxu0 0
    %180 = vmatpush1.bf16.msra.mxu0 %v171
    %181 = vmatprep.subr.bf16.mxu0 0
    %182 = vmatpush1.bf16.msra.mxu0 %v172
    %183 = vmatprep.subr.bf16.mxu0 0
    %184 = vmatpush1.bf16.msra.mxu0 0
    %185 = vmatprep.subr.bf16.mxu0 0
    %186 = vmatpush1.bf16.msra.mxu0 0
    %187 = vmatprep.subr.bf16.mxu0 0
    %188 = vmatpush1.bf16.msra.mxu0 0
    %189 = vmatprep.subr.bf16.mxu0 0
    %190 = vmatpush1.bf16.msra.mxu0 0
    %191 = vmatprep.subr.bf16.mxu0 0
    %192 = vmatpush1.bf16.msra.mxu0 0
    %193 = vmatprep.subr.bf16.mxu0 0
    %194 = vmatpush1.bf16.msra.mxu0 0
    %195 = vmatprep.subr.bf16.mxu0 0
    %196 = vmatpush1.bf16.msra.mxu0 0
    %197 = vmatprep.subr.bf16.mxu0 0
    %198 = vmatpush1.bf16.msra.mxu0 0
    %199 = vmatprep.subr.bf16.mxu0 0
    %200 = vmatpush1.bf16.msra.mxu0 0
    %201 = vmatprep.subr.bf16.mxu0 0
    %202 = vmatpush1.bf16.msra.mxu0 0
    %203 = vmatprep.subr.bf16.mxu0 0
    %204 = vmatpush1.bf16.msra.mxu0 0
    %205 = vmatprep.subr.bf16.mxu0 0
    %206 = vmatpush1.bf16.msra.mxu0 0
    %207 = vmatprep.subr.bf16.mxu0 0
    %208 = vmatpush1.bf16.msra.mxu0 0
    %209 = vmatprep.subr.bf16.mxu0 0
    %210 = vmatpush1.bf16.msra.mxu0 0
    %211 = vmatprep.mubr.bf16.mxu0 0
    %212 = vmatmul.mubr.bf16.gmra.mrb[0].mxu0 %v177
    %v213 = vpop.f32.mrb[0].mxu0
    %v214 = vadd.f32 %v162, %v213
    %v215 = vpop.f32.mrb[0].mxu0
    %v216 = vpop.f32.mrb[0].mxu0
    %v217 = vadd.f32 %v162, %v216
    %v218 = vpop.f32.mrb[0].mxu0
    %219 = vdwg.mxu0
    %v220 = vld [vmem:[%s2 + $0x30] sm:$0xf]
    %v221 = vld [vmem:[%s2 + $0x34] sm:$0xf]
    %v222 = vld [vmem:[%s2 + $0x38] sm:$0xf]
    %v223 = vld [vmem:[%s2 + $0x3c] sm:$0xf]
    %v224 = vlaneseq
    %v225 = vshrl.u32 %v224, 7
    %v226 = vsub.s32 0, %v225
    %v227 = vrot.slane %v53, %v226
    %v232 = vunpack.c.l.b16 %v220
    %v233 = vunpack.c.l.b16 %v221
    %v234 = vunpack.c.l.b16 %v222
    %v235 = vunpack.c.l.b16 %v223
    %v236 = vpack.c.b16 %v233, %v232
    %v237 = vpack.c.b16 %v235, %v234
    %240 = vmatprep.subr.bf16.mxu0 0
    %241 = vmatpush1.bf16.msra.mxu0 %v236
    %242 = vmatprep.subr.bf16.mxu0 0
    %243 = vmatpush1.bf16.msra.mxu0 %v237
    %244 = vmatprep.subr.bf16.mxu0 0
    %245 = vmatpush1.bf16.msra.mxu0 0
    %246 = vmatprep.subr.bf16.mxu0 0
    %247 = vmatpush1.bf16.msra.mxu0 0
    %248 = vmatprep.subr.bf16.mxu0 0
    %249 = vmatpush1.bf16.msra.mxu0 0
    %250 = vmatprep.subr.bf16.mxu0 0
    %251 = vmatpush1.bf16.msra.mxu0 0
    %252 = vmatprep.subr.bf16.mxu0 0
    %253 = vmatpush1.bf16.msra.mxu0 0
    %254 = vmatprep.subr.bf16.mxu0 0
    %255 = vmatpush1.bf16.msra.mxu0 0
    %256 = vmatprep.subr.bf16.mxu0 0
    %257 = vmatpush1.bf16.msra.mxu0 0
    %258 = vmatprep.subr.bf16.mxu0 0
    %259 = vmatpush1.bf16.msra.mxu0 0
    %260 = vmatprep.subr.bf16.mxu0 0
    %261 = vmatpush1.bf16.msra.mxu0 0
    %262 = vmatprep.subr.bf16.mxu0 0
    %263 = vmatpush1.bf16.msra.mxu0 0
    %264 = vmatprep.subr.bf16.mxu0 0
    %265 = vmatpush1.bf16.msra.mxu0 0
    %266 = vmatprep.subr.bf16.mxu0 0
    %267 = vmatpush1.bf16.msra.mxu0 0
    %268 = vmatprep.subr.bf16.mxu0 0
    %269 = vmatpush1.bf16.msra.mxu0 0
    %270 = vmatprep.subr.bf16.mxu0 0
    %271 = vmatpush1.bf16.msra.mxu0 0
    %272 = vmatprep.mubr.bf16.mxu0 0
    %273 = vmatmul.mubr.bf16.gmra.mrb[0].mxu0 %v177
    %v274 = vpop.f32.mrb[0].mxu0
    %v275 = vadd.f32 %v227, %v274
    %v276 = vpop.f32.mrb[0].mxu0
    %v277 = vpop.f32.mrb[0].mxu0
    %v278 = vadd.f32 %v227, %v277
    %v279 = vpop.f32.mrb[0].mxu0
    %280 = vdwg.mxu0
    %v281 = vld [vmem:[%s3] sm:$0xf]
    %v282 = vld [vmem:[%s3 + $0x4] sm:$0xf]
    %v283 = vld [vmem:[%s3 + $0x8] sm:$0xf]
    %v284 = vld [vmem:[%s3 + $0xc] sm:$0xf]
    %v285 = vlaneseq
    %v286 = vshrl.u32 %v285, 7
    %v287 = vsub.s32 0, %v286
    %v288 = vrot.slane %v57, %v287
    %v293 = vunpack.c.l.b16 %v281
    %v294 = vunpack.c.l.b16 %v282
    %v295 = vunpack.c.l.b16 %v283
    %v296 = vunpack.c.l.b16 %v284
    %v297 = vpack.c.b16 %v294, %v293
    %v298 = vpack.c.b16 %v296, %v295
    %301 = vmatprep.subr.bf16.mxu0 0
    %302 = vmatpush1.bf16.msra.mxu0 %v297
    %303 = vmatprep.subr.bf16.mxu0 0
    %304 = vmatpush1.bf16.msra.mxu0 %v298
    %305 = vmatprep.subr.bf16.mxu0 0
    %306 = vmatpush1.bf16.msra.mxu0 0
    %307 = vmatprep.subr.bf16.mxu0 0
    %308 = vmatpush1.bf16.msra.mxu0 0
    %309 = vmatprep.subr.bf16.mxu0 0
    %310 = vmatpush1.bf16.msra.mxu0 0
    %311 = vmatprep.subr.bf16.mxu0 0
    %312 = vmatpush1.bf16.msra.mxu0 0
    %313 = vmatprep.subr.bf16.mxu0 0
    %314 = vmatpush1.bf16.msra.mxu0 0
    %315 = vmatprep.subr.bf16.mxu0 0
    %316 = vmatpush1.bf16.msra.mxu0 0
    %317 = vmatprep.subr.bf16.mxu0 0
    %318 = vmatpush1.bf16.msra.mxu0 0
    %319 = vmatprep.subr.bf16.mxu0 0
    %320 = vmatpush1.bf16.msra.mxu0 0
    %321 = vmatprep.subr.bf16.mxu0 0
    %322 = vmatpush1.bf16.msra.mxu0 0
    %323 = vmatprep.subr.bf16.mxu0 0
    %324 = vmatpush1.bf16.msra.mxu0 0
    %325 = vmatprep.subr.bf16.mxu0 0
    %326 = vmatpush1.bf16.msra.mxu0 0
    %327 = vmatprep.subr.bf16.mxu0 0
    %328 = vmatpush1.bf16.msra.mxu0 0
    %329 = vmatprep.subr.bf16.mxu0 0
    %330 = vmatpush1.bf16.msra.mxu0 0
    %331 = vmatprep.subr.bf16.mxu0 0
    %332 = vmatpush1.bf16.msra.mxu0 0
    %333 = vmatprep.mubr.bf16.mxu0 0
    %334 = vmatmul.mubr.bf16.gmra.mrb[0].mxu0 %v177
    %v335 = vpop.f32.mrb[0].mxu0
    %v336 = vadd.f32 %v288, %v335
    %v337 = vpop.f32.mrb[0].mxu0
    %v338 = vpop.f32.mrb[0].mxu0
    %v339 = vadd.f32 %v288, %v338
    %v340 = vpop.f32.mrb[0].mxu0
    %341 = vdwg.mxu0
    %v342 = vld [vmem:[%s3 + $0x10] sm:$0xf]
    %v343 = vld [vmem:[%s3 + $0x14] sm:$0xf]
    %v344 = vld [vmem:[%s3 + $0x18] sm:$0xf]
    %v345 = vld [vmem:[%s3 + $0x1c] sm:$0xf]
    %v346 = vld [vmem:[%s3 + $0x20] sm:$0xf]
    %v347 = vld [vmem:[%s3 + $0x24] sm:$0xf]
    %v348 = vld [vmem:[%s3 + $0x28] sm:$0xf]
    %v349 = vld [vmem:[%s3 + $0x2c] sm:$0xf]
    %v350 = vlaneseq
    %v351 = vshrl.u32 %v350, 7
    %v352 = vsub.s32 0, %v351
    %v353 = vrot.slane %v58, %v352
    %v362 = vunpack.c.l.b16 %v342
    %v363 = vunpack.c.l.b16 %v343
    %v364 = vunpack.c.l.b16 %v344
    %v365 = vunpack.c.l.b16 %v345
    %v366 = vunpack.c.l.b16 %v346
    %v367 = vunpack.c.l.b16 %v347
    %v368 = vunpack.c.l.b16 %v348
    %v369 = vunpack.c.l.b16 %v349
    %v370 = vpack.c.b16 %v363, %v362
    %v371 = vpack.c.b16 %v365, %v364
    %v372 = vpack.c.b16 %v367, %v366
    %v373 = vpack.c.b16 %v369, %v368
    %378 = vmatprep.subr.bf16.mxu0 0
    %379 = vmatpush1.bf16.msra.mxu0 %v370
    %380 = vmatprep.subr.bf16.mxu0 0
    %381 = vmatpush1.bf16.msra.mxu0 %v371
    %382 = vmatprep.subr.bf16.mxu0 0
    %383 = vmatpush1.bf16.msra.mxu0 %v372
    %384 = vmatprep.subr.bf16.mxu0 0
    %385 = vmatpush1.bf16.msra.mxu0 %v373
    %386 = vmatprep.subr.bf16.mxu0 0
    %387 = vmatpush1.bf16.msra.mxu0 0
    %388 = vmatprep.subr.bf16.mxu0 0
    %389 = vmatpush1.bf16.msra.mxu0 0
    %390 = vmatprep.subr.bf16.mxu0 0
    %391 = vmatpush1.bf16.msra.mxu0 0
    %392 = vmatprep.subr.bf16.mxu0 0
    %393 = vmatpush1.bf16.msra.mxu0 0
    %394 = vmatprep.subr.bf16.mxu0 0
    %395 = vmatpush1.bf16.msra.mxu0 0
    %396 = vmatprep.subr.bf16.mxu0 0
    %397 = vmatpush1.bf16.msra.mxu0 0
    %398 = vmatprep.subr.bf16.mxu0 0
    %399 = vmatpush1.bf16.msra.mxu0 0
    %400 = vmatprep.subr.bf16.mxu0 0
    %401 = vmatpush1.bf16.msra.mxu0 0
    %402 = vmatprep.subr.bf16.mxu0 0
    %403 = vmatpush1.bf16.msra.mxu0 0
    %404 = vmatprep.subr.bf16.mxu0 0
    %405 = vmatpush1.bf16.msra.mxu0 0
    %406 = vmatprep.subr.bf16.mxu0 0
    %407 = vmatpush1.bf16.msra.mxu0 0
    %408 = vmatprep.subr.bf16.mxu0 0
    %409 = vmatpush1.bf16.msra.mxu0 0
    %410 = vmatprep.mubr.bf16.mxu0 0
    %411 = vmatmul.mubr.bf16.gmra.mrb[0].mxu0 %v101
    %v412 = vpop.f32.mrb[0].mxu0
    %v413 = vadd.f32 %v353, %v412
    %v414 = vpop.f32.mrb[0].mxu0
    %v415 = vpop.f32.mrb[0].mxu0
    %v416 = vadd.f32 %v353, %v415
    %v417 = vpop.f32.mrb[0].mxu0
    %418 = vmatprep.mubr.bf16.mxu0 0
    %419 = vmatmul.mubr.bf16.gmra.mrb[0].mxu0 %v104
    %v420 = vpop.f32.mrb[0].mxu0
    %v421 = vadd.f32 %v353, %v420
    %v422 = vpop.f32.mrb[0].mxu0
    %v423 = vpop.f32.mrb[0].mxu0
    %v424 = vadd.f32 %v353, %v423
    %v425 = vpop.f32.mrb[0].mxu0
    %426 = vdwg.mxu0
    %v427 = vld [vmem:[%s3 + $0x30] sm:$0xf]
    %v428 = vld [vmem:[%s3 + $0x34] sm:$0xf]
    %v429 = vld [vmem:[%s3 + $0x38] sm:$0xf]
    %v430 = vld [vmem:[%s3 + $0x3c] sm:$0xf]
    %v431 = vld [vmem:[%s3 + $0x40] sm:$0xf]
    %v432 = vld [vmem:[%s3 + $0x44] sm:$0xf]
    %v433 = vld [vmem:[%s3 + $0x48] sm:$0xf]
    %v434 = vld [vmem:[%s3 + $0x4c] sm:$0xf]
    %v435 = vlaneseq
    %v436 = vshrl.u32 %v435, 7
    %v437 = vsub.s32 0, %v436
    %v438 = vrot.slane %v59, %v437
    %v447 = vunpack.c.l.b16 %v427
    %v448 = vunpack.c.l.b16 %v428
    %v449 = vunpack.c.l.b16 %v429
    %v450 = vunpack.c.l.b16 %v430
    %v451 = vunpack.c.l.b16 %v431
    %v452 = vunpack.c.l.b16 %v432
    %v453 = vunpack.c.l.b16 %v433
    %v454 = vunpack.c.l.b16 %v434
    %v455 = vpack.c.b16 %v448, %v447
    %v456 = vpack.c.b16 %v450, %v449
    %v457 = vpack.c.b16 %v452, %v451
    %v458 = vpack.c.b16 %v454, %v453
    %463 = vmatprep.subr.bf16.mxu0 0
    %464 = vmatpush1.bf16.msra.mxu0 %v455
    %465 = vmatprep.subr.bf16.mxu0 0
    %466 = vmatpush1.bf16.msra.mxu0 %v456
    %467 = vmatprep.subr.bf16.mxu0 0
    %468 = vmatpush1.bf16.msra.mxu0 %v457
    %469 = vmatprep.subr.bf16.mxu0 0
    %470 = vmatpush1.bf16.msra.mxu0 %v458
    %471 = vmatprep.subr.bf16.mxu0 0
    %472 = vmatpush1.bf16.msra.mxu0 0
    %473 = vmatprep.subr.bf16.mxu0 0
    %474 = vmatpush1.bf16.msra.mxu0 0
    %475 = vmatprep.subr.bf16.mxu0 0
    %476 = vmatpush1.bf16.msra.mxu0 0
    %477 = vmatprep.subr.bf16.mxu0 0
    %478 = vmatpush1.bf16.msra.mxu0 0
    %479 = vmatprep.subr.bf16.mxu0 0
    %480 = vmatpush1.bf16.msra.mxu0 0
    %481 = vmatprep.subr.bf16.mxu0 0
    %482 = vmatpush1.bf16.msra.mxu0 0
    %483 = vmatprep.subr.bf16.mxu0 0
    %484 = vmatpush1.bf16.msra.mxu0 0
    %485 = vmatprep.subr.bf16.mxu0 0
    %486 = vmatpush1.bf16.msra.mxu0 0
    %487 = vmatprep.subr.bf16.mxu0 0
    %488 = vmatpush1.bf16.msra.mxu0 0
    %489 = vmatprep.subr.bf16.mxu0 0
    %490 = vmatpush1.bf16.msra.mxu0 0
    %491 = vmatprep.subr.bf16.mxu0 0
    %492 = vmatpush1.bf16.msra.mxu0 0
    %493 = vmatprep.subr.bf16.mxu0 0
    %494 = vmatpush1.bf16.msra.mxu0 0
    %495 = vmatprep.mubr.bf16.mxu0 0
    %496 = vmatmul.mubr.bf16.gmra.mrb[0].mxu0 %v101
    %v497 = vpop.f32.mrb[0].mxu0
    %v498 = vadd.f32 %v438, %v497
    %v499 = vpop.f32.mrb[0].mxu0
    %v500 = vpop.f32.mrb[0].mxu0
    %v501 = vadd.f32 %v438, %v500
    %v502 = vpop.f32.mrb[0].mxu0
    %503 = vmatprep.mubr.bf16.mxu0 0
    %504 = vmatmul.mubr.bf16.gmra.mrb[0].mxu0 %v104
    %v505 = vpop.f32.mrb[0].mxu0
    %v506 = vadd.f32 %v438, %v505
    %v507 = vpop.f32.mrb[0].mxu0
    %v508 = vpop.f32.mrb[0].mxu0
    %v509 = vadd.f32 %v438, %v508
    %v510 = vpop.f32.mrb[0].mxu0
    %511 = vdwg.mxu0
    %v512 = vld [vmem:[#allocation4] sm:$0xff]
    %v513 = vld [vmem:[#allocation4 + $0x8] sm:$0xff]
    %v514 = vld [vmem:[#allocation4 + $0x10] sm:$0xff]
    %v515 = vld [vmem:[#allocation4 + $0x18] sm:$0xff]
    %v516 = vld [vmem:[#allocation4 + $0x20] sm:$0xff]
    %v517 = vld [vmem:[#allocation4 + $0x28] sm:$0xff]
    %v518 = vld [vmem:[#allocation4 + $0x30] sm:$0xff]
    %v519 = vld [vmem:[#allocation4 + $0x38] sm:$0xff]
    %v520 = vld [vmem:[#allocation4 + $0x40] sm:$0xff]
    %v521 = vld [vmem:[#allocation4 + $0x48] sm:$0xff]
    %v522 = vld [vmem:[#allocation4 + $0x50] sm:$0xff]
    %v523 = vld [vmem:[#allocation4 + $0x58] sm:$0xff]
    %v524 = vld [vmem:[#allocation4 + $0x60] sm:$0xff]
    %v525 = vld [vmem:[#allocation4 + $0x68] sm:$0xff]
    %v526 = vld [vmem:[#allocation4 + $0x70] sm:$0xff]
    %v527 = vld [vmem:[#allocation4 + $0x78] sm:$0xff]
    %v528 = vld [vmem:[#allocation4 + $0x80] sm:$0xff]
    %v529 = vld [vmem:[#allocation4 + $0x88] sm:$0xff]
    %v530 = vld [vmem:[#allocation4 + $0x90] sm:$0xff]
    %v531 = vld [vmem:[#allocation4 + $0x98] sm:$0xff]
    %v532 = vld [vmem:[#allocation4 + $0xa0] sm:$0xff]
    %v533 = vld [vmem:[#allocation4 + $0xa8] sm:$0xff]
    %v534 = vld [vmem:[#allocation4 + $0xb0] sm:$0xff]
    %v535 = vld [vmem:[#allocation4 + $0xb8] sm:$0xff]
    %v536 = vld [vmem:[#allocation4 + $0xc0] sm:$0xff]
    %v537 = vld [vmem:[#allocation4 + $0xc8] sm:$0xff]
    %v538 = vld [vmem:[#allocation4 + $0xd0] sm:$0xff]
    %v539 = vld [vmem:[#allocation4 + $0xd8] sm:$0xff]
    %v540 = vld [vmem:[#allocation4 + $0xe0] sm:$0xff]
    %v541 = vld [vmem:[#allocation4 + $0xe8] sm:$0xff]
    %v542 = vld [vmem:[#allocation4 + $0xf0] sm:$0xff]
    %v543 = vld [vmem:[#allocation4 + $0xf8] sm:$0xff]
    %v544 = vld [vmem:[#allocation4 + $0x100] sm:$0xff]
    %v545 = vld [vmem:[#allocation4 + $0x108] sm:$0xff]
    %v546 = vld [vmem:[#allocation4 + $0x110] sm:$0xff]
    %v547 = vld [vmem:[#allocation4 + $0x118] sm:$0xff]
    %v548 = vld [vmem:[#allocation4 + $0x120] sm:$0xff]
    %v549 = vld [vmem:[#allocation4 + $0x128] sm:$0xff]
    %v550 = vld [vmem:[#allocation4 + $0x130] sm:$0xff]
    %v551 = vld [vmem:[#allocation4 + $0x138] sm:$0xff]
    %v552 = vld [vmem:[#allocation4 + $0x140] sm:$0xff]
    %v553 = vld [vmem:[#allocation4 + $0x148] sm:$0xff]
    %v554 = vld [vmem:[#allocation4 + $0x150] sm:$0xff]
    %v555 = vld [vmem:[#allocation4 + $0x158] sm:$0xff]
    %v556 = vld [vmem:[#allocation4 + $0x160] sm:$0xff]
    %v557 = vld [vmem:[#allocation4 + $0x168] sm:$0xff]
    %v558 = vld [vmem:[#allocation4 + $0x170] sm:$0xff]
    %v559 = vld [vmem:[#allocation4 + $0x178] sm:$0xff]
    %v560 = vld [vmem:[#allocation4 + $0x180] sm:$0xff]
    %v561 = vld [vmem:[#allocation4 + $0x188] sm:$0xff]
    %v562 = vld [vmem:[#allocation4 + $0x190] sm:$0xff]
    %v563 = vld [vmem:[#allocation4 + $0x198] sm:$0xff]
    %v564 = vld [vmem:[#allocation4 + $0x1a0] sm:$0xff]
    %v565 = vld [vmem:[#allocation4 + $0x1a8] sm:$0xff]
    %v566 = vld [vmem:[#allocation4 + $0x1b0] sm:$0xff]
    %v567 = vld [vmem:[#allocation4 + $0x1b8] sm:$0xff]
    %v568 = vld [vmem:[#allocation4 + $0x1c0] sm:$0xff]
    %v569 = vld [vmem:[#allocation4 + $0x1c8] sm:$0xff]
    %v570 = vld [vmem:[#allocation4 + $0x1d0] sm:$0xff]
    %v571 = vld [vmem:[#allocation4 + $0x1d8] sm:$0xff]
    %v572 = vld [vmem:[#allocation4 + $0x1e0] sm:$0xff]
    %v573 = vld [vmem:[#allocation4 + $0x1e8] sm:$0xff]
    %v574 = vld [vmem:[#allocation4 + $0x1f0] sm:$0xff]
    %v575 = vld [vmem:[#allocation4 + $0x1f8] sm:$0xff]
    %v576 = vld [vmem:[#allocation4 + $0x200] sm:$0xff]
    %v577 = vld [vmem:[#allocation4 + $0x208] sm:$0xff]
    %v578 = vld [vmem:[#allocation4 + $0x210] sm:$0xff]
    %v579 = vld [vmem:[#allocation4 + $0x218] sm:$0xff]
    %v580 = vld [vmem:[#allocation4 + $0x220] sm:$0xff]
    %v581 = vld [vmem:[#allocation4 + $0x228] sm:$0xff]
    %v582 = vld [vmem:[#allocation4 + $0x230] sm:$0xff]
    %v583 = vld [vmem:[#allocation4 + $0x238] sm:$0xff]
    %v584 = vld [vmem:[#allocation4 + $0x240] sm:$0xff]
    %v585 = vld [vmem:[#allocation4 + $0x248] sm:$0xff]
    %v586 = vmul.f32 %v214, %v512
    %v587 = vmul.f32 %v214, %v513
    %v588 = vmul.f32 %v214, %v514
    %v589 = vmul.f32 %v214, %v515
    %v590 = vmul.f32 %v214, %v516
    %v591 = vmul.f32 %v214, %v517
    %v592 = vmul.f32 %v214, %v518
    %v593 = vmul.f32 %v214, %v519
    %v594 = vpack.c.bf16 %v587, %v586
    %v595 = vpack.c.bf16 %v589, %v588
    %v596 = vpack.c.bf16 %v591, %v590
    %v597 = vpack.c.bf16 %v593, %v592
    %v598 = vmul.f32 %v275, %v512
    %v599 = vmul.f32 %v275, %v513
    %v600 = vmul.f32 %v275, %v514
    %v601 = vmul.f32 %v275, %v515
    %v602 = vmul.f32 %v275, %v516
    %v603 = vmul.f32 %v275, %v517
    %v604 = vmul.f32 %v275, %v518
    %v605 = vmul.f32 %v275, %v519
    %v606 = vpack.c.bf16 %v599, %v598
    %v607 = vpack.c.bf16 %v601, %v600
    %v608 = vpack.c.bf16 %v603, %v602
    %v609 = vpack.c.bf16 %v605, %v604
    %v610 = vpack.c.bf16 %v144, %v141
    %v612 = vsel %vm99, %v610, 0
    %v615 = vsel %vm99, %v594, 0
    %v618 = vsel %vm99, %v595, 0
    %v621 = vsel %vm99, %v596, 0
    %v624 = vsel %vm99, %v597, 0
    %626 = vmatprep.subr.bf16.mxu0 0
    %627 = vmatpush1.bf16.xpose.msra.mxu0 %v615
    %628 = vmatprep.subr.bf16.mxu0 0
    %629 = vmatpush1.bf16.xpose.msra.mxu0 %v618
    %630 = vmatprep.subr.bf16.mxu0 0
    %631 = vmatpush1.bf16.xpose.msra.mxu0 %v621
    %632 = vmatprep.subr.bf16.mxu0 0
    %633 = vmatpush1.bf16.xpose.msra.mxu0 %v624
    %634 = vmatprep.subr.bf16.mxu0 0
    %635 = vmatpush1.bf16.xpose.msra.mxu0 0
    %636 = vmatprep.subr.bf16.mxu0 0
    %637 = vmatpush1.bf16.xpose.msra.mxu0 0
    %638 = vmatprep.subr.bf16.mxu0 0
    %639 = vmatpush1.bf16.xpose.msra.mxu0 0
    %640 = vmatprep.subr.bf16.mxu0 0
    %641 = vmatpush1.bf16.xpose.msra.mxu0 0
    %642 = vmatprep.subr.bf16.mxu0 0
    %643 = vmatpush1.bf16.xpose.msra.mxu0 0
    %644 = vmatprep.subr.bf16.mxu0 0
    %645 = vmatpush1.bf16.xpose.msra.mxu0 0
    %646 = vmatprep.subr.bf16.mxu0 0
    %647 = vmatpush1.bf16.xpose.msra.mxu0 0
    %648 = vmatprep.subr.bf16.mxu0 0
    %649 = vmatpush1.bf16.xpose.msra.mxu0 0
    %650 = vmatprep.subr.bf16.mxu0 0
    %651 = vmatpush1.bf16.xpose.msra.mxu0 0
    %652 = vmatprep.subr.bf16.mxu0 0
    %653 = vmatpush1.bf16.xpose.msra.mxu0 0
    %654 = vmatprep.subr.bf16.mxu0 0
    %655 = vmatpush1.bf16.xpose.msra.mxu0 0
    %656 = vmatprep.subr.bf16.mxu0 0
    %657 = vmatpush1.bf16.xpose.msra.mxu0 0
    %658 = vmatprep.mubr.bf16.mxu0 0
    %659 = vmatmul.mubr.bf16.gmra.mrb[0].mxu0 %v612
    %v660 = vpop.f32.mrb[0].mxu0
    %v661 = vadd.f32 0.0, %v660
    %v662 = vpop.f32.mrb[0].mxu0
    %v663 = vpop.f32.mrb[0].mxu0
    %v664 = vadd.f32 0.0, %v663
    %v665 = vpop.f32.mrb[0].mxu0
    %666 = vdwg.mxu0
    %v667 = vmul.f32 %v661, 0.35355338
    %v668 = vmul.f32 %v664, 0.35355338
    %v669 = vsel %vm99, %v667, -inf
    %670 = vmax.xlane.f32.xlu0 %v669
    %v671 = vpop.xlane.xlu0 %670
    %v672 = vsel %vm99, %v668, -inf
    %673 = vmax.xlane.f32.xlu0 %v672
    %v674 = vpop.xlane.xlu0 %673
    %v675 = vsub.f32 %v667, %v671
    %v676 = vsub.f32 %v668, %v674
    %v677 = vmul.f32 %v675, 1.442695
    %v678 = vpow.pop %v677
    %v679 = vmul.f32 %v676, 1.442695
    %v680 = vpow.pop %v679
    %v682 = vsel %vm99, %v678, 0
    %v685 = vsel %vm99, %v680, 0
    %687 = vmatprep.subr.mxu0 0.0
    %688 = vmatpush1.msra.mxu0 %v536
    %689 = vmatprep.subr.mxu0 0.0
    %690 = vmatpush1.msra.mxu0 %v537
    %691 = vmatprep.subr.mxu0 0.0
    %692 = vmatpush1.msra.mxu0 %v538
    %693 = vmatprep.subr.mxu0 0.0
    %694 = vmatpush1.msra.mxu0 %v539
    %695 = vmatprep.subr.mxu0 0.0
    %696 = vmatpush1.msra.mxu0 %v540
    %697 = vmatprep.subr.mxu0 0.0
    %698 = vmatpush1.msra.mxu0 %v541
    %699 = vmatprep.subr.mxu0 0.0
    %700 = vmatpush1.msra.mxu0 %v542
    %701 = vmatprep.subr.mxu0 0.0
    %702 = vmatpush1.msra.mxu0 %v543
    %703 = vmatprep.subr.mxu0 0.0
    %704 = vmatpush1.msra.mxu0 0.0
    %705 = vmatprep.subr.mxu0 0.0
    %706 = vmatpush1.msra.mxu0 0.0
    %707 = vmatprep.subr.mxu0 0.0
    %708 = vmatpush1.msra.mxu0 0.0
    %709 = vmatprep.subr.mxu0 0.0
    %710 = vmatpush1.msra.mxu0 0.0
    %711 = vmatprep.subr.mxu0 0.0
    %712 = vmatpush1.msra.mxu0 0.0
    %713 = vmatprep.subr.mxu0 0.0
    %714 = vmatpush1.msra.mxu0 0.0
    %715 = vmatprep.subr.mxu0 0.0
    %716 = vmatpush1.msra.mxu0 0.0
    %717 = vmatprep.subr.mxu0 0.0
    %718 = vmatpush1.msra.mxu0 0.0
    %719 = vmatprep.subr.mxu0 0.0
    %720 = vmatpush1.msra.mxu0 0.0
    %721 = vmatprep.subr.mxu0 0.0
    %722 = vmatpush1.msra.mxu0 0.0
    %723 = vmatprep.subr.mxu0 0.0
    %724 = vmatpush1.msra.mxu0 0.0
    %725 = vmatprep.subr.mxu0 0.0
    %726 = vmatpush1.msra.mxu0 0.0
    %727 = vmatprep.subr.mxu0 0.0
    %728 = vmatpush1.msra.mxu0 0.0
    %729 = vmatprep.subr.mxu0 0.0
    %730 = vmatpush1.msra.mxu0 0.0
    %731 = vmatprep.subr.mxu0 0.0
    %732 = vmatpush1.msra.mxu0 0.0
    %733 = vmatprep.subr.mxu0 0.0
    %734 = vmatpush1.msra.mxu0 0.0
    %735 = vmatprep.subr.mxu0 0.0
    %736 = vmatpush1.msra.mxu0 0.0
    %737 = vmatprep.subr.mxu0 0.0
    %738 = vmatpush1.msra.mxu0 0.0
    %739 = vmatprep.subr.mxu0 0.0
    %740 = vmatpush1.msra.mxu0 0.0
    %741 = vmatprep.subr.mxu0 0.0
    %742 = vmatpush1.msra.mxu0 0.0
    %743 = vmatprep.subr.mxu0 0.0
    %744 = vmatpush1.msra.mxu0 0.0
    %745 = vmatprep.subr.mxu0 0.0
    %746 = vmatpush1.msra.mxu0 0.0
    %747 = vmatprep.subr.mxu0 0.0
    %748 = vmatpush1.msra.mxu0 0.0
    %749 = vmatprep.subr.mxu0 0.0
    %750 = vmatpush1.msra.mxu0 0.0
    %751 = vmatprep.mubr.f32.mxu0 0.0
    %752 = vmatmul.mubr.f32.gmra.mrb[0].mxu0 %v682
    %v753 = vpop.f32.mrb[0].mxu0
    %v754 = vadd.f32 0.0, %v753
    %v755 = vpop.f32.mrb[0].mxu0
    %756 = vmatprep.mubr.f32.mxu0 0.0
    %757 = vmatmul.mubr.f32.gmra.mrb[0].mxu0 %v685
    %v758 = vpop.f32.mrb[0].mxu0
    %v759 = vadd.f32 0.0, %v758
    %v760 = vpop.f32.mrb[0].mxu0
    %761 = vdwg.mxu0
    %v762 = vrcp.pop %v754
    %v763 = vrcp.pop %v759
    %vm764 = vcmask 64512
    %v766 = vsel %vm764, %v762, 0
    %v769 = vsel %vm764, %v763, 0
    %771 = vmatprep.subr.mxu0 0.0
    %772 = vmatpush1.msra.mxu0 %v560
    %773 = vmatprep.subr.mxu0 0.0
    %774 = vmatpush1.msra.mxu0 0.0
    %775 = vmatprep.subr.mxu0 0.0
    %776 = vmatpush1.msra.mxu0 0.0
    %777 = vmatprep.subr.mxu0 0.0
    %778 = vmatpush1.msra.mxu0 0.0
    %779 = vmatprep.subr.mxu0 0.0
    %780 = vmatpush1.msra.mxu0 0.0
    %781 = vmatprep.subr.mxu0 0.0
    %782 = vmatpush1.msra.mxu0 0.0
    %783 = vmatprep.subr.mxu0 0.0
    %784 = vmatpush1.msra.mxu0 0.0
    %785 = vmatprep.subr.mxu0 0.0
    %786 = vmatpush1.msra.mxu0 0.0
    %787 = vmatprep.subr.mxu0 0.0
    %788 = vmatpush1.msra.mxu0 0.0
    %789 = vmatprep.subr.mxu0 0.0
    %790 = vmatpush1.msra.mxu0 0.0
    %791 = vmatprep.subr.mxu0 0.0
    %792 = vmatpush1.msra.mxu0 0.0
    %793 = vmatprep.subr.mxu0 0.0
    %794 = vmatpush1.msra.mxu0 0.0
    %795 = vmatprep.subr.mxu0 0.0
    %796 = vmatpush1.msra.mxu0 0.0
    %797 = vmatprep.subr.mxu0 0.0
    %798 = vmatpush1.msra.mxu0 0.0
    %799 = vmatprep.subr.mxu0 0.0
    %800 = vmatpush1.msra.mxu0 0.0
    %801 = vmatprep.subr.mxu0 0.0
    %802 = vmatpush1.msra.mxu0 0.0
    %803 = vmatprep.subr.mxu0 0.0
    %804 = vmatpush1.msra.mxu0 0.0
    %805 = vmatprep.subr.mxu0 0.0
    %806 = vmatpush1.msra.mxu0 0.0
    %807 = vmatprep.subr.mxu0 0.0
    %808 = vmatpush1.msra.mxu0 0.0
    %809 = vmatprep.subr.mxu0 0.0
    %810 = vmatpush1.msra.mxu0 0.0
    %811 = vmatprep.subr.mxu0 0.0
    %812 = vmatpush1.msra.mxu0 0.0
    %813 = vmatprep.subr.mxu0 0.0
    %814 = vmatpush1.msra.mxu0 0.0
    %815 = vmatprep.subr.mxu0 0.0
    %816 = vmatpush1.msra.mxu0 0.0
    %817 = vmatprep.subr.mxu0 0.0
    %818 = vmatpush1.msra.mxu0 0.0
    %819 = vmatprep.subr.mxu0 0.0
    %820 = vmatpush1.msra.mxu0 0.0
    %821 = vmatprep.subr.mxu0 0.0
    %822 = vmatpush1.msra.mxu0 0.0
    %823 = vmatprep.subr.mxu0 0.0
    %824 = vmatpush1.msra.mxu0 0.0
    %825 = vmatprep.subr.mxu0 0.0
    %826 = vmatpush1.msra.mxu0 0.0
    %827 = vmatprep.subr.mxu0 0.0
    %828 = vmatpush1.msra.mxu0 0.0
    %829 = vmatprep.subr.mxu0 0.0
    %830 = vmatpush1.msra.mxu0 0.0
    %831 = vmatprep.subr.mxu0 0.0
    %832 = vmatpush1.msra.mxu0 0.0
    %833 = vmatprep.subr.mxu0 0.0
    %834 = vmatpush1.msra.mxu0 0.0
    %835 = vmatprep.mubr.f32.mxu0 0.0
    %836 = vmatmul.mubr.f32.gmra.mrb[0].mxu0 %v766
    %v837 = vpop.f32.mrb[0].mxu0
    %v838 = vadd.f32 0.0, %v837
    %v839 = vpop.f32.mrb[0].mxu0
    %840 = vmatprep.mubr.f32.mxu0 0.0
    %841 = vmatmul.mubr.f32.gmra.mrb[0].mxu0 %v769
    %v842 = vpop.f32.mrb[0].mxu0
    %v843 = vadd.f32 0.0, %v842
    %v844 = vpop.f32.mrb[0].mxu0
    %845 = vdwg.mxu0
    %v846 = vmul.f32 %v678, %v838
    %v847 = vmul.f32 %v680, %v843
    %v848 = vpack.c.bf16 %v847, %v846
    %v850 = vsel %vm99, %v848, 0
    %852 = vmatprep.subr.bf16.mxu0 0
    %853 = vmatpush1.bf16.msra.mxu0 %v606
    %854 = vmatprep.subr.bf16.mxu0 0
    %855 = vmatpush1.bf16.msra.mxu0 %v607
    %856 = vmatprep.subr.bf16.mxu0 0
    %857 = vmatpush1.bf16.msra.mxu0 %v608
    %858 = vmatprep.subr.bf16.mxu0 0
    %859 = vmatpush1.bf16.msra.mxu0 %v609
    %860 = vmatprep.subr.bf16.mxu0 0
    %861 = vmatpush1.bf16.msra.mxu0 0
    %862 = vmatprep.subr.bf16.mxu0 0
    %863 = vmatpush1.bf16.msra.mxu0 0
    %864 = vmatprep.subr.bf16.mxu0 0
    %865 = vmatpush1.bf16.msra.mxu0 0
    %866 = vmatprep.subr.bf16.mxu0 0
    %867 = vmatpush1.bf16.msra.mxu0 0
    %868 = vmatprep.subr.bf16.mxu0 0
    %869 = vmatpush1.bf16.msra.mxu0 0
    %870 = vmatprep.subr.bf16.mxu0 0
    %871 = vmatpush1.bf16.msra.mxu0 0
    %872 = vmatprep.subr.bf16.mxu0 0
    %873 = vmatpush1.bf16.msra.mxu0 0
    %874 = vmatprep.subr.bf16.mxu0 0
    %875 = vmatpush1.bf16.msra.mxu0 0
    %876 = vmatprep.subr.bf16.mxu0 0
    %877 = vmatpush1.bf16.msra.mxu0 0
    %878 = vmatprep.subr.bf16.mxu0 0
    %879 = vmatpush1.bf16.msra.mxu0 0
    %880 = vmatprep.subr.bf16.mxu0 0
    %881 = vmatpush1.bf16.msra.mxu0 0
    %882 = vmatprep.subr.bf16.mxu0 0
    %883 = vmatpush1.bf16.msra.mxu0 0
    %884 = vmatprep.mubr.bf16.mxu0 0
    %885 = vmatmul.mubr.bf16.gmra.mrb[0].mxu0 %v850
    %v886 = vpop.f32.mrb[0].mxu0
    %v887 = vadd.f32 0.0, %v886
    %v888 = vpop.f32.mrb[0].mxu0
    %v889 = vpop.f32.mrb[0].mxu0
    %v890 = vadd.f32 0.0, %v889
    %v891 = vpop.f32.mrb[0].mxu0
    %892 = vdwg.mxu0
    %v894 = vsel %vm99, %v846, 0
    %v897 = vsel %vm99, %v847, 0
    %899 = vmatprep.subr.mxu0 0.0
    %900 = vmatpush1.msra.mxu0 %v562
    %901 = vmatprep.subr.mxu0 0.0
    %902 = vmatpush1.msra.mxu0 %v563
    %903 = vmatprep.subr.mxu0 0.0
    %904 = vmatpush1.msra.mxu0 %v564
    %905 = vmatprep.subr.mxu0 0.0
    %906 = vmatpush1.msra.mxu0 %v565
    %907 = vmatprep.subr.mxu0 0.0
    %908 = vmatpush1.msra.mxu0 %v566
    %909 = vmatprep.subr.mxu0 0.0
    %910 = vmatpush1.msra.mxu0 %v567
    %911 = vmatprep.subr.mxu0 0.0
    %912 = vmatpush1.msra.mxu0 %v568
    %913 = vmatprep.subr.mxu0 0.0
    %914 = vmatpush1.msra.mxu0 %v569
    %915 = vmatprep.subr.mxu0 0.0
    %916 = vmatpush1.msra.mxu0 0.0
    %917 = vmatprep.subr.mxu0 0.0
    %918 = vmatpush1.msra.mxu0 0.0
    %919 = vmatprep.subr.mxu0 0.0
    %920 = vmatpush1.msra.mxu0 0.0
    %921 = vmatprep.subr.mxu0 0.0
    %922 = vmatpush1.msra.mxu0 0.0
    %923 = vmatprep.subr.mxu0 0.0
    %924 = vmatpush1.msra.mxu0 0.0
    %925 = vmatprep.subr.mxu0 0.0
    %926 = vmatpush1.msra.mxu0 0.0
    %927 = vmatprep.subr.mxu0 0.0
    %928 = vmatpush1.msra.mxu0 0.0
    %929 = vmatprep.subr.mxu0 0.0
    %930 = vmatpush1.msra.mxu0 0.0
    %931 = vmatprep.subr.mxu0 0.0
    %932 = vmatpush1.msra.mxu0 0.0
    %933 = vmatprep.subr.mxu0 0.0
    %934 = vmatpush1.msra.mxu0 0.0
    %935 = vmatprep.subr.mxu0 0.0
    %936 = vmatpush1.msra.mxu0 0.0
    %937 = vmatprep.subr.mxu0 0.0
    %938 = vmatpush1.msra.mxu0 0.0
    %939 = vmatprep.subr.mxu0 0.0
    %940 = vmatpush1.msra.mxu0 0.0
    %941 = vmatprep.subr.mxu0 0.0
    %942 = vmatpush1.msra.mxu0 0.0
    %943 = vmatprep.subr.mxu0 0.0
    %944 = vmatpush1.msra.mxu0 0.0
    %945 = vmatprep.subr.mxu0 0.0
    %946 = vmatpush1.msra.mxu0 0.0
    %947 = vmatprep.subr.mxu0 0.0
    %948 = vmatpush1.msra.mxu0 0.0
    %949 = vmatprep.subr.mxu0 0.0
    %950 = vmatpush1.msra.mxu0 0.0
    %951 = vmatprep.subr.mxu0 0.0
    %952 = vmatpush1.msra.mxu0 0.0
    %953 = vmatprep.subr.mxu0 0.0
    %954 = vmatpush1.msra.mxu0 0.0
    %955 = vmatprep.subr.mxu0 0.0
    %956 = vmatpush1.msra.mxu0 0.0
    %957 = vmatprep.subr.mxu0 0.0
    %958 = vmatpush1.msra.mxu0 0.0
    %959 = vmatprep.subr.mxu0 0.0
    %960 = vmatpush1.msra.mxu0 0.0
    %961 = vmatprep.subr.mxu0 0.0
    %962 = vmatpush1.msra.mxu0 0.0
    %963 = vmatprep.mubr.f32.mxu0 0.0
    %964 = vmatmul.mubr.f32.gmra.mrb[0].mxu0 %v894
    %v965 = vpop.f32.mrb[0].mxu0
    %v966 = vadd.f32 0.0, %v965
    %v967 = vpop.f32.mrb[0].mxu0
    %968 = vmatprep.mubr.f32.mxu0 0.0
    %969 = vmatmul.mubr.f32.gmra.mrb[0].mxu0 %v897
    %v970 = vpop.f32.mrb[0].mxu0
    %v971 = vadd.f32 0.0, %v970
    %v972 = vpop.f32.mrb[0].mxu0
    %973 = vdwg.mxu0
    %974 = vst.msk [vmem:[#allocation2] sm:$0xff] %vm99, %v887
    %975 = vst.msk [vmem:[#allocation2 + $0x8] sm:$0xff] %vm99, %v890
    %976 = vst [vmem:[#allocation7] sm:$0xff] %v966
    %977 = vst [vmem:[#allocation7 + $0x8] sm:$0xff] %v971
    %v978 = vmul.f32 %v413, %v520
    %v979 = vmul.f32 %v416, %v521
    %v980 = vmul.f32 %v413, %v522
    %v981 = vmul.f32 %v416, %v523
    %v982 = vmul.f32 %v413, %v524
    %v983 = vmul.f32 %v416, %v525
    %v984 = vmul.f32 %v413, %v526
    %v985 = vmul.f32 %v416, %v527
    %v986 = vmul.f32 %v413, %v528
    %v987 = vmul.f32 %v416, %v529
    %v988 = vmul.f32 %v413, %v530
    %v989 = vmul.f32 %v416, %v531
    %v990 = vmul.f32 %v413, %v532
    %v991 = vmul.f32 %v416, %v533
    %v992 = vmul.f32 %v413, %v534
    %v993 = vmul.f32 %v416, %v535
    %v994 = vpack.c.bf16 %v979, %v978
    %v995 = vpack.c.bf16 %v981, %v980
    %v996 = vpack.c.bf16 %v983, %v982
    %v997 = vpack.c.bf16 %v985, %v984
    %v998 = vpack.c.bf16 %v987, %v986
    %v999 = vpack.c.bf16 %v989, %v988
    %v1000 = vpack.c.bf16 %v991, %v990
    %v1001 = vpack.c.bf16 %v993, %v992
    %v1002 = vmul.f32 %v498, %v520
    %v1003 = vmul.f32 %v501, %v521
    %v1004 = vmul.f32 %v498, %v522
    %v1005 = vmul.f32 %v501, %v523
    %v1006 = vmul.f32 %v498, %v524
    %v1007 = vmul.f32 %v501, %v525
    %v1008 = vmul.f32 %v498, %v526
    %v1009 = vmul.f32 %v501, %v527
    %v1010 = vmul.f32 %v498, %v528
    %v1011 = vmul.f32 %v501, %v529
    %v1012 = vmul.f32 %v498, %v530
    %v1013 = vmul.f32 %v501, %v531
    %v1014 = vmul.f32 %v498, %v532
    %v1015 = vmul.f32 %v501, %v533
    %v1016 = vmul.f32 %v498, %v534
    %v1017 = vmul.f32 %v501, %v535
    %v1018 = vpack.c.bf16 %v1003, %v1002
    %v1019 = vpack.c.bf16 %v1005, %v1004
    %v1020 = vpack.c.bf16 %v1007, %v1006
    %v1021 = vpack.c.bf16 %v1009, %v1008
    %v1022 = vpack.c.bf16 %v1011, %v1010
    %v1023 = vpack.c.bf16 %v1013, %v1012
    %v1024 = vpack.c.bf16 %v1015, %v1014
    %v1025 = vpack.c.bf16 %v1017, %v1016
    %v1026 = vpack.c.bf16 %v336, %v336
    %v1028 = vsel %vm175, %v1026, 0
    %v1031 = vsel %vm175, %v994, 0
    %v1034 = vsel %vm175, %v995, 0
    %v1037 = vsel %vm175, %v996, 0
    %v1040 = vsel %vm175, %v997, 0
    %v1043 = vsel %vm175, %v998, 0
    %v1046 = vsel %vm175, %v999, 0
    %v1049 = vsel %vm175, %v1000, 0
    %v1052 = vsel %vm175, %v1001, 0
    %1054 = vmatprep.subr.bf16.mxu0 0
    %1055 = vmatpush1.bf16.xpose.msra.mxu0 %v1031
    %1056 = vmatprep.subr.bf16.mxu0 0
    %1057 = vmatpush1.bf16.xpose.msra.mxu0 %v1034
    %1058 = vmatprep.subr.bf16.mxu0 0
    %1059 = vmatpush1.bf16.xpose.msra.mxu0 %v1037
    %1060 = vmatprep.subr.bf16.mxu0 0
    %1061 = vmatpush1.bf16.xpose.msra.mxu0 %v1040
    %1062 = vmatprep.subr.bf16.mxu0 0
    %1063 = vmatpush1.bf16.xpose.msra.mxu0 %v1043
    %1064 = vmatprep.subr.bf16.mxu0 0
    %1065 = vmatpush1.bf16.xpose.msra.mxu0 %v1046
    %1066 = vmatprep.subr.bf16.mxu0 0
    %1067 = vmatpush1.bf16.xpose.msra.mxu0 %v1049
    %1068 = vmatprep.subr.bf16.mxu0 0
    %1069 = vmatpush1.bf16.xpose.msra.mxu0 %v1052
    %1070 = vmatprep.subr.bf16.mxu0 0
    %1071 = vmatpush1.bf16.xpose.msra.mxu0 0
    %1072 = vmatprep.subr.bf16.mxu0 0
    %1073 = vmatpush1.bf16.xpose.msra.mxu0 0
    %1074 = vmatprep.subr.bf16.mxu0 0
    %1075 = vmatpush1.bf16.xpose.msra.mxu0 0
    %1076 = vmatprep.subr.bf16.mxu0 0
    %1077 = vmatpush1.bf16.xpose.msra.mxu0 0
    %1078 = vmatprep.subr.bf16.mxu0 0
    %1079 = vmatpush1.bf16.xpose.msra.mxu0 0
    %1080 = vmatprep.subr.bf16.mxu0 0
    %1081 = vmatpush1.bf16.xpose.msra.mxu0 0
    %1082 = vmatprep.subr.bf16.mxu0 0
    %1083 = vmatpush1.bf16.xpose.msra.mxu0 0
    %1084 = vmatprep.subr.bf16.mxu0 0
    %1085 = vmatpush1.bf16.xpose.msra.mxu0 0
    %1086 = vmatprep.mubr.bf16.mxu0 0
    %1087 = vmatmul.mubr.bf16.gmra.mrb[0].mxu0 %v1028
    %v1088 = vpop.f32.mrb[0].mxu0
    %v1089 = vadd.f32 0.0, %v1088
    %v1090 = vpop.f32.mrb[0].mxu0
    %v1091 = vpop.f32.mrb[0].mxu0
    %v1092 = vpop.f32.mrb[0].mxu0
    %1093 = vdwg.mxu0
    %v1094 = vmul.f32 %v1089, 0.5
    %1095 = vmax.xlane.f32.xlu0 %v1094
    %v1096 = vpop.xlane.xlu0 %1095
    %v1097 = vsub.f32 %v1094, %v1096
    %v1098 = vmul.f32 %v1097, 1.442695
    %v1099 = vpow.pop %v1098
    %1100 = vmatprep.subr.mxu0 0.0
    %1101 = vmatpush1.msra.mxu0 %v544
    %1102 = vmatprep.subr.mxu0 0.0
    %1103 = vmatpush1.msra.mxu0 %v545
    %1104 = vmatprep.subr.mxu0 0.0
    %1105 = vmatpush1.msra.mxu0 %v546
    %1106 = vmatprep.subr.mxu0 0.0
    %1107 = vmatpush1.msra.mxu0 %v547
    %1108 = vmatprep.subr.mxu0 0.0
    %1109 = vmatpush1.msra.mxu0 %v548
    %1110 = vmatprep.subr.mxu0 0.0
    %1111 = vmatpush1.msra.mxu0 %v549
    %1112 = vmatprep.subr.mxu0 0.0
    %1113 = vmatpush1.msra.mxu0 %v550
    %1114 = vmatprep.subr.mxu0 0.0
    %1115 = vmatpush1.msra.mxu0 %v551
    %1116 = vmatprep.subr.mxu0 0.0
    %1117 = vmatpush1.msra.mxu0 %v552
    %1118 = vmatprep.subr.mxu0 0.0
    %1119 = vmatpush1.msra.mxu0 %v553
    %1120 = vmatprep.subr.mxu0 0.0
    %1121 = vmatpush1.msra.mxu0 %v554
    %1122 = vmatprep.subr.mxu0 0.0
    %1123 = vmatpush1.msra.mxu0 %v555
    %1124 = vmatprep.subr.mxu0 0.0
    %1125 = vmatpush1.msra.mxu0 %v556
    %1126 = vmatprep.subr.mxu0 0.0
    %1127 = vmatpush1.msra.mxu0 %v557
    %1128 = vmatprep.subr.mxu0 0.0
    %1129 = vmatpush1.msra.mxu0 %v558
    %1130 = vmatprep.subr.mxu0 0.0
    %1131 = vmatpush1.msra.mxu0 %v559
    %1132 = vmatprep.subr.mxu0 0.0
    %1133 = vmatpush1.msra.mxu0 0.0
    %1134 = vmatprep.subr.mxu0 0.0
    %1135 = vmatpush1.msra.mxu0 0.0
    %1136 = vmatprep.subr.mxu0 0.0
    %1137 = vmatpush1.msra.mxu0 0.0
    %1138 = vmatprep.subr.mxu0 0.0
    %1139 = vmatpush1.msra.mxu0 0.0
    %1140 = vmatprep.subr.mxu0 0.0
    %1141 = vmatpush1.msra.mxu0 0.0
    %1142 = vmatprep.subr.mxu0 0.0
    %1143 = vmatpush1.msra.mxu0 0.0
    %1144 = vmatprep.subr.mxu0 0.0
    %1145 = vmatpush1.msra.mxu0 0.0
    %1146 = vmatprep.subr.mxu0 0.0
    %1147 = vmatpush1.msra.mxu0 0.0
    %1148 = vmatprep.subr.mxu0 0.0
    %1149 = vmatpush1.msra.mxu0 0.0
    %1150 = vmatprep.subr.mxu0 0.0
    %1151 = vmatpush1.msra.mxu0 0.0
    %1152 = vmatprep.subr.mxu0 0.0
    %1153 = vmatpush1.msra.mxu0 0.0
    %1154 = vmatprep.subr.mxu0 0.0
    %1155 = vmatpush1.msra.mxu0 0.0
    %1156 = vmatprep.subr.mxu0 0.0
    %1157 = vmatpush1.msra.mxu0 0.0
    %1158 = vmatprep.subr.mxu0 0.0
    %1159 = vmatpush1.msra.mxu0 0.0
    %1160 = vmatprep.subr.mxu0 0.0
    %1161 = vmatpush1.msra.mxu0 0.0
    %1162 = vmatprep.subr.mxu0 0.0
    %1163 = vmatpush1.msra.mxu0 0.0
    %1164 = vmatprep.mubr.f32.mxu0 0.0
    %1165 = vmatmul.mubr.f32.gmra.mrb[0].mxu0 %v1099
    %v1166 = vpop.f32.mrb[0].mxu0
    %v1167 = vadd.f32 0.0, %v1166
    %v1168 = vpop.f32.mrb[0].mxu0
    %1169 = vdwg.mxu0
    %v1170 = vrcp.pop %v1167
    %v1172 = vsel %vm764, %v1170, 0
    %1174 = vmatprep.subr.mxu0 0.0
    %1175 = vmatpush1.msra.mxu0 %v561
    %1176 = vmatprep.subr.mxu0 0.0
    %1177 = vmatpush1.msra.mxu0 0.0
    %1178 = vmatprep.subr.mxu0 0.0
    %1179 = vmatpush1.msra.mxu0 0.0
    %1180 = vmatprep.subr.mxu0 0.0
    %1181 = vmatpush1.msra.mxu0 0.0
    %1182 = vmatprep.subr.mxu0 0.0
    %1183 = vmatpush1.msra.mxu0 0.0
    %1184 = vmatprep.subr.mxu0 0.0
    %1185 = vmatpush1.msra.mxu0 0.0
    %1186 = vmatprep.subr.mxu0 0.0
    %1187 = vmatpush1.msra.mxu0 0.0
    %1188 = vmatprep.subr.mxu0 0.0
    %1189 = vmatpush1.msra.mxu0 0.0
    %1190 = vmatprep.subr.mxu0 0.0
    %1191 = vmatpush1.msra.mxu0 0.0
    %1192 = vmatprep.subr.mxu0 0.0
    %1193 = vmatpush1.msra.mxu0 0.0
    %1194 = vmatprep.subr.mxu0 0.0
    %1195 = vmatpush1.msra.mxu0 0.0
    %1196 = vmatprep.subr.mxu0 0.0
    %1197 = vmatpush1.msra.mxu0 0.0
    %1198 = vmatprep.subr.mxu0 0.0
    %1199 = vmatpush1.msra.mxu0 0.0
    %1200 = vmatprep.subr.mxu0 0.0
    %1201 = vmatpush1.msra.mxu0 0.0
    %1202 = vmatprep.subr.mxu0 0.0
    %1203 = vmatpush1.msra.mxu0 0.0
    %1204 = vmatprep.subr.mxu0 0.0
    %1205 = vmatpush1.msra.mxu0 0.0
    %1206 = vmatprep.subr.mxu0 0.0
    %1207 = vmatpush1.msra.mxu0 0.0
    %1208 = vmatprep.subr.mxu0 0.0
    %1209 = vmatpush1.msra.mxu0 0.0
    %1210 = vmatprep.subr.mxu0 0.0
    %1211 = vmatpush1.msra.mxu0 0.0
    %1212 = vmatprep.subr.mxu0 0.0
    %1213 = vmatpush1.msra.mxu0 0.0
    %1214 = vmatprep.subr.mxu0 0.0
    %1215 = vmatpush1.msra.mxu0 0.0
    %1216 = vmatprep.subr.mxu0 0.0
    %1217 = vmatpush1.msra.mxu0 0.0
    %1218 = vmatprep.subr.mxu0 0.0
    %1219 = vmatpush1.msra.mxu0 0.0
    %1220 = vmatprep.subr.mxu0 0.0
    %1221 = vmatpush1.msra.mxu0 0.0
    %1222 = vmatprep.subr.mxu0 0.0
    %1223 = vmatpush1.msra.mxu0 0.0
    %1224 = vmatprep.subr.mxu0 0.0
    %1225 = vmatpush1.msra.mxu0 0.0
    %1226 = vmatprep.subr.mxu0 0.0
    %1227 = vmatpush1.msra.mxu0 0.0
    %1228 = vmatprep.subr.mxu0 0.0
    %1229 = vmatpush1.msra.mxu0 0.0
    %1230 = vmatprep.subr.mxu0 0.0
    %1231 = vmatpush1.msra.mxu0 0.0
    %1232 = vmatprep.subr.mxu0 0.0
    %1233 = vmatpush1.msra.mxu0 0.0
    %1234 = vmatprep.subr.mxu0 0.0
    %1235 = vmatpush1.msra.mxu0 0.0
    %1236 = vmatprep.subr.mxu0 0.0
    %1237 = vmatpush1.msra.mxu0 0.0
    %1238 = vmatprep.mubr.f32.mxu0 0.0
    %1239 = vmatmul.mubr.f32.gmra.mrb[0].mxu0 %v1172
    %v1240 = vpop.f32.mrb[0].mxu0
    %v1241 = vadd.f32 0.0, %v1240
    %v1242 = vpop.f32.mrb[0].mxu0
    %1243 = vdwg.mxu0
    %v1244 = vmul.f32 %v1099, %v1241
    %v1245 = vpack.c.bf16 %v1244, %v1244
    %1246 = vmatprep.subr.bf16.mxu0 0
    %1247 = vmatpush1.bf16.msra.mxu0 %v1018
    %1248 = vmatprep.subr.bf16.mxu0 0
    %1249 = vmatpush1.bf16.msra.mxu0 %v1019
    %1250 = vmatprep.subr.bf16.mxu0 0
    %1251 = vmatpush1.bf16.msra.mxu0 %v1020
    %1252 = vmatprep.subr.bf16.mxu0 0
    %1253 = vmatpush1.bf16.msra.mxu0 %v1021
    %1254 = vmatprep.subr.bf16.mxu0 0
    %1255 = vmatpush1.bf16.msra.mxu0 %v1022
    %1256 = vmatprep.subr.bf16.mxu0 0
    %1257 = vmatpush1.bf16.msra.mxu0 %v1023
    %1258 = vmatprep.subr.bf16.mxu0 0
    %1259 = vmatpush1.bf16.msra.mxu0 %v1024
    %1260 = vmatprep.subr.bf16.mxu0 0
    %1261 = vmatpush1.bf16.msra.mxu0 %v1025
    %1262 = vmatprep.subr.bf16.mxu0 0
    %1263 = vmatpush1.bf16.msra.mxu0 0
    %1264 = vmatprep.subr.bf16.mxu0 0
    %1265 = vmatpush1.bf16.msra.mxu0 0
    %1266 = vmatprep.subr.bf16.mxu0 0
    %1267 = vmatpush1.bf16.msra.mxu0 0
    %1268 = vmatprep.subr.bf16.mxu0 0
    %1269 = vmatpush1.bf16.msra.mxu0 0
    %1270 = vmatprep.subr.bf16.mxu0 0
    %1271 = vmatpush1.bf16.msra.mxu0 0
    %1272 = vmatprep.subr.bf16.mxu0 0
    %1273 = vmatpush1.bf16.msra.mxu0 0
    %1274 = vmatprep.subr.bf16.mxu0 0
    %1275 = vmatpush1.bf16.msra.mxu0 0
    %1276 = vmatprep.subr.bf16.mxu0 0
    %1277 = vmatpush1.bf16.msra.mxu0 0
    %1278 = vmatprep.mubr.bf16.mxu0 0
    %1279 = vmatmul.mubr.bf16.gmra.mrb[0].mxu0 %v1245
    %v1280 = vpop.f32.mrb[0].mxu0
    %v1281 = vadd.f32 0.0, %v1280
    %v1282 = vpop.f32.mrb[0].mxu0
    %v1283 = vpop.f32.mrb[0].mxu0
    %v1284 = vpop.f32.mrb[0].mxu0
    %1285 = vdwg.mxu0
    %1286 = vmatprep.subr.mxu0 0.0
    %1287 = vmatpush1.msra.mxu0 %v570
    %1288 = vmatprep.subr.mxu0 0.0
    %1289 = vmatpush1.msra.mxu0 %v571
    %1290 = vmatprep.subr.mxu0 0.0
    %1291 = vmatpush1.msra.mxu0 %v572
    %1292 = vmatprep.subr.mxu0 0.0
    %1293 = vmatpush1.msra.mxu0 %v573
    %1294 = vmatprep.subr.mxu0 0.0
    %1295 = vmatpush1.msra.mxu0 %v574
    %1296 = vmatprep.subr.mxu0 0.0
    %1297 = vmatpush1.msra.mxu0 %v575
    %1298 = vmatprep.subr.mxu0 0.0
    %1299 = vmatpush1.msra.mxu0 %v576
    %1300 = vmatprep.subr.mxu0 0.0
    %1301 = vmatpush1.msra.mxu0 %v577
    %1302 = vmatprep.subr.mxu0 0.0
    %1303 = vmatpush1.msra.mxu0 %v578
    %1304 = vmatprep.subr.mxu0 0.0
    %1305 = vmatpush1.msra.mxu0 %v579
    %1306 = vmatprep.subr.mxu0 0.0
    %1307 = vmatpush1.msra.mxu0 %v580
    %1308 = vmatprep.subr.mxu0 0.0
    %1309 = vmatpush1.msra.mxu0 %v581
    %1310 = vmatprep.subr.mxu0 0.0
    %1311 = vmatpush1.msra.mxu0 %v582
    %1312 = vmatprep.subr.mxu0 0.0
    %1313 = vmatpush1.msra.mxu0 %v583
    %1314 = vmatprep.subr.mxu0 0.0
    %1315 = vmatpush1.msra.mxu0 %v584
    %1316 = vmatprep.subr.mxu0 0.0
    %1317 = vmatpush1.msra.mxu0 %v585
    %1318 = vmatprep.subr.mxu0 0.0
    %1319 = vmatpush1.msra.mxu0 0.0
    %1320 = vmatprep.subr.mxu0 0.0
    %1321 = vmatpush1.msra.mxu0 0.0
    %1322 = vmatprep.subr.mxu0 0.0
    %1323 = vmatpush1.msra.mxu0 0.0
    %1324 = vmatprep.subr.mxu0 0.0
    %1325 = vmatpush1.msra.mxu0 0.0
    %1326 = vmatprep.subr.mxu0 0.0
    %1327 = vmatpush1.msra.mxu0 0.0
    %1328 = vmatprep.subr.mxu0 0.0
    %1329 = vmatpush1.msra.mxu0 0.0
    %1330 = vmatprep.subr.mxu0 0.0
    %1331 = vmatpush1.msra.mxu0 0.0
    %1332 = vmatprep.subr.mxu0 0.0
    %1333 = vmatpush1.msra.mxu0 0.0
    %1334 = vmatprep.subr.mxu0 0.0
    %1335 = vmatpush1.msra.mxu0 0.0
    %1336 = vmatprep.subr.mxu0 0.0
    %1337 = vmatpush1.msra.mxu0 0.0
    %1338 = vmatprep.subr.mxu0 0.0
    %1339 = vmatpush1.msra.mxu0 0.0
    %1340 = vmatprep.subr.mxu0 0.0
    %1341 = vmatpush1.msra.mxu0 0.0
    %1342 = vmatprep.subr.mxu0 0.0
    %1343 = vmatpush1.msra.mxu0 0.0
    %1344 = vmatprep.subr.mxu0 0.0
    %1345 = vmatpush1.msra.mxu0 0.0
    %1346 = vmatprep.subr.mxu0 0.0
    %1347 = vmatpush1.msra.mxu0 0.0
    %1348 = vmatprep.subr.mxu0 0.0
    %1349 = vmatpush1.msra.mxu0 0.0
    %1350 = vmatprep.mubr.f32.mxu0 0.0
    %1351 = vmatmul.mubr.f32.gmra.mrb[0].mxu0 %v1244
    %v1352 = vpop.f32.mrb[0].mxu0
    %v1353 = vadd.f32 0.0, %v1352
    %v1354 = vpop.f32.mrb[0].mxu0
    %1355 = vdwg.mxu0
    %1356 = vst.msk [vmem:[#allocation3] sm:$0xff] %vm175, %v1281
    %1357 = vst [vmem:[#allocation7 + $0x10] sm:$0xff] %v1353
    %v1358 = vmul.f32 %v217, %v512
    %v1359 = vmul.f32 %v217, %v513
    %v1360 = vmul.f32 %v217, %v514
    %v1361 = vmul.f32 %v217, %v515
    %v1362 = vmul.f32 %v217, %v516
    %v1363 = vmul.f32 %v217, %v517
    %v1364 = vmul.f32 %v217, %v518
    %v1365 = vmul.f32 %v217, %v519
    %v1366 = vpack.c.bf16 %v1359, %v1358
    %v1367 = vpack.c.bf16 %v1361, %v1360
    %v1368 = vpack.c.bf16 %v1363, %v1362
    %v1369 = vpack.c.bf16 %v1365, %v1364
    %v1370 = vmul.f32 %v278, %v512
    %v1371 = vmul.f32 %v278, %v513
    %v1372 = vmul.f32 %v278, %v514
    %v1373 = vmul.f32 %v278, %v515
    %v1374 = vmul.f32 %v278, %v516
    %v1375 = vmul.f32 %v278, %v517
    %v1376 = vmul.f32 %v278, %v518
    %v1377 = vmul.f32 %v278, %v519
    %v1378 = vpack.c.bf16 %v1371, %v1370
    %v1379 = vpack.c.bf16 %v1373, %v1372
    %v1380 = vpack.c.bf16 %v1375, %v1374
    %v1381 = vpack.c.bf16 %v1377, %v1376
    %v1382 = vpack.c.bf16 %v152, %v149
    %v1384 = vsel %vm99, %v1382, 0
    %v1387 = vsel %vm99, %v1366, 0
    %v1390 = vsel %vm99, %v1367, 0
    %v1393 = vsel %vm99, %v1368, 0
    %v1396 = vsel %vm99, %v1369, 0
    %1398 = vmatprep.subr.bf16.mxu0 0
    %1399 = vmatpush1.bf16.xpose.msra.mxu0 %v1387
    %1400 = vmatprep.subr.bf16.mxu0 0
    %1401 = vmatpush1.bf16.xpose.msra.mxu0 %v1390
    %1402 = vmatprep.subr.bf16.mxu0 0
    %1403 = vmatpush1.bf16.xpose.msra.mxu0 %v1393
    %1404 = vmatprep.subr.bf16.mxu0 0
    %1405 = vmatpush1.bf16.xpose.msra.mxu0 %v1396
    %1406 = vmatprep.subr.bf16.mxu0 0
    %1407 = vmatpush1.bf16.xpose.msra.mxu0 0
    %1408 = vmatprep.subr.bf16.mxu0 0
    %1409 = vmatpush1.bf16.xpose.msra.mxu0 0
    %1410 = vmatprep.subr.bf16.mxu0 0
    %1411 = vmatpush1.bf16.xpose.msra.mxu0 0
    %1412 = vmatprep.subr.bf16.mxu0 0
    %1413 = vmatpush1.bf16.xpose.msra.mxu0 0
    %1414 = vmatprep.subr.bf16.mxu0 0
    %1415 = vmatpush1.bf16.xpose.msra.mxu0 0
    %1416 = vmatprep.subr.bf16.mxu0 0
    %1417 = vmatpush1.bf16.xpose.msra.mxu0 0
    %1418 = vmatprep.subr.bf16.mxu0 0
    %1419 = vmatpush1.bf16.xpose.msra.mxu0 0
    %1420 = vmatprep.subr.bf16.mxu0 0
    %1421 = vmatpush1.bf16.xpose.msra.mxu0 0
    %1422 = vmatprep.subr.bf16.mxu0 0
    %1423 = vmatpush1.bf16.xpose.msra.mxu0 0
    %1424 = vmatprep.subr.bf16.mxu0 0
    %1425 = vmatpush1.bf16.xpose.msra.mxu0 0
    %1426 = vmatprep.subr.bf16.mxu0 0
    %1427 = vmatpush1.bf16.xpose.msra.mxu0 0
    %1428 = vmatprep.subr.bf16.mxu0 0
    %1429 = vmatpush1.bf16.xpose.msra.mxu0 0
    %1430 = vmatprep.mubr.bf16.mxu0 0
    %1431 = vmatmul.mubr.bf16.gmra.mrb[0].mxu0 %v1384
    %v1432 = vpop.f32.mrb[0].mxu0
    %v1433 = vadd.f32 0.0, %v1432
    %v1434 = vpop.f32.mrb[0].mxu0
    %v1435 = vpop.f32.mrb[0].mxu0
    %v1436 = vadd.f32 0.0, %v1435
    %v1437 = vpop.f32.mrb[0].mxu0
    %1438 = vdwg.mxu0
    %v1439 = vmul.f32 %v1433, 0.35355338
    %v1440 = vmul.f32 %v1436, 0.35355338
    %v1441 = vsel %vm99, %v1439, -inf
    %1442 = vmax.xlane.f32.xlu0 %v1441
    %v1443 = vpop.xlane.xlu0 %1442
    %v1444 = vsel %vm99, %v1440, -inf
    %1445 = vmax.xlane.f32.xlu0 %v1444
    %v1446 = vpop.xlane.xlu0 %1445
    %v1447 = vsub.f32 %v1439, %v1443
    %v1448 = vsub.f32 %v1440, %v1446
    %v1449 = vmul.f32 %v1447, 1.442695
    %v1450 = vpow.pop %v1449
    %v1451 = vmul.f32 %v1448, 1.442695
    %v1452 = vpow.pop %v1451
    %v1454 = vsel %vm99, %v1450, 0
    %v1457 = vsel %vm99, %v1452, 0
    %1459 = vmatprep.subr.mxu0 0.0
    %1460 = vmatpush1.msra.mxu0 %v536
    %1461 = vmatprep.subr.mxu0 0.0
    %1462 = vmatpush1.msra.mxu0 %v537
    %1463 = vmatprep.subr.mxu0 0.0
    %1464 = vmatpush1.msra.mxu0 %v538
    %1465 = vmatprep.subr.mxu0 0.0
    %1466 = vmatpush1.msra.mxu0 %v539
    %1467 = vmatprep.subr.mxu0 0.0
    %1468 = vmatpush1.msra.mxu0 %v540
    %1469 = vmatprep.subr.mxu0 0.0
    %1470 = vmatpush1.msra.mxu0 %v541
    %1471 = vmatprep.subr.mxu0 0.0
    %1472 = vmatpush1.msra.mxu0 %v542
    %1473 = vmatprep.subr.mxu0 0.0
    %1474 = vmatpush1.msra.mxu0 %v543
    %1475 = vmatprep.subr.mxu0 0.0
    %1476 = vmatpush1.msra.mxu0 0.0
    %1477 = vmatprep.subr.mxu0 0.0
    %1478 = vmatpush1.msra.mxu0 0.0
    %1479 = vmatprep.subr.mxu0 0.0
    %1480 = vmatpush1.msra.mxu0 0.0
    %1481 = vmatprep.subr.mxu0 0.0
    %1482 = vmatpush1.msra.mxu0 0.0
    %1483 = vmatprep.subr.mxu0 0.0
    %1484 = vmatpush1.msra.mxu0 0.0
    %1485 = vmatprep.subr.mxu0 0.0
    %1486 = vmatpush1.msra.mxu0 0.0
    %1487 = vmatprep.subr.mxu0 0.0
    %1488 = vmatpush1.msra.mxu0 0.0
    %1489 = vmatprep.subr.mxu0 0.0
    %1490 = vmatpush1.msra.mxu0 0.0
    %1491 = vmatprep.subr.mxu0 0.0
    %1492 = vmatpush1.msra.mxu0 0.0
    %1493 = vmatprep.subr.mxu0 0.0
    %1494 = vmatpush1.msra.mxu0 0.0
    %1495 = vmatprep.subr.mxu0 0.0
    %1496 = vmatpush1.msra.mxu0 0.0
    %1497 = vmatprep.subr.mxu0 0.0
    %1498 = vmatpush1.msra.mxu0 0.0
    %1499 = vmatprep.subr.mxu0 0.0
    %1500 = vmatpush1.msra.mxu0 0.0
    %1501 = vmatprep.subr.mxu0 0.0
    %1502 = vmatpush1.msra.mxu0 0.0
    %1503 = vmatprep.subr.mxu0 0.0
    %1504 = vmatpush1.msra.mxu0 0.0
    %1505 = vmatprep.subr.mxu0 0.0
    %1506 = vmatpush1.msra.mxu0 0.0
    %1507 = vmatprep.subr.mxu0 0.0
    %1508 = vmatpush1.msra.mxu0 0.0
    %1509 = vmatprep.subr.mxu0 0.0
    %1510 = vmatpush1.msra.mxu0 0.0
    %1511 = vmatprep.subr.mxu0 0.0
    %1512 = vmatpush1.msra.mxu0 0.0
    %1513 = vmatprep.subr.mxu0 0.0
    %1514 = vmatpush1.msra.mxu0 0.0
    %1515 = vmatprep.subr.mxu0 0.0
    %1516 = vmatpush1.msra.mxu0 0.0
    %1517 = vmatprep.subr.mxu0 0.0
    %1518 = vmatpush1.msra.mxu0 0.0
    %1519 = vmatprep.subr.mxu0 0.0
    %1520 = vmatpush1.msra.mxu0 0.0
    %1521 = vmatprep.subr.mxu0 0.0
    %1522 = vmatpush1.msra.mxu0 0.0
    %1523 = vmatprep.mubr.f32.mxu0 0.0
    %1524 = vmatmul.mubr.f32.gmra.mrb[0].mxu0 %v1454
    %v1525 = vpop.f32.mrb[0].mxu0
    %v1526 = vadd.f32 0.0, %v1525
    %v1527 = vpop.f32.mrb[0].mxu0
    %1528 = vmatprep.mubr.f32.mxu0 0.0
    %1529 = vmatmul.mubr.f32.gmra.mrb[0].mxu0 %v1457
    %v1530 = vpop.f32.mrb[0].mxu0
    %v1531 = vadd.f32 0.0, %v1530
    %v1532 = vpop.f32.mrb[0].mxu0
    %1533 = vdwg.mxu0
    %v1534 = vrcp.pop %v1526
    %v1535 = vrcp.pop %v1531
    %v1537 = vsel %vm764, %v1534, 0
    %v1540 = vsel %vm764, %v1535, 0
    %1542 = vmatprep.subr.mxu0 0.0
    %1543 = vmatpush1.msra.mxu0 %v560
    %1544 = vmatprep.subr.mxu0 0.0
    %1545 = vmatpush1.msra.mxu0 0.0
    %1546 = vmatprep.subr.mxu0 0.0
    %1547 = vmatpush1.msra.mxu0 0.0
    %1548 = vmatprep.subr.mxu0 0.0
    %1549 = vmatpush1.msra.mxu0 0.0
    %1550 = vmatprep.subr.mxu0 0.0
    %1551 = vmatpush1.msra.mxu0 0.0
    %1552 = vmatprep.subr.mxu0 0.0
    %1553 = vmatpush1.msra.mxu0 0.0
    %1554 = vmatprep.subr.mxu0 0.0
    %1555 = vmatpush1.msra.mxu0 0.0
    %1556 = vmatprep.subr.mxu0 0.0
    %1557 = vmatpush1.msra.mxu0 0.0
    %1558 = vmatprep.subr.mxu0 0.0
    %1559 = vmatpush1.msra.mxu0 0.0
    %1560 = vmatprep.subr.mxu0 0.0
    %1561 = vmatpush1.msra.mxu0 0.0
    %1562 = vmatprep.subr.mxu0 0.0
    %1563 = vmatpush1.msra.mxu0 0.0
    %1564 = vmatprep.subr.mxu0 0.0
    %1565 = vmatpush1.msra.mxu0 0.0
    %1566 = vmatprep.subr.mxu0 0.0
    %1567 = vmatpush1.msra.mxu0 0.0
    %1568 = vmatprep.subr.mxu0 0.0
    %1569 = vmatpush1.msra.mxu0 0.0
    %1570 = vmatprep.subr.mxu0 0.0
    %1571 = vmatpush1.msra.mxu0 0.0
    %1572 = vmatprep.subr.mxu0 0.0
    %1573 = vmatpush1.msra.mxu0 0.0
    %1574 = vmatprep.subr.mxu0 0.0
    %1575 = vmatpush1.msra.mxu0 0.0
    %1576 = vmatprep.subr.mxu0 0.0
    %1577 = vmatpush1.msra.mxu0 0.0
    %1578 = vmatprep.subr.mxu0 0.0
    %1579 = vmatpush1.msra.mxu0 0.0
    %1580 = vmatprep.subr.mxu0 0.0
    %1581 = vmatpush1.msra.mxu0 0.0
    %1582 = vmatprep.subr.mxu0 0.0
    %1583 = vmatpush1.msra.mxu0 0.0
    %1584 = vmatprep.subr.mxu0 0.0
    %1585 = vmatpush1.msra.mxu0 0.0
    %1586 = vmatprep.subr.mxu0 0.0
    %1587 = vmatpush1.msra.mxu0 0.0
    %1588 = vmatprep.subr.mxu0 0.0
    %1589 = vmatpush1.msra.mxu0 0.0
    %1590 = vmatprep.subr.mxu0 0.0
    %1591 = vmatpush1.msra.mxu0 0.0
    %1592 = vmatprep.subr.mxu0 0.0
    %1593 = vmatpush1.msra.mxu0 0.0
    %1594 = vmatprep.subr.mxu0 0.0
    %1595 = vmatpush1.msra.mxu0 0.0
    %1596 = vmatprep.subr.mxu0 0.0
    %1597 = vmatpush1.msra.mxu0 0.0
    %1598 = vmatprep.subr.mxu0 0.0
    %1599 = vmatpush1.msra.mxu0 0.0
    %1600 = vmatprep.subr.mxu0 0.0
    %1601 = vmatpush1.msra.mxu0 0.0
    %1602 = vmatprep.subr.mxu0 0.0
    %1603 = vmatpush1.msra.mxu0 0.0
    %1604 = vmatprep.subr.mxu0 0.0
    %1605 = vmatpush1.msra.mxu0 0.0
    %1606 = vmatprep.mubr.f32.mxu0 0.0
    %1607 = vmatmul.mubr.f32.gmra.mrb[0].mxu0 %v1537
    %v1608 = vpop.f32.mrb[0].mxu0
    %v1609 = vadd.f32 0.0, %v1608
    %v1610 = vpop.f32.mrb[0].mxu0
    %1611 = vmatprep.mubr.f32.mxu0 0.0
    %1612 = vmatmul.mubr.f32.gmra.mrb[0].mxu0 %v1540
    %v1613 = vpop.f32.mrb[0].mxu0
    %v1614 = vadd.f32 0.0, %v1613
    %v1615 = vpop.f32.mrb[0].mxu0
    %1616 = vdwg.mxu0
    %v1617 = vmul.f32 %v1450, %v1609
    %v1618 = vmul.f32 %v1452, %v1614
    %v1619 = vpack.c.bf16 %v1618, %v1617
    %v1621 = vsel %vm99, %v1619, 0
    %1623 = vmatprep.subr.bf16.mxu0 0
    %1624 = vmatpush1.bf16.msra.mxu0 %v1378
    %1625 = vmatprep.subr.bf16.mxu0 0
    %1626 = vmatpush1.bf16.msra.mxu0 %v1379
    %1627 = vmatprep.subr.bf16.mxu0 0
    %1628 = vmatpush1.bf16.msra.mxu0 %v1380
    %1629 = vmatprep.subr.bf16.mxu0 0
    %1630 = vmatpush1.bf16.msra.mxu0 %v1381
    %1631 = vmatprep.subr.bf16.mxu0 0
    %1632 = vmatpush1.bf16.msra.mxu0 0
    %1633 = vmatprep.subr.bf16.mxu0 0
    %1634 = vmatpush1.bf16.msra.mxu0 0
    %1635 = vmatprep.subr.bf16.mxu0 0
    %1636 = vmatpush1.bf16.msra.mxu0 0
    %1637 = vmatprep.subr.bf16.mxu0 0
    %1638 = vmatpush1.bf16.msra.mxu0 0
    %1639 = vmatprep.subr.bf16.mxu0 0
    %1640 = vmatpush1.bf16.msra.mxu0 0
    %1641 = vmatprep.subr.bf16.mxu0 0
    %1642 = vmatpush1.bf16.msra.mxu0 0
    %1643 = vmatprep.subr.bf16.mxu0 0
    %1644 = vmatpush1.bf16.msra.mxu0 0
    %1645 = vmatprep.subr.bf16.mxu0 0
    %1646 = vmatpush1.bf16.msra.mxu0 0
    %1647 = vmatprep.subr.bf16.mxu0 0
    %1648 = vmatpush1.bf16.msra.mxu0 0
    %1649 = vmatprep.subr.bf16.mxu0 0
    %1650 = vmatpush1.bf16.msra.mxu0 0
    %1651 = vmatprep.subr.bf16.mxu0 0
    %1652 = vmatpush1.bf16.msra.mxu0 0
    %1653 = vmatprep.subr.bf16.mxu0 0
    %1654 = vmatpush1.bf16.msra.mxu0 0
    %1655 = vmatprep.mubr.bf16.mxu0 0
    %1656 = vmatmul.mubr.bf16.gmra.mrb[0].mxu0 %v1621
    %v1657 = vpop.f32.mrb[0].mxu0
    %v1658 = vadd.f32 0.0, %v1657
    %v1659 = vpop.f32.mrb[0].mxu0
    %v1660 = vpop.f32.mrb[0].mxu0
    %v1661 = vadd.f32 0.0, %v1660
    %v1662 = vpop.f32.mrb[0].mxu0
    %1663 = vdwg.mxu0
    %v1665 = vsel %vm99, %v1617, 0
    %v1668 = vsel %vm99, %v1618, 0
    %1670 = vmatprep.subr.mxu0 0.0
    %1671 = vmatpush1.msra.mxu0 %v562
    %1672 = vmatprep.subr.mxu0 0.0
    %1673 = vmatpush1.msra.mxu0 %v563
    %1674 = vmatprep.subr.mxu0 0.0
    %1675 = vmatpush1.msra.mxu0 %v564
    %1676 = vmatprep.subr.mxu0 0.0
    %1677 = vmatpush1.msra.mxu0 %v565
    %1678 = vmatprep.subr.mxu0 0.0
    %1679 = vmatpush1.msra.mxu0 %v566
    %1680 = vmatprep.subr.mxu0 0.0
    %1681 = vmatpush1.msra.mxu0 %v567
    %1682 = vmatprep.subr.mxu0 0.0
    %1683 = vmatpush1.msra.mxu0 %v568
    %1684 = vmatprep.subr.mxu0 0.0
    %1685 = vmatpush1.msra.mxu0 %v569
    %1686 = vmatprep.subr.mxu0 0.0
    %1687 = vmatpush1.msra.mxu0 0.0
    %1688 = vmatprep.subr.mxu0 0.0
    %1689 = vmatpush1.msra.mxu0 0.0
    %1690 = vmatprep.subr.mxu0 0.0
    %1691 = vmatpush1.msra.mxu0 0.0
    %1692 = vmatprep.subr.mxu0 0.0
    %1693 = vmatpush1.msra.mxu0 0.0
    %1694 = vmatprep.subr.mxu0 0.0
    %1695 = vmatpush1.msra.mxu0 0.0
    %1696 = vmatprep.subr.mxu0 0.0
    %1697 = vmatpush1.msra.mxu0 0.0
    %1698 = vmatprep.subr.mxu0 0.0
    %1699 = vmatpush1.msra.mxu0 0.0
    %1700 = vmatprep.subr.mxu0 0.0
    %1701 = vmatpush1.msra.mxu0 0.0
    %1702 = vmatprep.subr.mxu0 0.0
    %1703 = vmatpush1.msra.mxu0 0.0
    %1704 = vmatprep.subr.mxu0 0.0
    %1705 = vmatpush1.msra.mxu0 0.0
    %1706 = vmatprep.subr.mxu0 0.0
    %1707 = vmatpush1.msra.mxu0 0.0
    %1708 = vmatprep.subr.mxu0 0.0
    %1709 = vmatpush1.msra.mxu0 0.0
    %1710 = vmatprep.subr.mxu0 0.0
    %1711 = vmatpush1.msra.mxu0 0.0
    %1712 = vmatprep.subr.mxu0 0.0
    %1713 = vmatpush1.msra.mxu0 0.0
    %1714 = vmatprep.subr.mxu0 0.0
    %1715 = vmatpush1.msra.mxu0 0.0
    %1716 = vmatprep.subr.mxu0 0.0
    %1717 = vmatpush1.msra.mxu0 0.0
    %1718 = vmatprep.subr.mxu0 0.0
    %1719 = vmatpush1.msra.mxu0 0.0
    %1720 = vmatprep.subr.mxu0 0.0
    %1721 = vmatpush1.msra.mxu0 0.0
    %1722 = vmatprep.subr.mxu0 0.0
    %1723 = vmatpush1.msra.mxu0 0.0
    %1724 = vmatprep.subr.mxu0 0.0
    %1725 = vmatpush1.msra.mxu0 0.0
    %1726 = vmatprep.subr.mxu0 0.0
    %1727 = vmatpush1.msra.mxu0 0.0
    %1728 = vmatprep.subr.mxu0 0.0
    %1729 = vmatpush1.msra.mxu0 0.0
    %1730 = vmatprep.subr.mxu0 0.0
    %1731 = vmatpush1.msra.mxu0 0.0
    %1732 = vmatprep.subr.mxu0 0.0
    %1733 = vmatpush1.msra.mxu0 0.0
    %1734 = vmatprep.mubr.f32.mxu0 0.0
    %1735 = vmatmul.mubr.f32.gmra.mrb[0].mxu0 %v1665
    %v1736 = vpop.f32.mrb[0].mxu0
    %v1737 = vadd.f32 0.0, %v1736
    %v1738 = vpop.f32.mrb[0].mxu0
    %1739 = vmatprep.mubr.f32.mxu0 0.0
    %1740 = vmatmul.mubr.f32.gmra.mrb[0].mxu0 %v1668
    %v1741 = vpop.f32.mrb[0].mxu0
    %v1742 = vadd.f32 0.0, %v1741
    %v1743 = vpop.f32.mrb[0].mxu0
    %1744 = vdwg.mxu0
    %1745 = vst.msk [vmem:[#allocation2 + $0x10] sm:$0xff] %vm99, %v1658
    %1746 = vst.msk [vmem:[#allocation2 + $0x18] sm:$0xff] %vm99, %v1661
    %1747 = vst [vmem:[#allocation7 + $0x20] sm:$0xff] %v1737
    %1748 = vst [vmem:[#allocation7 + $0x28] sm:$0xff] %v1742
    %v1749 = vmul.f32 %v421, %v520
    %v1750 = vmul.f32 %v424, %v521
    %v1751 = vmul.f32 %v421, %v522
    %v1752 = vmul.f32 %v424, %v523
    %v1753 = vmul.f32 %v421, %v524
    %v1754 = vmul.f32 %v424, %v525
    %v1755 = vmul.f32 %v421, %v526
    %v1756 = vmul.f32 %v424, %v527
    %v1757 = vmul.f32 %v421, %v528
    %v1758 = vmul.f32 %v424, %v529
    %v1759 = vmul.f32 %v421, %v530
    %v1760 = vmul.f32 %v424, %v531
    %v1761 = vmul.f32 %v421, %v532
    %v1762 = vmul.f32 %v424, %v533
    %v1763 = vmul.f32 %v421, %v534
    %v1764 = vmul.f32 %v424, %v535
    %v1765 = vpack.c.bf16 %v1750, %v1749
    %v1766 = vpack.c.bf16 %v1752, %v1751
    %v1767 = vpack.c.bf16 %v1754, %v1753
    %v1768 = vpack.c.bf16 %v1756, %v1755
    %v1769 = vpack.c.bf16 %v1758, %v1757
    %v1770 = vpack.c.bf16 %v1760, %v1759
    %v1771 = vpack.c.bf16 %v1762, %v1761
    %v1772 = vpack.c.bf16 %v1764, %v1763
    %v1773 = vmul.f32 %v506, %v520
    %v1774 = vmul.f32 %v509, %v521
    %v1775 = vmul.f32 %v506, %v522
    %v1776 = vmul.f32 %v509, %v523
    %v1777 = vmul.f32 %v506, %v524
    %v1778 = vmul.f32 %v509, %v525
    %v1779 = vmul.f32 %v506, %v526
    %v1780 = vmul.f32 %v509, %v527
    %v1781 = vmul.f32 %v506, %v528
    %v1782 = vmul.f32 %v509, %v529
    %v1783 = vmul.f32 %v506, %v530
    %v1784 = vmul.f32 %v509, %v531
    %v1785 = vmul.f32 %v506, %v532
    %v1786 = vmul.f32 %v509, %v533
    %v1787 = vmul.f32 %v506, %v534
    %v1788 = vmul.f32 %v509, %v535
    %v1789 = vpack.c.bf16 %v1774, %v1773
    %v1790 = vpack.c.bf16 %v1776, %v1775
    %v1791 = vpack.c.bf16 %v1778, %v1777
    %v1792 = vpack.c.bf16 %v1780, %v1779
    %v1793 = vpack.c.bf16 %v1782, %v1781
    %v1794 = vpack.c.bf16 %v1784, %v1783
    %v1795 = vpack.c.bf16 %v1786, %v1785
    %v1796 = vpack.c.bf16 %v1788, %v1787
    %v1797 = vpack.c.bf16 %v339, %v339
    %v1799 = vsel %vm175, %v1797, 0
    %v1802 = vsel %vm175, %v1765, 0
    %v1805 = vsel %vm175, %v1766, 0
    %v1808 = vsel %vm175, %v1767, 0
    %v1811 = vsel %vm175, %v1768, 0
    %v1814 = vsel %vm175, %v1769, 0
    %v1817 = vsel %vm175, %v1770, 0
    %v1820 = vsel %vm175, %v1771, 0
    %v1823 = vsel %vm175, %v1772, 0
    %1825 = vmatprep.subr.bf16.mxu0 0
    %1826 = vmatpush1.bf16.xpose.msra.mxu0 %v1802
    %1827 = vmatprep.subr.bf16.mxu0 0
    %1828 = vmatpush1.bf16.xpose.msra.mxu0 %v1805
    %1829 = vmatprep.subr.bf16.mxu0 0
    %1830 = vmatpush1.bf16.xpose.msra.mxu0 %v1808
    %1831 = vmatprep.subr.bf16.mxu0 0
    %1832 = vmatpush1.bf16.xpose.msra.mxu0 %v1811
    %1833 = vmatprep.subr.bf16.mxu0 0
    %1834 = vmatpush1.bf16.xpose.msra.mxu0 %v1814
    %1835 = vmatprep.subr.bf16.mxu0 0
    %1836 = vmatpush1.bf16.xpose.msra.mxu0 %v1817
    %1837 = vmatprep.subr.bf16.mxu0 0
    %1838 = vmatpush1.bf16.xpose.msra.mxu0 %v1820
    %1839 = vmatprep.subr.bf16.mxu0 0
    %1840 = vmatpush1.bf16.xpose.msra.mxu0 %v1823
    %1841 = vmatprep.subr.bf16.mxu0 0
    %1842 = vmatpush1.bf16.xpose.msra.mxu0 0
    %1843 = vmatprep.subr.bf16.mxu0 0
    %1844 = vmatpush1.bf16.xpose.msra.mxu0 0
    %1845 = vmatprep.subr.bf16.mxu0 0
    %1846 = vmatpush1.bf16.xpose.msra.mxu0 0
    %1847 = vmatprep.subr.bf16.mxu0 0
    %1848 = vmatpush1.bf16.xpose.msra.mxu0 0
    %1849 = vmatprep.subr.bf16.mxu0 0
    %1850 = vmatpush1.bf16.xpose.msra.mxu0 0
    %1851 = vmatprep.subr.bf16.mxu0 0
    %1852 = vmatpush1.bf16.xpose.msra.mxu0 0
    %1853 = vmatprep.subr.bf16.mxu0 0
    %1854 = vmatpush1.bf16.xpose.msra.mxu0 0
    %1855 = vmatprep.subr.bf16.mxu0 0
    %1856 = vmatpush1.bf16.xpose.msra.mxu0 0
    %1857 = vmatprep.mubr.bf16.mxu0 0
    %1858 = vmatmul.mubr.bf16.gmra.mrb[0].mxu0 %v1799
    %v1859 = vpop.f32.mrb[0].mxu0
    %v1860 = vadd.f32 0.0, %v1859
    %v1861 = vpop.f32.mrb[0].mxu0
    %v1862 = vpop.f32.mrb[0].mxu0
    %v1863 = vpop.f32.mrb[0].mxu0
    %1864 = vdwg.mxu0
    %v1865 = vmul.f32 %v1860, 0.5
    %1866 = vmax.xlane.f32.xlu0 %v1865
    %v1867 = vpop.xlane.xlu0 %1866
    %v1868 = vsub.f32 %v1865, %v1867
    %v1869 = vmul.f32 %v1868, 1.442695
    %v1870 = vpow.pop %v1869
    %1871 = vmatprep.subr.mxu0 0.0
    %1872 = vmatpush1.msra.mxu0 %v544
    %1873 = vmatprep.subr.mxu0 0.0
    %1874 = vmatpush1.msra.mxu0 %v545
    %1875 = vmatprep.subr.mxu0 0.0
    %1876 = vmatpush1.msra.mxu0 %v546
    %1877 = vmatprep.subr.mxu0 0.0
    %1878 = vmatpush1.msra.mxu0 %v547
    %1879 = vmatprep.subr.mxu0 0.0
    %1880 = vmatpush1.msra.mxu0 %v548
    %1881 = vmatprep.subr.mxu0 0.0
    %1882 = vmatpush1.msra.mxu0 %v549
    %1883 = vmatprep.subr.mxu0 0.0
    %1884 = vmatpush1.msra.mxu0 %v550
    %1885 = vmatprep.subr.mxu0 0.0
    %1886 = vmatpush1.msra.mxu0 %v551
    %1887 = vmatprep.subr.mxu0 0.0
    %1888 = vmatpush1.msra.mxu0 %v552
    %1889 = vmatprep.subr.mxu0 0.0
    %1890 = vmatpush1.msra.mxu0 %v553
    %1891 = vmatprep.subr.mxu0 0.0
    %1892 = vmatpush1.msra.mxu0 %v554
    %1893 = vmatprep.subr.mxu0 0.0
    %1894 = vmatpush1.msra.mxu0 %v555
    %1895 = vmatprep.subr.mxu0 0.0
    %1896 = vmatpush1.msra.mxu0 %v556
    %1897 = vmatprep.subr.mxu0 0.0
    %1898 = vmatpush1.msra.mxu0 %v557
    %1899 = vmatprep.subr.mxu0 0.0
    %1900 = vmatpush1.msra.mxu0 %v558
    %1901 = vmatprep.subr.mxu0 0.0
    %1902 = vmatpush1.msra.mxu0 %v559
    %1903 = vmatprep.subr.mxu0 0.0
    %1904 = vmatpush1.msra.mxu0 0.0
    %1905 = vmatprep.subr.mxu0 0.0
    %1906 = vmatpush1.msra.mxu0 0.0
    %1907 = vmatprep.subr.mxu0 0.0
    %1908 = vmatpush1.msra.mxu0 0.0
    %1909 = vmatprep.subr.mxu0 0.0
    %1910 = vmatpush1.msra.mxu0 0.0
    %1911 = vmatprep.subr.mxu0 0.0
    %1912 = vmatpush1.msra.mxu0 0.0
    %1913 = vmatprep.subr.mxu0 0.0
    %1914 = vmatpush1.msra.mxu0 0.0
    %1915 = vmatprep.subr.mxu0 0.0
    %1916 = vmatpush1.msra.mxu0 0.0
    %1917 = vmatprep.subr.mxu0 0.0
    %1918 = vmatpush1.msra.mxu0 0.0
    %1919 = vmatprep.subr.mxu0 0.0
    %1920 = vmatpush1.msra.mxu0 0.0
    %1921 = vmatprep.subr.mxu0 0.0
    %1922 = vmatpush1.msra.mxu0 0.0
    %1923 = vmatprep.subr.mxu0 0.0
    %1924 = vmatpush1.msra.mxu0 0.0
    %1925 = vmatprep.subr.mxu0 0.0
    %1926 = vmatpush1.msra.mxu0 0.0
    %1927 = vmatprep.subr.mxu0 0.0
    %1928 = vmatpush1.msra.mxu0 0.0
    %1929 = vmatprep.subr.mxu0 0.0
    %1930 = vmatpush1.msra.mxu0 0.0
    %1931 = vmatprep.subr.mxu0 0.0
    %1932 = vmatpush1.msra.mxu0 0.0
    %1933 = vmatprep.subr.mxu0 0.0
    %1934 = vmatpush1.msra.mxu0 0.0
    %1935 = vmatprep.mubr.f32.mxu0 0.0
    %1936 = vmatmul.mubr.f32.gmra.mrb[0].mxu0 %v1870
    %v1937 = vpop.f32.mrb[0].mxu0
    %v1938 = vadd.f32 0.0, %v1937
    %v1939 = vpop.f32.mrb[0].mxu0
    %1940 = vdwg.mxu0
    %v1941 = vrcp.pop %v1938
    %v1943 = vsel %vm764, %v1941, 0
    %1945 = vmatprep.subr.mxu0 0.0
    %1946 = vmatpush1.msra.mxu0 %v561
    %1947 = vmatprep.subr.mxu0 0.0
    %1948 = vmatpush1.msra.mxu0 0.0
    %1949 = vmatprep.subr.mxu0 0.0
    %1950 = vmatpush1.msra.mxu0 0.0
    %1951 = vmatprep.subr.mxu0 0.0
    %1952 = vmatpush1.msra.mxu0 0.0
    %1953 = vmatprep.subr.mxu0 0.0
    %1954 = vmatpush1.msra.mxu0 0.0
    %1955 = vmatprep.subr.mxu0 0.0
    %1956 = vmatpush1.msra.mxu0 0.0
    %1957 = vmatprep.subr.mxu0 0.0
    %1958 = vmatpush1.msra.mxu0 0.0
    %1959 = vmatprep.subr.mxu0 0.0
    %1960 = vmatpush1.msra.mxu0 0.0
    %1961 = vmatprep.subr.mxu0 0.0
    %1962 = vmatpush1.msra.mxu0 0.0
    %1963 = vmatprep.subr.mxu0 0.0
    %1964 = vmatpush1.msra.mxu0 0.0
    %1965 = vmatprep.subr.mxu0 0.0
    %1966 = vmatpush1.msra.mxu0 0.0
    %1967 = vmatprep.subr.mxu0 0.0
    %1968 = vmatpush1.msra.mxu0 0.0
    %1969 = vmatprep.subr.mxu0 0.0
    %1970 = vmatpush1.msra.mxu0 0.0
    %1971 = vmatprep.subr.mxu0 0.0
    %1972 = vmatpush1.msra.mxu0 0.0
    %1973 = vmatprep.subr.mxu0 0.0
    %1974 = vmatpush1.msra.mxu0 0.0
    %1975 = vmatprep.subr.mxu0 0.0
    %1976 = vmatpush1.msra.mxu0 0.0
    %1977 = vmatprep.subr.mxu0 0.0
    %1978 = vmatpush1.msra.mxu0 0.0
    %1979 = vmatprep.subr.mxu0 0.0
    %1980 = vmatpush1.msra.mxu0 0.0
    %1981 = vmatprep.subr.mxu0 0.0
    %1982 = vmatpush1.msra.mxu0 0.0
    %1983 = vmatprep.subr.mxu0 0.0
    %1984 = vmatpush1.msra.mxu0 0.0
    %1985 = vmatprep.subr.mxu0 0.0
    %1986 = vmatpush1.msra.mxu0 0.0
    %1987 = vmatprep.subr.mxu0 0.0
    %1988 = vmatpush1.msra.mxu0 0.0
    %1989 = vmatprep.subr.mxu0 0.0
    %1990 = vmatpush1.msra.mxu0 0.0
    %1991 = vmatprep.subr.mxu0 0.0
    %1992 = vmatpush1.msra.mxu0 0.0
    %1993 = vmatprep.subr.mxu0 0.0
    %1994 = vmatpush1.msra.mxu0 0.0
    %1995 = vmatprep.subr.mxu0 0.0
    %1996 = vmatpush1.msra.mxu0 0.0
    %1997 = vmatprep.subr.mxu0 0.0
    %1998 = vmatpush1.msra.mxu0 0.0
    %1999 = vmatprep.subr.mxu0 0.0
    %2000 = vmatpush1.msra.mxu0 0.0
    %2001 = vmatprep.subr.mxu0 0.0
    %2002 = vmatpush1.msra.mxu0 0.0
    %2003 = vmatprep.subr.mxu0 0.0
    %2004 = vmatpush1.msra.mxu0 0.0
    %2005 = vmatprep.subr.mxu0 0.0
    %2006 = vmatpush1.msra.mxu0 0.0
    %2007 = vmatprep.subr.mxu0 0.0
    %2008 = vmatpush1.msra.mxu0 0.0
    %2009 = vmatprep.mubr.f32.mxu0 0.0
    %2010 = vmatmul.mubr.f32.gmra.mrb[0].mxu0 %v1943
    %v2011 = vpop.f32.mrb[0].mxu0
    %v2012 = vadd.f32 0.0, %v2011
    %v2013 = vpop.f32.mrb[0].mxu0
    %2014 = vdwg.mxu0
    %v2015 = vmul.f32 %v1870, %v2012
    %v2016 = vpack.c.bf16 %v2015, %v2015
    %2017 = vmatprep.subr.bf16.mxu0 0
    %2018 = vmatpush1.bf16.msra.mxu0 %v1789
    %2019 = vmatprep.subr.bf16.mxu0 0
    %2020 = vmatpush1.bf16.msra.mxu0 %v1790
    %2021 = vmatprep.subr.bf16.mxu0 0
    %2022 = vmatpush1.bf16.msra.mxu0 %v1791
    %2023 = vmatprep.subr.bf16.mxu0 0
    %2024 = vmatpush1.bf16.msra.mxu0 %v1792
    %2025 = vmatprep.subr.bf16.mxu0 0
    %2026 = vmatpush1.bf16.msra.mxu0 %v1793
    %2027 = vmatprep.subr.bf16.mxu0 0
    %2028 = vmatpush1.bf16.msra.mxu0 %v1794
    %2029 = vmatprep.subr.bf16.mxu0 0
    %2030 = vmatpush1.bf16.msra.mxu0 %v1795
    %2031 = vmatprep.subr.bf16.mxu0 0
    %2032 = vmatpush1.bf16.msra.mxu0 %v1796
    %2033 = vmatprep.subr.bf16.mxu0 0
    %2034 = vmatpush1.bf16.msra.mxu0 0
    %2035 = vmatprep.subr.bf16.mxu0 0
    %2036 = vmatpush1.bf16.msra.mxu0 0
    %2037 = vmatprep.subr.bf16.mxu0 0
    %2038 = vmatpush1.bf16.msra.mxu0 0
    %2039 = vmatprep.subr.bf16.mxu0 0
    %2040 = vmatpush1.bf16.msra.mxu0 0
    %2041 = vmatprep.subr.bf16.mxu0 0
    %2042 = vmatpush1.bf16.msra.mxu0 0
    %2043 = vmatprep.subr.bf16.mxu0 0
    %2044 = vmatpush1.bf16.msra.mxu0 0
    %2045 = vmatprep.subr.bf16.mxu0 0
    %2046 = vmatpush1.bf16.msra.mxu0 0
    %2047 = vmatprep.subr.bf16.mxu0 0
    %2048 = vmatpush1.bf16.msra.mxu0 0
    %2049 = vmatprep.mubr.bf16.mxu0 0
    %2050 = vmatmul.mubr.bf16.gmra.mrb[0].mxu0 %v2016
    %v2051 = vpop.f32.mrb[0].mxu0
    %v2052 = vadd.f32 0.0, %v2051
    %v2053 = vpop.f32.mrb[0].mxu0
    %v2054 = vpop.f32.mrb[0].mxu0
    %v2055 = vpop.f32.mrb[0].mxu0
    %2056 = vdwg.mxu0
    %2057 = vmatprep.subr.mxu0 0.0
    %2058 = vmatpush1.msra.mxu0 %v570
    %2059 = vmatprep.subr.mxu0 0.0
    %2060 = vmatpush1.msra.mxu0 %v571
    %2061 = vmatprep.subr.mxu0 0.0
    %2062 = vmatpush1.msra.mxu0 %v572
    %2063 = vmatprep.subr.mxu0 0.0
    %2064 = vmatpush1.msra.mxu0 %v573
    %2065 = vmatprep.subr.mxu0 0.0
    %2066 = vmatpush1.msra.mxu0 %v574
    %2067 = vmatprep.subr.mxu0 0.0
    %2068 = vmatpush1.msra.mxu0 %v575
    %2069 = vmatprep.subr.mxu0 0.0
    %2070 = vmatpush1.msra.mxu0 %v576
    %2071 = vmatprep.subr.mxu0 0.0
    %2072 = vmatpush1.msra.mxu0 %v577
    %2073 = vmatprep.subr.mxu0 0.0
    %2074 = vmatpush1.msra.mxu0 %v578
    %2075 = vmatprep.subr.mxu0 0.0
    %2076 = vmatpush1.msra.mxu0 %v579
    %2077 = vmatprep.subr.mxu0 0.0
    %2078 = vmatpush1.msra.mxu0 %v580
    %2079 = vmatprep.subr.mxu0 0.0
    %2080 = vmatpush1.msra.mxu0 %v581
    %2081 = vmatprep.subr.mxu0 0.0
    %2082 = vmatpush1.msra.mxu0 %v582
    %2083 = vmatprep.subr.mxu0 0.0
    %2084 = vmatpush1.msra.mxu0 %v583
    %2085 = vmatprep.subr.mxu0 0.0
    %2086 = vmatpush1.msra.mxu0 %v584
    %2087 = vmatprep.subr.mxu0 0.0
    %2088 = vmatpush1.msra.mxu0 %v585
    %2089 = vmatprep.subr.mxu0 0.0
    %2090 = vmatpush1.msra.mxu0 0.0
    %2091 = vmatprep.subr.mxu0 0.0
    %2092 = vmatpush1.msra.mxu0 0.0
    %2093 = vmatprep.subr.mxu0 0.0
    %2094 = vmatpush1.msra.mxu0 0.0
    %2095 = vmatprep.subr.mxu0 0.0
    %2096 = vmatpush1.msra.mxu0 0.0
    %2097 = vmatprep.subr.mxu0 0.0
    %2098 = vmatpush1.msra.mxu0 0.0
    %2099 = vmatprep.subr.mxu0 0.0
    %2100 = vmatpush1.msra.mxu0 0.0
    %2101 = vmatprep.subr.mxu0 0.0
    %2102 = vmatpush1.msra.mxu0 0.0
    %2103 = vmatprep.subr.mxu0 0.0
    %2104 = vmatpush1.msra.mxu0 0.0
    %2105 = vmatprep.subr.mxu0 0.0
    %2106 = vmatpush1.msra.mxu0 0.0
    %2107 = vmatprep.subr.mxu0 0.0
    %2108 = vmatpush1.msra.mxu0 0.0
    %2109 = vmatprep.subr.mxu0 0.0
    %2110 = vmatpush1.msra.mxu0 0.0
    %2111 = vmatprep.subr.mxu0 0.0
    %2112 = vmatpush1.msra.mxu0 0.0
    %2113 = vmatprep.subr.mxu0 0.0
    %2114 = vmatpush1.msra.mxu0 0.0
    %2115 = vmatprep.subr.mxu0 0.0
    %2116 = vmatpush1.msra.mxu0 0.0
    %2117 = vmatprep.subr.mxu0 0.0
    %2118 = vmatpush1.msra.mxu0 0.0
    %2119 = vmatprep.subr.mxu0 0.0
    %2120 = vmatpush1.msra.mxu0 0.0
    %2121 = vmatprep.mubr.f32.mxu0 0.0
    %2122 = vmatmul.mubr.f32.gmra.mrb[0].mxu0 %v2015
    %v2123 = vpop.f32.mrb[0].mxu0
    %v2124 = vadd.f32 0.0, %v2123
    %v2125 = vpop.f32.mrb[0].mxu0
    %2126 = vdwg.mxu0
    %2127 = vst.msk [vmem:[#allocation3 + $0x8] sm:$0xff] %vm175, %v2052
    %2128 = vst [vmem:[#allocation7 + $0x30] sm:$0xff] %v2124
    %v2129 = vld [vmem:[#allocation2] sm:$0xff]
    %v2130 = vld [vmem:[#allocation2 + $0x8] sm:$0xff]
    %v2131 = vld [vmem:[#allocation2 + $0x10] sm:$0xff]
    %v2132 = vld [vmem:[#allocation2 + $0x18] sm:$0xff]
    %v2133 = vpack.c.bf16 %v2130, %v2129
    %v2134 = vpack.c.bf16 %v2132, %v2131
    %v2135 = vld [vmem:[%s2 + $0x40] sm:$0xf]
    %v2136 = vld [vmem:[%s2 + $0x44] sm:$0xf]
    %v2137 = vld [vmem:[%s2 + $0x48] sm:$0xf]
    %v2138 = vld [vmem:[%s2 + $0x4c] sm:$0xf]
    %v2139 = vld [vmem:[%s2 + $0x50] sm:$0xf]
    %v2140 = vld [vmem:[%s2 + $0x54] sm:$0xf]
    %v2141 = vld [vmem:[%s2 + $0x58] sm:$0xf]
    %v2142 = vld [vmem:[%s2 + $0x5c] sm:$0xf]
    %v2143 = vlaneseq
    %v2144 = vshrl.u32 %v2143, 7
    %v2145 = vsub.s32 0, %v2144
    %v2146 = vrot.slane %v54, %v2145
    %v2155 = vunpack.c.l.b16 %v2135
    %v2156 = vunpack.c.l.b16 %v2136
    %v2157 = vunpack.c.l.b16 %v2137
    %v2158 = vunpack.c.l.b16 %v2138
    %v2159 = vunpack.c.l.b16 %v2139
    %v2160 = vunpack.c.l.b16 %v2140
    %v2161 = vunpack.c.l.b16 %v2141
    %v2162 = vunpack.c.l.b16 %v2142
    %v2163 = vpack.c.b16 %v2156, %v2155
    %v2164 = vpack.c.b16 %v2158, %v2157
    %v2165 = vpack.c.b16 %v2160, %v2159
    %v2166 = vpack.c.b16 %v2162, %v2161
    %v2172 = vsel %vm99, %v2133, 0
    %v2175 = vsel %vm99, %v2134, 0
    %2177 = vmatprep.subr.bf16.mxu0 0
    %2178 = vmatpush1.bf16.msra.mxu0 %v2163
    %2179 = vmatprep.subr.bf16.mxu0 0
    %2180 = vmatpush1.bf16.msra.mxu0 %v2164
    %2181 = vmatprep.subr.bf16.mxu0 0
    %2182 = vmatpush1.bf16.msra.mxu0 %v2165
    %2183 = vmatprep.subr.bf16.mxu0 0
    %2184 = vmatpush1.bf16.msra.mxu0 %v2166
    %2185 = vmatprep.subr.bf16.mxu0 0
    %2186 = vmatpush1.bf16.msra.mxu0 0
    %2187 = vmatprep.subr.bf16.mxu0 0
    %2188 = vmatpush1.bf16.msra.mxu0 0
    %2189 = vmatprep.subr.bf16.mxu0 0
    %2190 = vmatpush1.bf16.msra.mxu0 0
    %2191 = vmatprep.subr.bf16.mxu0 0
    %2192 = vmatpush1.bf16.msra.mxu0 0
    %2193 = vmatprep.subr.bf16.mxu0 0
    %2194 = vmatpush1.bf16.msra.mxu0 0
    %2195 = vmatprep.subr.bf16.mxu0 0
    %2196 = vmatpush1.bf16.msra.mxu0 0
    %2197 = vmatprep.subr.bf16.mxu0 0
    %2198 = vmatpush1.bf16.msra.mxu0 0
    %2199 = vmatprep.subr.bf16.mxu0 0
    %2200 = vmatpush1.bf16.msra.mxu0 0
    %2201 = vmatprep.subr.bf16.mxu0 0
    %2202 = vmatpush1.bf16.msra.mxu0 0
    %2203 = vmatprep.subr.bf16.mxu0 0
    %2204 = vmatpush1.bf16.msra.mxu0 0
    %2205 = vmatprep.subr.bf16.mxu0 0
    %2206 = vmatpush1.bf16.msra.mxu0 0
    %2207 = vmatprep.subr.bf16.mxu0 0
    %2208 = vmatpush1.bf16.msra.mxu0 0
    %2209 = vmatprep.mubr.bf16.mxu0 0
    %2210 = vmatmul.mubr.bf16.gmra.mrb[0].mxu0 %v2172
    %v2211 = vpop.f32.mrb[0].mxu0
    %v2212 = vadd.f32 %v2146, %v2211
    %v2213 = vpop.f32.mrb[0].mxu0
    %v2214 = vpop.f32.mrb[0].mxu0
    %v2215 = vadd.f32 %v2146, %v2214
    %v2216 = vpop.f32.mrb[0].mxu0
    %2217 = vmatprep.mubr.bf16.mxu0 0
    %2218 = vmatmul.mubr.bf16.gmra.mrb[0].mxu0 %v2175
    %v2219 = vpop.f32.mrb[0].mxu0
    %v2220 = vadd.f32 %v2146, %v2219
    %v2221 = vpop.f32.mrb[0].mxu0
    %v2222 = vpop.f32.mrb[0].mxu0
    %v2223 = vadd.f32 %v2146, %v2222
    %v2224 = vpop.f32.mrb[0].mxu0
    %2225 = vdwg.mxu0
    %v2226 = vld [vmem:[#allocation3] sm:$0xff]
    %v2227 = vld [vmem:[#allocation3 + $0x8] sm:$0xff]
    %v2228 = vpack.c.bf16 %v2227, %v2226
    %v2229 = vld [vmem:[%s3 + $0x50] sm:$0xf]
    %v2230 = vld [vmem:[%s3 + $0x54] sm:$0xf]
    %v2231 = vld [vmem:[%s3 + $0x58] sm:$0xf]
    %v2232 = vld [vmem:[%s3 + $0x5c] sm:$0xf]
    %v2233 = vlaneseq
    %v2234 = vshrl.u32 %v2233, 7
    %v2235 = vsub.s32 0, %v2234
    %v2236 = vrot.slane %v60, %v2235
    %v2241 = vunpack.c.l.b16 %v2229
    %v2242 = vunpack.c.l.b16 %v2230
    %v2243 = vunpack.c.l.b16 %v2231
    %v2244 = vunpack.c.l.b16 %v2232
    %v2245 = vpack.c.b16 %v2242, %v2241
    %v2246 = vpack.c.b16 %v2244, %v2243
    %v2250 = vsel %vm175, %v2228, 0
    %2252 = vmatprep.subr.bf16.mxu0 0
    %2253 = vmatpush1.bf16.msra.mxu0 %v2245
    %2254 = vmatprep.subr.bf16.mxu0 0
    %2255 = vmatpush1.bf16.msra.mxu0 %v2246
    %2256 = vmatprep.subr.bf16.mxu0 0
    %2257 = vmatpush1.bf16.msra.mxu0 0
    %2258 = vmatprep.subr.bf16.mxu0 0
    %2259 = vmatpush1.bf16.msra.mxu0 0
    %2260 = vmatprep.subr.bf16.mxu0 0
    %2261 = vmatpush1.bf16.msra.mxu0 0
    %2262 = vmatprep.subr.bf16.mxu0 0
    %2263 = vmatpush1.bf16.msra.mxu0 0
    %2264 = vmatprep.subr.bf16.mxu0 0
    %2265 = vmatpush1.bf16.msra.mxu0 0
    %2266 = vmatprep.subr.bf16.mxu0 0
    %2267 = vmatpush1.bf16.msra.mxu0 0
    %2268 = vmatprep.subr.bf16.mxu0 0
    %2269 = vmatpush1.bf16.msra.mxu0 0
    %2270 = vmatprep.subr.bf16.mxu0 0
    %2271 = vmatpush1.bf16.msra.mxu0 0
    %2272 = vmatprep.subr.bf16.mxu0 0
    %2273 = vmatpush1.bf16.msra.mxu0 0
    %2274 = vmatprep.subr.bf16.mxu0 0
    %2275 = vmatpush1.bf16.msra.mxu0 0
    %2276 = vmatprep.subr.bf16.mxu0 0
    %2277 = vmatpush1.bf16.msra.mxu0 0
    %2278 = vmatprep.subr.bf16.mxu0 0
    %2279 = vmatpush1.bf16.msra.mxu0 0
    %2280 = vmatprep.subr.bf16.mxu0 0
    %2281 = vmatpush1.bf16.msra.mxu0 0
    %2282 = vmatprep.subr.bf16.mxu0 0
    %2283 = vmatpush1.bf16.msra.mxu0 0
    %2284 = vmatprep.mubr.bf16.mxu0 0
    %2285 = vmatmul.mubr.bf16.gmra.mrb[0].mxu0 %v2250
    %v2286 = vpop.f32.mrb[0].mxu0
    %v2287 = vadd.f32 %v2236, %v2286
    %v2288 = vpop.f32.mrb[0].mxu0
    %v2289 = vpop.f32.mrb[0].mxu0
    %v2290 = vadd.f32 %v2236, %v2289
    %v2291 = vpop.f32.mrb[0].mxu0
    %2292 = vdwg.mxu0
    %v2293 = vadd.f32 %v2212, %v42
    %v2294 = vadd.f32 %v2215, %v43
    %v2295 = vadd.f32 %v2220, %v44
    %v2296 = vadd.f32 %v2223, %v45
    %v2297 = vsel %vm99, %v2293, 0.0
    %2298 = vadd.xlane.f32.xlu0 %v2297
    %v2299 = vpop.xlane.xlu0 %2298
    %v2300 = vsel %vm99, %v2294, 0.0
    %2301 = vadd.xlane.f32.xlu0 %v2300
    %v2302 = vpop.xlane.xlu0 %2301
    %v2303 = vsel %vm99, %v2295, 0.0
    %2304 = vadd.xlane.f32.xlu0 %v2303
    %v2305 = vpop.xlane.xlu0 %2304
    %v2306 = vsel %vm99, %v2296, 0.0
    %2307 = vadd.xlane.f32.xlu0 %v2306
    %v2308 = vpop.xlane.xlu0 %2307
    %v2309 = vrcp.pop 64.0
    %v2310 = vmul.f32 %v2299, %v2309
    %v2311 = vmul.f32 %v2302, %v2309
    %v2312 = vmul.f32 %v2305, %v2309
    %v2313 = vmul.f32 %v2308, %v2309
    %v2314 = vsub.f32 %v2293, %v2310
    %v2315 = vsub.f32 %v2294, %v2311
    %v2316 = vsub.f32 %v2295, %v2312
    %v2317 = vsub.f32 %v2296, %v2313
    %v2318 = vmul.f32 %v2314, %v2314
    %v2319 = vmul.f32 %v2315, %v2315
    %v2320 = vmul.f32 %v2316, %v2316
    %v2321 = vmul.f32 %v2317, %v2317
    %v2322 = vsel %vm99, %v2318, 0.0
    %2323 = vadd.xlane.f32.xlu0 %v2322
    %v2324 = vpop.xlane.xlu0 %2323
    %v2325 = vsel %vm99, %v2319, 0.0
    %2326 = vadd.xlane.f32.xlu0 %v2325
    %v2327 = vpop.xlane.xlu0 %2326
    %v2328 = vsel %vm99, %v2320, 0.0
    %2329 = vadd.xlane.f32.xlu0 %v2328
    %v2330 = vpop.xlane.xlu0 %2329
    %v2331 = vsel %vm99, %v2321, 0.0
    %2332 = vadd.xlane.f32.xlu0 %v2331
    %v2333 = vpop.xlane.xlu0 %2332
    %v2334 = vmul.f32 %v2324, %v2309
    %v2335 = vmul.f32 %v2327, %v2309
    %v2336 = vmul.f32 %v2330, %v2309
    %v2337 = vmul.f32 %v2333, %v2309
    %v2338 = vadd.f32 %v2334, 1e-05
    %v2339 = vadd.f32 %v2335, 1e-05
    %v2340 = vadd.f32 %v2336, 1e-05
    %v2341 = vadd.f32 %v2337, 1e-05
    %v2342 = vrsqrt.pop %v2338
    %v2343 = vrsqrt.pop %v2339
    %v2344 = vrsqrt.pop %v2340
    %v2345 = vrsqrt.pop %v2341
    %v2346 = vmul.f32 %v2314, %v2342
    %v2347 = vmul.f32 %v2315, %v2343
    %v2348 = vmul.f32 %v2316, %v2344
    %v2349 = vmul.f32 %v2317, %v2345
    %v2350 = vlaneseq
    %v2351 = vshrl.u32 %v2350, 7
    %v2352 = vsub.s32 0, %v2351
    %v2353 = vrot.slane %v55, %v2352
    %v2354 = vmul.f32 %v2346, %v2353
    %v2355 = vmul.f32 %v2347, %v2353
    %v2356 = vmul.f32 %v2348, %v2353
    %v2357 = vmul.f32 %v2349, %v2353
    %v2358 = vlaneseq
    %v2359 = vshrl.u32 %v2358, 7
    %v2360 = vsub.s32 0, %v2359
    %v2361 = vrot.slane %v56, %v2360
    %v2362 = vadd.f32 %v2354, %v2361
    %v2363 = vadd.f32 %v2355, %v2361
    %v2364 = vadd.f32 %v2356, %v2361
    %v2365 = vadd.f32 %v2357, %v2361
    %v2366 = vadd.f32 %v2287, %v46
    %v2367 = vadd.f32 %v2290, %v47
    %v2368 = vsel %vm175, %v2366, 0.0
    %2369 = vadd.xlane.f32.xlu0 %v2368
    %v2370 = vpop.xlane.xlu0 %2369
    %v2371 = vsel %vm175, %v2367, 0.0
    %2372 = vadd.xlane.f32.xlu0 %v2371
    %v2373 = vpop.xlane.xlu0 %2372
    %v2374 = vrcp.pop 32.0
    %v2375 = vmul.f32 %v2370, %v2374
    %v2376 = vmul.f32 %v2373, %v2374
    %v2377 = vsub.f32 %v2366, %v2375
    %v2378 = vsub.f32 %v2367, %v2376
    %v2379 = vmul.f32 %v2377, %v2377
    %v2380 = vmul.f32 %v2378, %v2378
    %v2381 = vsel %vm175, %v2379, 0.0
    %2382 = vadd.xlane.f32.xlu0 %v2381
    %v2383 = vpop.xlane.xlu0 %2382
    %v2384 = vsel %vm175, %v2380, 0.0
    %2385 = vadd.xlane.f32.xlu0 %v2384
    %v2386 = vpop.xlane.xlu0 %2385
    %v2387 = vmul.f32 %v2383, %v2374
    %v2388 = vmul.f32 %v2386, %v2374
    %v2389 = vadd.f32 %v2387, 1e-05
    %v2390 = vadd.f32 %v2388, 1e-05
    %v2391 = vrsqrt.pop %v2389
    %v2392 = vrsqrt.pop %v2390
    %v2393 = vmul.f32 %v2377, %v2391
    %v2394 = vmul.f32 %v2378, %v2392
    %v2395 = vlaneseq
    %v2396 = vshrl.u32 %v2395, 7
    %v2397 = vsub.s32 0, %v2396
    %v2398 = vrot.slane %v61, %v2397
    %v2399 = vmul.f32 %v2393, %v2398
    %v2400 = vmul.f32 %v2394, %v2398
    %v2401 = vlaneseq
    %v2402 = vshrl.u32 %v2401, 7
    %v2403 = vsub.s32 0, %v2402
    %v2404 = vrot.slane %v62, %v2403
    %v2405 = vadd.f32 %v2399, %v2404
    %v2406 = vadd.f32 %v2400, %v2404
    %v2407 = vld [vmem:[#allocation4 + $0x250] sm:$0x3]
    %v2409 = vsel %vm175, %v2407, 0
    %2411 = vmatprep.subr.mxu0 0.0
    %2412 = vmatpush1.msra.mxu0 %v2362
    %2413 = vmatprep.subr.mxu0 0.0
    %2414 = vmatpush1.msra.mxu0 %v2363
    %2415 = vmatprep.subr.mxu0 0.0
    %2416 = vmatpush1.msra.mxu0 %v2364
    %2417 = vmatprep.subr.mxu0 0.0
    %2418 = vmatpush1.msra.mxu0 %v2365
    %2419 = vmatprep.subr.mxu0 0.0
    %2420 = vmatpush1.msra.mxu0 0.0
    %2421 = vmatprep.subr.mxu0 0.0
    %2422 = vmatpush1.msra.mxu0 0.0
    %2423 = vmatprep.subr.mxu0 0.0
    %2424 = vmatpush1.msra.mxu0 0.0
    %2425 = vmatprep.subr.mxu0 0.0
    %2426 = vmatpush1.msra.mxu0 0.0
    %2427 = vmatprep.subr.mxu0 0.0
    %2428 = vmatpush1.msra.mxu0 0.0
    %2429 = vmatprep.subr.mxu0 0.0
    %2430 = vmatpush1.msra.mxu0 0.0
    %2431 = vmatprep.subr.mxu0 0.0
    %2432 = vmatpush1.msra.mxu0 0.0
    %2433 = vmatprep.subr.mxu0 0.0
    %2434 = vmatpush1.msra.mxu0 0.0
    %2435 = vmatprep.subr.mxu0 0.0
    %2436 = vmatpush1.msra.mxu0 0.0
    %2437 = vmatprep.subr.mxu0 0.0
    %2438 = vmatpush1.msra.mxu0 0.0
    %2439 = vmatprep.subr.mxu0 0.0
    %2440 = vmatpush1.msra.mxu0 0.0
    %2441 = vmatprep.subr.mxu0 0.0
    %2442 = vmatpush1.msra.mxu0 0.0
    %2443 = vmatprep.subr.mxu0 0.0
    %2444 = vmatpush1.msra.mxu0 0.0
    %2445 = vmatprep.subr.mxu0 0.0
    %2446 = vmatpush1.msra.mxu0 0.0
    %2447 = vmatprep.subr.mxu0 0.0
    %2448 = vmatpush1.msra.mxu0 0.0
    %2449 = vmatprep.subr.mxu0 0.0
    %2450 = vmatpush1.msra.mxu0 0.0
    %2451 = vmatprep.subr.mxu0 0.0
    %2452 = vmatpush1.msra.mxu0 0.0
    %2453 = vmatprep.subr.mxu0 0.0
    %2454 = vmatpush1.msra.mxu0 0.0
    %2455 = vmatprep.subr.mxu0 0.0
    %2456 = vmatpush1.msra.mxu0 0.0
    %2457 = vmatprep.subr.mxu0 0.0
    %2458 = vmatpush1.msra.mxu0 0.0
    %2459 = vmatprep.subr.mxu0 0.0
    %2460 = vmatpush1.msra.mxu0 0.0
    %2461 = vmatprep.subr.mxu0 0.0
    %2462 = vmatpush1.msra.mxu0 0.0
    %2463 = vmatprep.subr.mxu0 0.0
    %2464 = vmatpush1.msra.mxu0 0.0
    %2465 = vmatprep.subr.mxu0 0.0
    %2466 = vmatpush1.msra.mxu0 0.0
    %2467 = vmatprep.subr.mxu0 0.0
    %2468 = vmatpush1.msra.mxu0 0.0
    %2469 = vmatprep.subr.mxu0 0.0
    %2470 = vmatpush1.msra.mxu0 0.0
    %2471 = vmatprep.subr.mxu0 0.0
    %2472 = vmatpush1.msra.mxu0 0.0
    %2473 = vmatprep.subr.mxu0 0.0
    %2474 = vmatpush1.msra.mxu0 0.0
    %2475 = vmatprep.mubr.f32.mxu0 0.0
    %2476 = vmatmul.mubr.f32.gmra.mrb[0].mxu0 %v2409
    %v2477 = vpop.f32.mrb[0].mxu0
    %v2478 = vadd.f32 0.0, %v2477
    %v2479 = vpop.f32.mrb[0].mxu0
    %2480 = vdwg.mxu0
    %v2481 = vld [vmem:[#allocation4 + $0x258] sm:$0x3]
    %vm2482 = vcmask 130048
    %v2484 = vsel %vm2482, %v2481, 0
    %2486 = vmatprep.subr.mxu0 0.0
    %2487 = vmatpush1.msra.mxu0 %v2405
    %2488 = vmatprep.subr.mxu0 0.0
    %2489 = vmatpush1.msra.mxu0 %v2406
    %2490 = vmatprep.subr.mxu0 0.0
    %2491 = vmatpush1.msra.mxu0 0.0
    %2492 = vmatprep.subr.mxu0 0.0
    %2493 = vmatpush1.msra.mxu0 0.0
    %2494 = vmatprep.subr.mxu0 0.0
    %2495 = vmatpush1.msra.mxu0 0.0
    %2496 = vmatprep.subr.mxu0 0.0
    %2497 = vmatpush1.msra.mxu0 0.0
    %2498 = vmatprep.subr.mxu0 0.0
    %2499 = vmatpush1.msra.mxu0 0.0
    %2500 = vmatprep.subr.mxu0 0.0
    %2501 = vmatpush1.msra.mxu0 0.0
    %2502 = vmatprep.subr.mxu0 0.0
    %2503 = vmatpush1.msra.mxu0 0.0
    %2504 = vmatprep.subr.mxu0 0.0
    %2505 = vmatpush1.msra.mxu0 0.0
    %2506 = vmatprep.subr.mxu0 0.0
    %2507 = vmatpush1.msra.mxu0 0.0
    %2508 = vmatprep.subr.mxu0 0.0
    %2509 = vmatpush1.msra.mxu0 0.0
    %2510 = vmatprep.subr.mxu0 0.0
    %2511 = vmatpush1.msra.mxu0 0.0
    %2512 = vmatprep.subr.mxu0 0.0
    %2513 = vmatpush1.msra.mxu0 0.0
    %2514 = vmatprep.subr.mxu0 0.0
    %2515 = vmatpush1.msra.mxu0 0.0
    %2516 = vmatprep.subr.mxu0 0.0
    %2517 = vmatpush1.msra.mxu0 0.0
    %2518 = vmatprep.subr.mxu0 0.0
    %2519 = vmatpush1.msra.mxu0 0.0
    %2520 = vmatprep.subr.mxu0 0.0
    %2521 = vmatpush1.msra.mxu0 0.0
    %2522 = vmatprep.subr.mxu0 0.0
    %2523 = vmatpush1.msra.mxu0 0.0
    %2524 = vmatprep.subr.mxu0 0.0
    %2525 = vmatpush1.msra.mxu0 0.0
    %2526 = vmatprep.subr.mxu0 0.0
    %2527 = vmatpush1.msra.mxu0 0.0
    %2528 = vmatprep.subr.mxu0 0.0
    %2529 = vmatpush1.msra.mxu0 0.0
    %2530 = vmatprep.subr.mxu0 0.0
    %2531 = vmatpush1.msra.mxu0 0.0
    %2532 = vmatprep.subr.mxu0 0.0
    %2533 = vmatpush1.msra.mxu0 0.0
    %2534 = vmatprep.subr.mxu0 0.0
    %2535 = vmatpush1.msra.mxu0 0.0
    %2536 = vmatprep.subr.mxu0 0.0
    %2537 = vmatpush1.msra.mxu0 0.0
    %2538 = vmatprep.subr.mxu0 0.0
    %2539 = vmatpush1.msra.mxu0 0.0
    %2540 = vmatprep.subr.mxu0 0.0
    %2541 = vmatpush1.msra.mxu0 0.0
    %2542 = vmatprep.subr.mxu0 0.0
    %2543 = vmatpush1.msra.mxu0 0.0
    %2544 = vmatprep.subr.mxu0 0.0
    %2545 = vmatpush1.msra.mxu0 0.0
    %2546 = vmatprep.subr.mxu0 0.0
    %2547 = vmatpush1.msra.mxu0 0.0
    %2548 = vmatprep.subr.mxu0 0.0
    %2549 = vmatpush1.msra.mxu0 0.0
    %2550 = vmatprep.mubr.f32.mxu0 0.0
    %2551 = vmatmul.mubr.f32.gmra.mrb[0].mxu0 %v2484
    %v2552 = vpop.f32.mrb[0].mxu0
    %v2553 = vadd.f32 0.0, %v2552
    %v2554 = vpop.f32.mrb[0].mxu0
    %2555 = vdwg.mxu0
    %v2556 = vld [vmem:[%s5] sm:$0xf]
    %v2557 = vld [vmem:[%s5 + $0x4] sm:$0xf]
    %v2558 = vld [vmem:[%s5 + $0x8] sm:$0xf]
    %v2559 = vld [vmem:[%s5 + $0xc] sm:$0xf]
    %v2560 = vld [vmem:[%s5 + $0x10] sm:$0xf]
    %v2561 = vld [vmem:[%s5 + $0x14] sm:$0xf]
    %v2562 = vld [vmem:[%s5 + $0x18] sm:$0xf]
    %v2563 = vld [vmem:[%s5 + $0x1c] sm:$0xf]
    %v2564 = vld [vmem:[%s5 + $0x20] sm:$0xf]
    %v2565 = vld [vmem:[%s5 + $0x24] sm:$0xf]
    %v2566 = vld [vmem:[%s5 + $0x28] sm:$0xf]
    %v2567 = vld [vmem:[%s5 + $0x2c] sm:$0xf]
    %v2568 = vld [vmem:[%s5 + $0x30] sm:$0x1]
    %v2569 = vunpack.c.l.bf16 %v2568
    %v2570 = vld [vmem:[%s5 + $0x38] sm:$0xf]
    %v2571 = vld [vmem:[%s5 + $0x3c] sm:$0xf]
    %v2572 = vld [vmem:[%s5 + $0x40] sm:$0xf]
    %v2573 = vld [vmem:[%s5 + $0x44] sm:$0xf]
    %v2574 = vld [vmem:[%s5 + $0x48] sm:$0x1]
    %v2575 = vunpack.c.l.bf16 %v2574
    %v2576 = vpack.c.bf16 %v2478, %v2478
    %v2577 = vpack.c.bf16 %v2553, %v2553
    %v2582 = vunpack.c.l.b16 %v2564
    %v2583 = vunpack.c.l.b16 %v2565
    %v2584 = vunpack.c.l.b16 %v2566
    %v2585 = vunpack.c.l.b16 %v2567
    %v2586 = vpack.c.b16 %v2583, %v2582
    %v2587 = vpack.c.b16 %v2585, %v2584
    %v2591 = vsel %vm175, %v2577, 0
    %2593 = vmatprep.subr.bf16.mxu0 0
    %2594 = vmatpush1.bf16.msra.mxu0 %v2586
    %2595 = vmatprep.subr.bf16.mxu0 0
    %2596 = vmatpush1.bf16.msra.mxu0 %v2587
    %2597 = vmatprep.subr.bf16.mxu0 0
    %2598 = vmatpush1.bf16.msra.mxu0 0
    %2599 = vmatprep.subr.bf16.mxu0 0
    %2600 = vmatpush1.bf16.msra.mxu0 0
    %2601 = vmatprep.subr.bf16.mxu0 0
    %2602 = vmatpush1.bf16.msra.mxu0 0
    %2603 = vmatprep.subr.bf16.mxu0 0
    %2604 = vmatpush1.bf16.msra.mxu0 0
    %2605 = vmatprep.subr.bf16.mxu0 0
    %2606 = vmatpush1.bf16.msra.mxu0 0
    %2607 = vmatprep.subr.bf16.mxu0 0
    %2608 = vmatpush1.bf16.msra.mxu0 0
    %2609 = vmatprep.subr.bf16.mxu0 0
    %2610 = vmatpush1.bf16.msra.mxu0 0
    %2611 = vmatprep.subr.bf16.mxu0 0
    %2612 = vmatpush1.bf16.msra.mxu0 0
    %2613 = vmatprep.subr.bf16.mxu0 0
    %2614 = vmatpush1.bf16.msra.mxu0 0
    %2615 = vmatprep.subr.bf16.mxu0 0
    %2616 = vmatpush1.bf16.msra.mxu0 0
    %2617 = vmatprep.subr.bf16.mxu0 0
    %2618 = vmatpush1.bf16.msra.mxu0 0
    %2619 = vmatprep.subr.bf16.mxu0 0
    %2620 = vmatpush1.bf16.msra.mxu0 0
    %2621 = vmatprep.subr.bf16.mxu0 0
    %2622 = vmatpush1.bf16.msra.mxu0 0
    %2623 = vmatprep.subr.bf16.mxu0 0
    %2624 = vmatpush1.bf16.msra.mxu0 0
    %2625 = vmatprep.mubr.bf16.mxu0 0
    %2626 = vmatmul.mubr.bf16.gmra.mrb[0].mxu0 %v2591
    %v2627 = vpop.f32.mrb[0].mxu0
    %v2628 = vadd.f32 0.0, %v2627
    %v2629 = vpop.f32.mrb[0].mxu0
    %v2630 = vpop.f32.mrb[0].mxu0
    %v2631 = vpop.f32.mrb[0].mxu0
    %2632 = vdwg.mxu0
    %v2641 = vunpack.c.l.b16 %v2556
    %v2642 = vunpack.c.l.b16 %v2557
    %v2643 = vunpack.c.l.b16 %v2558
    %v2644 = vunpack.c.l.b16 %v2559
    %v2645 = vunpack.c.l.b16 %v2560
    %v2646 = vunpack.c.l.b16 %v2561
    %v2647 = vunpack.c.l.b16 %v2562
    %v2648 = vunpack.c.l.b16 %v2563
    %v2649 = vpack.c.b16 %v2642, %v2641
    %v2650 = vpack.c.b16 %v2644, %v2643
    %v2651 = vpack.c.b16 %v2646, %v2645
    %v2652 = vpack.c.b16 %v2648, %v2647
    %v2658 = vsel %vm99, %v2576, 0
    %2660 = vmatprep.subr.bf16.mxu0 0
    %2661 = vmatpush1.bf16.msra.mxu0 %v2649
    %2662 = vmatprep.subr.bf16.mxu0 0
    %2663 = vmatpush1.bf16.msra.mxu0 %v2650
    %2664 = vmatprep.subr.bf16.mxu0 0
    %2665 = vmatpush1.bf16.msra.mxu0 %v2651
    %2666 = vmatprep.subr.bf16.mxu0 0
    %2667 = vmatpush1.bf16.msra.mxu0 %v2652
    %2668 = vmatprep.subr.bf16.mxu0 0
    %2669 = vmatpush1.bf16.msra.mxu0 0
    %2670 = vmatprep.subr.bf16.mxu0 0
    %2671 = vmatpush1.bf16.msra.mxu0 0
    %2672 = vmatprep.subr.bf16.mxu0 0
    %2673 = vmatpush1.bf16.msra.mxu0 0
    %2674 = vmatprep.subr.bf16.mxu0 0
    %2675 = vmatpush1.bf16.msra.mxu0 0
    %2676 = vmatprep.subr.bf16.mxu0 0
    %2677 = vmatpush1.bf16.msra.mxu0 0
    %2678 = vmatprep.subr.bf16.mxu0 0
    %2679 = vmatpush1.bf16.msra.mxu0 0
    %2680 = vmatprep.subr.bf16.mxu0 0
    %2681 = vmatpush1.bf16.msra.mxu0 0
    %2682 = vmatprep.subr.bf16.mxu0 0
    %2683 = vmatpush1.bf16.msra.mxu0 0
    %2684 = vmatprep.subr.bf16.mxu0 0
    %2685 = vmatpush1.bf16.msra.mxu0 0
    %2686 = vmatprep.subr.bf16.mxu0 0
    %2687 = vmatpush1.bf16.msra.mxu0 0
    %2688 = vmatprep.subr.bf16.mxu0 0
    %2689 = vmatpush1.bf16.msra.mxu0 0
    %2690 = vmatprep.subr.bf16.mxu0 0
    %2691 = vmatpush1.bf16.msra.mxu0 0
    %2692 = vmatprep.mubr.bf16.mxu0 0
    %2693 = vmatmul.mubr.bf16.gmra.mrb[0].mxu0 %v2658
    %v2694 = vpop.f32.mrb[0].mxu0
    %v2695 = vadd.f32 %v2628, %v2694
    %v2696 = vpop.f32.mrb[0].mxu0
    %v2697 = vpop.f32.mrb[0].mxu0
    %v2698 = vpop.f32.mrb[0].mxu0
    %2699 = vdwg.mxu0
    %v2700 = vlaneseq
    %v2701 = vshrl.u32 %v2700, 7
    %v2702 = vsub.s32 0, %v2701
    %v2703 = vrot.slane %v2569, %v2702
    %v2704 = vadd.f32 %v2695, %v2703
    %v2705 = vmax.f32 %v2704, 0.0
    %v2706 = vpack.c.bf16 %v2705, %v2705
    %v2707 = vlaneseq
    %v2708 = vshrl.u32 %v2707, 7
    %v2709 = vsub.s32 0, %v2708
    %v2710 = vrot.slane %v2575, %v2709
    %v2715 = vunpack.c.l.b16 %v2570
    %v2716 = vunpack.c.l.b16 %v2571
    %v2717 = vunpack.c.l.b16 %v2572
    %v2718 = vunpack.c.l.b16 %v2573
    %v2719 = vpack.c.b16 %v2716, %v2715
    %v2720 = vpack.c.b16 %v2718, %v2717
    %v2724 = vsel %vm175, %v2706, 0
    %2726 = vmatprep.subr.bf16.mxu0 0
    %2727 = vmatpush1.bf16.msra.mxu0 %v2719
    %2728 = vmatprep.subr.bf16.mxu0 0
    %2729 = vmatpush1.bf16.msra.mxu0 %v2720
    %2730 = vmatprep.subr.bf16.mxu0 0
    %2731 = vmatpush1.bf16.msra.mxu0 0
    %2732 = vmatprep.subr.bf16.mxu0 0
    %2733 = vmatpush1.bf16.msra.mxu0 0
    %2734 = vmatprep.subr.bf16.mxu0 0
    %2735 = vmatpush1.bf16.msra.mxu0 0
    %2736 = vmatprep.subr.bf16.mxu0 0
    %2737 = vmatpush1.bf16.msra.mxu0 0
    %2738 = vmatprep.subr.bf16.mxu0 0
    %2739 = vmatpush1.bf16.msra.mxu0 0
    %2740 = vmatprep.subr.bf16.mxu0 0
    %2741 = vmatpush1.bf16.msra.mxu0 0
    %2742 = vmatprep.subr.bf16.mxu0 0
    %2743 = vmatpush1.bf16.msra.mxu0 0
    %2744 = vmatprep.subr.bf16.mxu0 0
    %2745 = vmatpush1.bf16.msra.mxu0 0
    %2746 = vmatprep.subr.bf16.mxu0 0
    %2747 = vmatpush1.bf16.msra.mxu0 0
    %2748 = vmatprep.subr.bf16.mxu0 0
    %2749 = vmatpush1.bf16.msra.mxu0 0
    %2750 = vmatprep.subr.bf16.mxu0 0
    %2751 = vmatpush1.bf16.msra.mxu0 0
    %2752 = vmatprep.subr.bf16.mxu0 0
    %2753 = vmatpush1.bf16.msra.mxu0 0
    %2754 = vmatprep.subr.bf16.mxu0 0
    %2755 = vmatpush1.bf16.msra.mxu0 0
    %2756 = vmatprep.subr.bf16.mxu0 0
    %2757 = vmatpush1.bf16.msra.mxu0 0
    %2758 = vmatprep.mubr.bf16.mxu0 0
    %2759 = vmatmul.mubr.bf16.gmra.mrb[0].mxu0 %v2724
    %v2760 = vpop.f32.mrb[0].mxu0
    %v2761 = vadd.f32 %v2710, %v2760
    %v2762 = vpop.f32.mrb[0].mxu0
    %v2763 = vpop.f32.mrb[0].mxu0
    %v2764 = vpop.f32.mrb[0].mxu0
    %2765 = vdwg.mxu0
    %2766 = vst [vmem:[#allocation7 + $0x18] sm:$0x1] %v2761
    %2767 = vst [vmem:[#allocation7 + $0x37] sm:$0x2] %v2761
    // Predicated region
    $region34: #{tpu_custom_call.1} parent=1 // pred_check
      _
    $region35: #{tpu_custom_call.1} parent=1 // pred_check_branch
      %2769 = sbr.rel (0) target = $region37
    $region36: #{tpu_custom_call.1} parent=1 // pred_region
      %s2771 = ssub.s32 1024, 1024
      %2772 = vsyncadd [#allocation6], %s2771
      %s2773 = sshll.u32 [#allocation7], 4
      %s2774 = int_to_ptr.vmem [resolvable:$true] %s2773
      %2779 = dma.vmem_to_hbm [thread:$0]  %s2774, 1024, %s7, [#allocation6], 128, 128, 8
    $region37: #{tpu_custom_call.1} parent=1 // pred_fallthru
      _
    // Predicated region
    $region38: #{tpu_custom_call.1} parent=1 // pred_check
      _
    $region39: #{tpu_custom_call.1} parent=1 // pred_check_branch
      %2781 = sbr.rel (0) target = $region41
    $region40: #{tpu_custom_call.1} parent=1 // pred_region
      %2782 = dma.done [#allocation6], 1024
    $region41: #{tpu_custom_call.1} parent=1 // pred_fallthru
      _
    %2783 = vsyncpa [#allocation5], 1
    %2784 = vsyncpa [#allocation6], 1

</llo_original>
